<compile_context>
chip_gen: v7x
topology: tpu7x:2x2x1
jax: 0.10.0
libtpu: 0.0.40
codegen_flags: <defaults>
</compile_context>

<pallas_src>
import functools
import numpy as np

import jax
import jax.numpy as jnp
from jax.experimental import pallas as pl
from jax.experimental.pallas import tpu as pltpu


# ----------------------------------------------------------------------------
# Helpers
# ----------------------------------------------------------------------------

_TN = 8  # masks per grid step (sublane-friendly, amortizes ~0.35us step overhead)


def _round_up(x, m):
    return ((x + m - 1) // m) * m


def _choose_point_tile(p128, cap=512):
    """Largest multiple of 128 <= cap that divides the 128-padded point count.
    cap=512 keeps the per-step VMEM footprint safe on v7x (64 MiB physical)."""
    cap = min(cap, p128)
    for t in range(cap, 0, -128):
        if p128 % t == 0:
            return t
    return 128


# ----------------------------------------------------------------------------
# Pallas kernels
# ----------------------------------------------------------------------------

def _ce_kernel(logits_ref, targets_ref, valid_ref, weight_ref, out_ref,
               num_acc, den_acc):
    """Weighted cross-entropy (F.cross_entropy with per-class weight, 'mean').

    Lane-dense layout: classes on sublanes, samples on lanes.
      logits_ref : (C, T) f32 VMEM     tile of the (C, N_pad) transposed logits
      targets_ref: (1, T) i32 VMEM
      valid_ref  : (1, T) f32 VMEM     1.0 for real samples, 0.0 for padding
      weight_ref : (C, 1) f32 VMEM     per-class weights (resident)
      out_ref    : (1, 1) f32 SMEM
      num_acc / den_acc : (1, 1) f32 VMEM scratch accumulators
    """
    i = pl.program_id(0)

    @pl.when(i == 0)
    def _():
        num_acc[...] = jnp.zeros_like(num_acc)
        den_acc[...] = jnp.zeros_like(den_acc)

    logits = logits_ref[...].astype(jnp.float32)           # (C, T)
    tgt = targets_ref[...]                                  # (1, T)
    valid = valid_ref[...]                                  # (1, T)
    w_col = weight_ref[...]                                 # (C, 1)
    c, t = logits.shape

    cls_iota = jax.lax.broadcasted_iota(jnp.int32, (c, t), 0)
    onehot = (cls_iota == tgt).astype(jnp.float32)          # (C, T)

    m = jnp.max(logits, axis=0, keepdims=True)              # (1, T)
    lse = m + jnp.log(jnp.sum(jnp.exp(logits - m), axis=0, keepdims=True))
    logit_t = jnp.sum(logits * onehot, axis=0, keepdims=True)
    w = jnp.sum(w_col * onehot, axis=0, keepdims=True) * valid     # (1, T)

    num_acc[...] += jnp.sum(w * (lse - logit_t), keepdims=True)
    den_acc[...] += jnp.sum(w, keepdims=True)

    @pl.when(i == pl.num_programs(0) - 1)
    def _():
        out_ref[0, 0] = (num_acc[...] / den_acc[...])[0, 0]


def _point_sample_kernel(img_ref, x_ref, y_ref, out_ref):
    """Batched bilinear point sampling (align_corners=False, zero padding).

    Tent-form separable weights:  a[idx, p] = max(0, 1 - |idx - coord_p|)
    (out-of-range corners get weight 0 == zero padding). W-contraction on MXU,
    H-contraction as a sublane reduce.

      img_ref : (TN, H, W) f32 VMEM    tile of masks
      x_ref   : (TN, TP) f32 VMEM      normalized x coords in [0, 1]
      y_ref   : (TN, TP) f32 VMEM
      out_ref : (TN, TP) f32 VMEM      sampled values
    """
    tn, tp = x_ref.shape
    h, w = img_ref.shape[1], img_ref.shape[2]

    wi = jax.lax.broadcasted_iota(jnp.int32, (w, tp), 0).astype(jnp.float32)
    hi = jax.lax.broadcasted_iota(jnp.int32, (h, tp), 0).astype(jnp.float32)

    rows = []
    for m in range(tn):
        xm = x_ref[pl.ds(m, 1), :] * float(w) - 0.5         # (1, TP)
        ym = y_ref[pl.ds(m, 1), :] * float(h) - 0.5
        ax = jnp.maximum(1.0 - jnp.abs(wi - xm), 0.0)       # (W, TP)
        ay = jnp.maximum(1.0 - jnp.abs(hi - ym), 0.0)       # (H, TP)
        tmp = jnp.dot(img_ref[m], ax, preferred_element_type=jnp.float32)   # (H, TP)
        rows.append(jnp.sum(tmp * ay, axis=0, keepdims=True))               # (1, TP)
    out_ref[...] = jnp.concatenate(rows, axis=0).astype(out_ref.dtype)


def _fused_mask_loss_kernel(img_ref, x_ref, y_ref, valid_ref, pvalid_ref, nm_ref,
                            ce_out, dice_out,
                            bce_acc, st_acc, s_acc, t_acc, ce_acc, dice_acc,
                            *, num_points):
    """Fused point sampling + sigmoid_ce_loss + dice_loss.

      img_ref   : (TN, 2H, W) f32 VMEM   pred mask rows 0..H-1, target rows H..2H-1
      x_ref     : (TN, TP) f32 VMEM      point x coords in [0, 1]
      y_ref     : (TN, TP) f32 VMEM
      valid_ref : (TN, 1)  f32 VMEM      1.0 for real masks, 0.0 padding rows
      pvalid_ref: (1, TP)  f32 VMEM      1.0 for real points, 0.0 padded points
      nm_ref    : (1, 1)   f32 SMEM      num_masks normalizer
      ce_out / dice_out : (1, 1) f32 SMEM
      scratch   : per-mask-tile partial sums (TN, 1) x4, global scalars (1, 1) x2
    """
    i = pl.program_id(0)
    j = pl.program_id(1)
    last_i = pl.num_programs(0) - 1
    last_j = pl.num_programs(1) - 1

    @pl.when((i == 0) & (j == 0))
    def _():
        ce_acc[...] = jnp.zeros_like(ce_acc)
        dice_acc[...] = jnp.zeros_like(dice_acc)

    @pl.when(j == 0)
    def _():
        bce_acc[...] = jnp.zeros_like(bce_acc)
        st_acc[...] = jnp.zeros_like(st_acc)
        s_acc[...] = jnp.zeros_like(s_acc)
        t_acc[...] = jnp.zeros_like(t_acc)

    tn, tp = x_ref.shape
    h2, w = img_ref.shape[1], img_ref.shape[2]
    h = h2 // 2

    pvalid = pvalid_ref[...]                                # (1, TP)
    wi = jax.lax.broadcasted_iota(jnp.int32, (w, tp), 0).astype(jnp.float32)
    hi = jax.lax.broadcasted_iota(jnp.int32, (h, tp), 0).astype(jnp.float32)

    bce_rows, st_rows, s_rows, t_rows = [], [], [], []
    for m in range(tn):
        xm = x_ref[pl.ds(m, 1), :] * float(w) - 0.5         # (1, TP)
        ym = y_ref[pl.ds(m, 1), :] * float(h) - 0.5
        # Tent-form bilinear weights (zero padding outside the image).
        ax = jnp.maximum(1.0 - jnp.abs(wi - xm), 0.0)       # (W, TP)
        ay = jnp.maximum(1.0 - jnp.abs(hi - ym), 0.0)       # (H, TP)
        # One MXU push over the pred/target channel-stacked (2H, W) image.
        tmp = jnp.dot(img_ref[m], ax, preferred_element_type=jnp.float32)   # (2H, TP)
        logit = jnp.sum(tmp[:h] * ay, axis=0, keepdims=True)   # (1, TP) pred point logits
        tgt = jnp.sum(tmp[h:] * ay, axis=0, keepdims=True)     # (1, TP) target point labels

        # Shared transcendental: e = exp(-|x|).
        e = jnp.exp(-jnp.abs(logit))
        bce = jnp.maximum(logit, 0.0) - logit * tgt + jnp.log(1.0 + e)
        inv_1pe = pl.reciprocal(1.0 + e, approx=True)
        sig = jnp.where(logit >= 0.0, inv_1pe, e * inv_1pe)

        bce_rows.append(jnp.sum(bce * pvalid, axis=-1, keepdims=True))      # (1, 1)
        st_rows.append(jnp.sum(sig * tgt * pvalid, axis=-1, keepdims=True))
        s_rows.append(jnp.sum(sig * pvalid, axis=-1, keepdims=True))
        t_rows.append(jnp.sum(tgt * pvalid, axis=-1, keepdims=True))

    bce_acc[...] += jnp.concatenate(bce_rows, axis=0)       # (TN, 1)
    st_acc[...] += jnp.concatenate(st_rows, axis=0)
    s_acc[...] += jnp.concatenate(s_rows, axis=0)
    t_acc[...] += jnp.concatenate(t_rows, axis=0)

    @pl.when(j == last_j)
    def _():
        valid = valid_ref[...]                              # (TN, 1)
        ce_rows = bce_acc[...] * (1.0 / float(num_points))
        dice_rows = 1.0 - (2.0 * st_acc[...] + 1.0) / (s_acc[...] + t_acc[...] + 1.0)
        ce_acc[...] += jnp.sum(ce_rows * valid, keepdims=True)
        dice_acc[...] += jnp.sum(dice_rows * valid, keepdims=True)

    @pl.when((i == last_i) & (j == last_j))
    def _():
        nm = nm_ref[0, 0]
        ce_out[0, 0] = (ce_acc[...] / nm)[0, 0]
        dice_out[0, 0] = (dice_acc[...] / nm)[0, 0]


# ----------------------------------------------------------------------------
# Pallas wrappers
# ----------------------------------------------------------------------------

def weighted_cross_entropy(logits, targets, weight):
    """logits (N, C), targets (N,) int, weight (C,) -> scalar f32."""
    n, c = logits.shape
    tile = min(2048, _round_up(max(n, 1), 128))
    n_pad = _round_up(max(n, 1), tile)

    logits_t = jnp.pad(jnp.transpose(logits).astype(jnp.float32),
                       ((0, 0), (0, n_pad - n)))
    tgt = jnp.pad(targets.astype(jnp.int32).reshape(1, n), ((0, 0), (0, n_pad - n)))
    valid = (jnp.arange(n_pad) < n).astype(jnp.float32).reshape(1, n_pad)
    w = weight.astype(jnp.float32).reshape(c, 1)

    out = pl.pallas_call(
        _ce_kernel,
        out_shape=jax.ShapeDtypeStruct((1, 1), jnp.float32),
        grid=(n_pad // tile,),
        in_specs=[
            pl.BlockSpec((c, tile), lambda i: (0, i)),
            pl.BlockSpec((1, tile), lambda i: (0, i)),
            pl.BlockSpec((1, tile), lambda i: (0, i)),
            pl.BlockSpec((c, 1), lambda i: (0, 0)),
        ],
        out_specs=pl.BlockSpec(memory_space=pltpu.SMEM),
        scratch_shapes=[pltpu.VMEM((1, 1), jnp.float32),
                        pltpu.VMEM((1, 1), jnp.float32)],
        compiler_params=pltpu.CompilerParams(dimension_semantics=("arbitrary",)),
    )(logits_t, tgt, valid, w)
    return out[0, 0]


def point_sample_single(imgs, coords):
    """Bilinear sampling of (N, H, W) masks at coords (N, S, 2) -> (N, S) f32."""
    n, h, w = imgs.shape
    s = coords.shape[1]
    n_pad = _round_up(max(n, 1), _TN)
    s128 = _round_up(max(s, 1), 128)
    tp = _choose_point_tile(s128)

    imgs_p = jnp.pad(imgs.astype(jnp.float32), ((0, n_pad - n), (0, 0), (0, 0)))
    x = jnp.pad(coords[..., 0].astype(jnp.float32), ((0, n_pad - n), (0, s128 - s)))
    y = jnp.pad(coords[..., 1].astype(jnp.float32), ((0, n_pad - n), (0, s128 - s)))

    out = pl.pallas_call(
        _point_sample_kernel,
        out_shape=jax.ShapeDtypeStruct((n_pad, s128), jnp.float32),
        grid=(n_pad // _TN, s128 // tp),
        in_specs=[
            pl.BlockSpec((_TN, h, w), lambda i, j: (i, 0, 0)),
            pl.BlockSpec((_TN, tp), lambda i, j: (i, j)),
            pl.BlockSpec((_TN, tp), lambda i, j: (i, j)),
        ],
        out_specs=pl.BlockSpec((_TN, tp), lambda i, j: (i, j)),
        compiler_params=pltpu.CompilerParams(
            dimension_semantics=("parallel", "parallel")),
    )(imgs_p, x, y)
    return out[:n, :s]


def fused_mask_point_losses(src_masks, target_masks, point_coords, num_masks):
    """Sample pred+target masks at point_coords and reduce to (ce, dice) scalars.

    src_masks / target_masks: (N, H, W); point_coords: (N, P, 2); num_masks scalar.
    """
    n, h, w = src_masks.shape
    p = point_coords.shape[1]
    n_pad = _round_up(max(n, 1), _TN)
    p128 = _round_up(max(p, 1), 128)
    tp = _choose_point_tile(p128)

    # Channel-stack pred/target along H so the kernel does one (2H,W)@(W,TP) dot.
    stacked = jnp.concatenate([src_masks.astype(jnp.float32),
                               target_masks.astype(jnp.float32)], axis=1)   # (N, 2H, W)
    stacked = jnp.pad(stacked, ((0, n_pad - n), (0, 0), (0, 0)))
    x = jnp.pad(point_coords[..., 0].astype(jnp.float32),
                ((0, n_pad - n), (0, p128 - p)))
    y = jnp.pad(point_coords[..., 1].astype(jnp.float32),
                ((0, n_pad - n), (0, p128 - p)))
    valid = (jnp.arange(n_pad) < n).astype(jnp.float32).reshape(n_pad, 1)
    pvalid = (jnp.arange(p128) < p).astype(jnp.float32).reshape(1, p128)
    nm = jnp.reshape(num_masks.astype(jnp.float32), (1, 1))

    kernel = functools.partial(_fused_mask_loss_kernel, num_points=p)
    ce, dice = pl.pallas_call(
        kernel,
        out_shape=(jax.ShapeDtypeStruct((1, 1), jnp.float32),
                   jax.ShapeDtypeStruct((1, 1), jnp.float32)),
        grid=(n_pad // _TN, p128 // tp),
        in_specs=[
            pl.BlockSpec((_TN, 2 * h, w), lambda i, j: (i, 0, 0)),
            pl.BlockSpec((_TN, tp), lambda i, j: (i, j)),
            pl.BlockSpec((_TN, tp), lambda i, j: (i, j)),
            pl.BlockSpec((_TN, 1), lambda i, j: (i, 0)),
            pl.BlockSpec((1, tp), lambda i, j: (0, j)),
            pl.BlockSpec(memory_space=pltpu.SMEM),
        ],
        out_specs=(pl.BlockSpec(memory_space=pltpu.SMEM),
                   pl.BlockSpec(memory_space=pltpu.SMEM)),
        scratch_shapes=[pltpu.VMEM((_TN, 1), jnp.float32)] * 4
                     + [pltpu.VMEM((1, 1), jnp.float32)] * 2,
        compiler_params=pltpu.CompilerParams(
            dimension_semantics=("arbitrary", "arbitrary")),
    )(stacked, x, y, valid, pvalid, nm)
    return ce[0, 0], dice[0, 0]


# ----------------------------------------------------------------------------
# JAX glue (uncertainty, point selection) — kept in XLA where it fuses well
# ----------------------------------------------------------------------------

def calculate_uncertainty(logits):
    """-|logit|; trivial elementwise op, left to XLA so it fuses into top_k."""
    return -jnp.abs(logits)


def get_uncertain_point_coords_with_randomness(key, coarse_masks, num_points,
                                               oversample_ratio,
                                               importance_sample_ratio):
    """coarse_masks: (N, H, W) pred mask logits -> (N, num_points, 2) coords."""
    n = coarse_masks.shape[0]
    num_sampled = int(num_points * oversample_ratio)
    k1, k2 = jax.random.split(key)
    point_coords = jax.random.uniform(k1, (n, num_sampled, 2), dtype=jnp.float32)
    point_logits = point_sample_single(coarse_masks, point_coords)      # (N, S)
    point_uncertainties = calculate_uncertainty(point_logits)
    num_uncertain = int(importance_sample_ratio * num_points)
    num_random = num_points - num_uncertain
    _, idx = jax.lax.top_k(point_uncertainties, num_uncertain)
    selected = jnp.take_along_axis(point_coords, idx[:, :, None], axis=1)
    if num_random > 0:
        rand_coords = jax.random.uniform(k2, (n, num_random, 2), dtype=jnp.float32)
        selected = jnp.concatenate([selected, rand_coords], axis=1)
    return selected


# ----------------------------------------------------------------------------
# Jitted device-side loss computation
# ----------------------------------------------------------------------------

def _device_losses(pred_logits, pred_masks, labels_cat, batch_idx, src_idx,
                   target_masks, num_masks, empty_weight, key, *,
                   losses, num_classes, num_points, oversample_ratio,
                   importance_sample_ratio):
    out = {}
    b, q, c1 = pred_logits.shape

    if 'labels' in losses:
        target_classes = jnp.full((b, q), num_classes, dtype=jnp.int32)
        target_classes = target_classes.at[batch_idx, src_idx].set(labels_cat)
        out['loss_ce'] = weighted_cross_entropy(
            pred_logits.reshape(b * q, c1).astype(jnp.float32),
            target_classes.reshape(b * q),
            empty_weight)

    if 'masks' in losses:
        src_masks = pred_masks[batch_idx, src_idx].astype(jnp.float32)   # (N, H, W)
        tgt_masks = target_masks.astype(jnp.float32)
        point_coords = get_uncertain_point_coords_with_randomness(
            key, src_masks, num_points, oversample_ratio, importance_sample_ratio)
        # Fused sampler + BCE/dice reduction (no (N,2,P) HBM round-trip).
        ce, dice = fused_mask_point_losses(src_masks, tgt_masks, point_coords,
                                           num_masks)
        out['loss_mask'] = ce
        out['loss_dice'] = dice
    return out


# ----------------------------------------------------------------------------
# SetCriterion (forward only)
# ----------------------------------------------------------------------------

class SetCriterion:
    def __init__(self, num_classes, weight_dict, eos_coef, losses, num_points,
                 oversample_ratio, importance_sample_ratio,
                 parts_on=False, parts_decoder=None):
        self.num_classes = num_classes
        self.weight_dict = weight_dict
        self.eos_coef = eos_coef
        self.losses = losses
        self.num_points = num_points
        self.oversample_ratio = oversample_ratio
        self.importance_sample_ratio = importance_sample_ratio
        self.parts_on = parts_on
        self.parts_decoder = parts_decoder
        ew = np.ones((num_classes + 1,), dtype=np.float32)
        ew[-1] = eos_coef
        self.empty_weight = jnp.asarray(ew)
        self._jitted = jax.jit(functools.partial(
            _device_losses,
            losses=tuple(losses),
            num_classes=num_classes,
            num_points=num_points,
            oversample_ratio=oversample_ratio,
            importance_sample_ratio=importance_sample_ratio))

    # Deterministic stand-in for the Hungarian matcher (external module in the
    # original code): match query j <-> target j for each image.
    # TODO(synk): plug in the real external Hungarian matcher module.
    def matcher(self, outputs, targets):
        return [(np.arange(len(t['labels']), dtype=np.int64),
                 np.arange(len(t['labels']), dtype=np.int64)) for t in targets]

    def _indices_to_device(self, indices, targets):
        batch_idx = np.concatenate(
            [np.full_like(src, i) for i, (src, _) in enumerate(indices)]).astype(np.int32)
        src_idx = np.concatenate([src for src, _ in indices]).astype(np.int32)
        labels_cat = np.concatenate(
            [np.asarray(t['labels'])[np.asarray(tgt)]
             for t, (_, tgt) in zip(targets, indices)]).astype(np.int32)
        target_masks = jnp.concatenate(
            [jnp.asarray(t['masks'], jnp.float32)[np.asarray(tgt)]
             for t, (_, tgt) in zip(targets, indices)], axis=0)
        return (jnp.asarray(batch_idx), jnp.asarray(src_idx),
                jnp.asarray(labels_cat), target_masks)

    def forward(self, outputs, targets, key):
        outputs_no_aux = {k: v for k, v in outputs.items() if k != 'aux_outputs'}
        indices = self.matcher(outputs_no_aux, targets)
        batch_idx, src_idx, labels_cat, target_masks = \
            self._indices_to_device(indices, targets)

        # TODO(synk): all-reduce num_masks across data-parallel replicas
        # (torch.distributed equivalent); single-device here.
        num_total = sum(len(t['labels']) for t in targets)
        num_masks = jnp.asarray(max(float(num_total), 1.0), jnp.float32)

        key, sub = jax.random.split(key)
        losses = dict(self._jitted(outputs_no_aux['pred_logits'],
                                   outputs_no_aux['pred_masks'],
                                   labels_cat, batch_idx, src_idx, target_masks,
                                   num_masks, self.empty_weight, sub))

        # TODO(synk): parts_on branch requires the external parts_decoder module.

        if 'aux_outputs' in outputs:
            for li, aux in enumerate(outputs['aux_outputs']):
                aux_indices = self.matcher(aux, targets)
                b_i, s_i, l_c, t_m = self._indices_to_device(aux_indices, targets)
                key, sub = jax.random.split(key)
                l_dict = self._jitted(aux['pred_logits'], aux['pred_masks'],
                                      l_c, b_i, s_i, t_m, num_masks,
                                      self.empty_weight, sub)
                losses.update({f'{k}_{li}': v for k, v in l_dict.items()})
        return losses


# ----------------------------------------------------------------------------
# Main
# ----------------------------------------------------------------------------

if __name__ == "__main__":
    B, Q = 2, 8
    NUM_CLASSES = 7           # +1 "no object" class -> 8 logits
    H = W = 16
    NUM_POINTS = 16
    OVERSAMPLE = 3.0
    IMPORTANCE = 0.75

    key = jax.random.PRNGKey(0)
    k_logits, k_masks, k_t0, k_t1, k_lab, k_pts = jax.random.split(key, 6)

    pred_logits = jax.random.normal(k_logits, (B, Q, NUM_CLASSES + 1), dtype=jnp.float32)
    pred_masks = jax.random.normal(k_masks, (B, Q, H, W), dtype=jnp.float32)

    # Synthetic targets: image 0 has 3 objects, image 1 has 2 objects.
    n0, n1 = 3, 2
    labels_all = np.asarray(jax.random.randint(k_lab, (n0 + n1,), 0, NUM_CLASSES))
    tmask0 = (jax.random.uniform(k_t0, (n0, H, W)) > 0.5).astype(jnp.float32)
    tmask1 = (jax.random.uniform(k_t1, (n1, H, W)) > 0.5).astype(jnp.float32)

    targets = [
        {'labels': labels_all[:n0], 'masks': tmask0},
        {'labels': labels_all[n0:], 'masks': tmask1},
    ]
    outputs = {'pred_logits': pred_logits, 'pred_masks': pred_masks}

    criterion = SetCriterion(
        num_classes=NUM_CLASSES,
        weight_dict={'loss_ce': 2.0, 'loss_mask': 5.0, 'loss_dice': 5.0},
        eos_coef=0.1,
        losses=['labels', 'masks'],
        num_points=NUM_POINTS,
        oversample_ratio=OVERSAMPLE,
        importance_sample_ratio=IMPORTANCE,
        parts_on=False,
        parts_decoder=None,
    )

    losses = criterion.forward(outputs, targets, k_pts)
    losses = {k: jax.block_until_ready(v) for k, v in losses.items()}

    for k, v in losses.items():
        val = float(v)
        assert np.isfinite(val), f"non-finite loss {k}: {val}"

    print("KERNEL_OK")
</pallas_src>

<mosaic_0001>
module attributes {stable_mosaic.version = 11 : i64} {
  func.func @_point_sample_kernel(%arg0: i32, %arg1: i32, %arg2: memref<8x16x16xf32, #tpu.memory_space<vmem>>, %arg3: memref<8x128xf32, #tpu.memory_space<vmem>>, %arg4: memref<8x128xf32, #tpu.memory_space<vmem>>, %arg5: memref<8x128xf32, #tpu.memory_space<vmem>>) attributes {dimension_semantics = [#tpu.dimension_semantics<parallel>, #tpu.dimension_semantics<parallel>], iteration_bounds = array<i64: 1, 1>, scalar_prefetch = 0 : i64, scratch_operands = 0 : i64, tpu.core_type = #tpu.core_type<tc>, window_params = [{transform_indices = @transform_0, window_bounds = array<i64: 8, 16, 16>}, {transform_indices = @transform_1, window_bounds = array<i64: 8, 128>}, {transform_indices = @transform_2, window_bounds = array<i64: 8, 128>}, {transform_indices = @transform_3, window_bounds = array<i64: 8, 128>}]} {
    %0 = tpu.iota {dimensions = array<i32: 0>} : vector<16x128xi32>
    %1 = arith.sitofp %0 : vector<16x128xi32> to vector<16x128xf32>
    %2 = tpu.iota {dimensions = array<i32: 0>} : vector<16x128xi32>
    %3 = arith.sitofp %2 : vector<16x128xi32> to vector<16x128xf32>
    %c0 = arith.constant 0 : index
    %c0_0 = arith.constant 0 : index
    %4 = vector.load %arg3[%c0, %c0_0] : memref<8x128xf32, #tpu.memory_space<vmem>>, vector<1x128xf32>
    %cst = arith.constant 1.600000e+01 : f32
    %5 = vector.broadcast %cst : f32 to vector<1x128xf32>
    %6 = arith.mulf %4, %5 : vector<1x128xf32>
    %cst_1 = arith.constant 5.000000e-01 : f32
    %7 = vector.broadcast %cst_1 : f32 to vector<1x128xf32>
    %8 = arith.subf %6, %7 : vector<1x128xf32>
    %c0_2 = arith.constant 0 : index
    %c0_3 = arith.constant 0 : index
    %9 = vector.load %arg4[%c0_2, %c0_3] : memref<8x128xf32, #tpu.memory_space<vmem>>, vector<1x128xf32>
    %cst_4 = arith.constant 1.600000e+01 : f32
    %10 = vector.broadcast %cst_4 : f32 to vector<1x128xf32>
    %11 = arith.mulf %9, %10 : vector<1x128xf32>
    %cst_5 = arith.constant 5.000000e-01 : f32
    %12 = vector.broadcast %cst_5 : f32 to vector<1x128xf32>
    %13 = arith.subf %11, %12 : vector<1x128xf32>
    %14 = vector.broadcast %8 : vector<1x128xf32> to vector<16x128xf32>
    %15 = arith.subf %1, %14 : vector<16x128xf32>
    %16 = math.absf %15 : vector<16x128xf32>
    %cst_6 = arith.constant 1.000000e+00 : f32
    %17 = vector.broadcast %cst_6 : f32 to vector<16x128xf32>
    %18 = arith.subf %17, %16 : vector<16x128xf32>
    %cst_7 = arith.constant 0.000000e+00 : f32
    %19 = vector.broadcast %cst_7 : f32 to vector<16x128xf32>
    %20 = arith.maximumf %18, %19 : vector<16x128xf32>
    %21 = vector.broadcast %13 : vector<1x128xf32> to vector<16x128xf32>
    %22 = arith.subf %3, %21 : vector<16x128xf32>
    %23 = math.absf %22 : vector<16x128xf32>
    %cst_8 = arith.constant 1.000000e+00 : f32
    %24 = vector.broadcast %cst_8 : f32 to vector<16x128xf32>
    %25 = arith.subf %24, %23 : vector<16x128xf32>
    %cst_9 = arith.constant 0.000000e+00 : f32
    %26 = vector.broadcast %cst_9 : f32 to vector<16x128xf32>
    %27 = arith.maximumf %25, %26 : vector<16x128xf32>
    %c0_10 = arith.constant 0 : index
    %c0_11 = arith.constant 0 : index
    %c0_12 = arith.constant 0 : index
    %28 = vector.load %arg2[%c0_10, %c0_11, %c0_12] : memref<8x16x16xf32, #tpu.memory_space<vmem>>, vector<1x16x16xf32>
    %29 = vector.shape_cast %28 : vector<1x16x16xf32> to vector<16x16xf32>
    %cst_13 = arith.constant dense<0.000000e+00> : vector<16x128xf32>
    %30 = tpu.matmul %29, %20, %cst_13 {dimension_numbers = #tpu.dot_dimension_numbers<[1], [0], [0], [1], [0, 0, 1, 1], [], []>} : vector<16x16xf32>, vector<16x128xf32>, vector<16x128xf32> -> vector<16x128xf32>
    %31 = arith.mulf %30, %27 : vector<16x128xf32>
    %cst_14 = arith.constant dense<0.000000e+00> : vector<128xf32>
    %32 = vector.multi_reduction <add>, %31, %cst_14 [0] : vector<16x128xf32> to vector<128xf32>
    %33 = vector.shape_cast %32 : vector<128xf32> to vector<1x128xf32>
    %c1 = arith.constant 1 : index
    %c0_15 = arith.constant 0 : index
    %34 = vector.load %arg3[%c1, %c0_15] : memref<8x128xf32, #tpu.memory_space<vmem>>, vector<1x128xf32>
    %cst_16 = arith.constant 1.600000e+01 : f32
    %35 = vector.broadcast %cst_16 : f32 to vector<1x128xf32>
    %36 = arith.mulf %34, %35 : vector<1x128xf32>
    %cst_17 = arith.constant 5.000000e-01 : f32
    %37 = vector.broadcast %cst_17 : f32 to vector<1x128xf32>
    %38 = arith.subf %36, %37 : vector<1x128xf32>
    %c1_18 = arith.constant 1 : index
    %c0_19 = arith.constant 0 : index
    %39 = vector.load %arg4[%c1_18, %c0_19] : memref<8x128xf32, #tpu.memory_space<vmem>>, vector<1x128xf32>
    %cst_20 = arith.constant 1.600000e+01 : f32
    %40 = vector.broadcast %cst_20 : f32 to vector<1x128xf32>
    %41 = arith.mulf %39, %40 : vector<1x128xf32>
    %cst_21 = arith.constant 5.000000e-01 : f32
    %42 = vector.broadcast %cst_21 : f32 to vector<1x128xf32>
    %43 = arith.subf %41, %42 : vector<1x128xf32>
    %44 = vector.broadcast %38 : vector<1x128xf32> to vector<16x128xf32>
    %45 = arith.subf %1, %44 : vector<16x128xf32>
    %46 = math.absf %45 : vector<16x128xf32>
    %cst_22 = arith.constant 1.000000e+00 : f32
    %47 = vector.broadcast %cst_22 : f32 to vector<16x128xf32>
    %48 = arith.subf %47, %46 : vector<16x128xf32>
    %cst_23 = arith.constant 0.000000e+00 : f32
    %49 = vector.broadcast %cst_23 : f32 to vector<16x128xf32>
    %50 = arith.maximumf %48, %49 : vector<16x128xf32>
    %51 = vector.broadcast %43 : vector<1x128xf32> to vector<16x128xf32>
    %52 = arith.subf %3, %51 : vector<16x128xf32>
    %53 = math.absf %52 : vector<16x128xf32>
    %cst_24 = arith.constant 1.000000e+00 : f32
    %54 = vector.broadcast %cst_24 : f32 to vector<16x128xf32>
    %55 = arith.subf %54, %53 : vector<16x128xf32>
    %cst_25 = arith.constant 0.000000e+00 : f32
    %56 = vector.broadcast %cst_25 : f32 to vector<16x128xf32>
    %57 = arith.maximumf %55, %56 : vector<16x128xf32>
    %c1_26 = arith.constant 1 : index
    %c0_27 = arith.constant 0 : index
    %c0_28 = arith.constant 0 : index
    %58 = vector.load %arg2[%c1_26, %c0_27, %c0_28] : memref<8x16x16xf32, #tpu.memory_space<vmem>>, vector<1x16x16xf32>
    %59 = vector.shape_cast %58 : vector<1x16x16xf32> to vector<16x16xf32>
    %cst_29 = arith.constant dense<0.000000e+00> : vector<16x128xf32>
    %60 = tpu.matmul %59, %50, %cst_29 {dimension_numbers = #tpu.dot_dimension_numbers<[1], [0], [0], [1], [0, 0, 1, 1], [], []>} : vector<16x16xf32>, vector<16x128xf32>, vector<16x128xf32> -> vector<16x128xf32>
    %61 = arith.mulf %60, %57 : vector<16x128xf32>
    %cst_30 = arith.constant dense<0.000000e+00> : vector<128xf32>
    %62 = vector.multi_reduction <add>, %61, %cst_30 [0] : vector<16x128xf32> to vector<128xf32>
    %63 = vector.shape_cast %62 : vector<128xf32> to vector<1x128xf32>
    %c2 = arith.constant 2 : index
    %c0_31 = arith.constant 0 : index
    %64 = vector.load %arg3[%c2, %c0_31] : memref<8x128xf32, #tpu.memory_space<vmem>>, vector<1x128xf32>
    %cst_32 = arith.constant 1.600000e+01 : f32
    %65 = vector.broadcast %cst_32 : f32 to vector<1x128xf32>
    %66 = arith.mulf %64, %65 : vector<1x128xf32>
    %cst_33 = arith.constant 5.000000e-01 : f32
    %67 = vector.broadcast %cst_33 : f32 to vector<1x128xf32>
    %68 = arith.subf %66, %67 : vector<1x128xf32>
    %c2_34 = arith.constant 2 : index
    %c0_35 = arith.constant 0 : index
    %69 = vector.load %arg4[%c2_34, %c0_35] : memref<8x128xf32, #tpu.memory_space<vmem>>, vector<1x128xf32>
    %cst_36 = arith.constant 1.600000e+01 : f32
    %70 = vector.broadcast %cst_36 : f32 to vector<1x128xf32>
    %71 = arith.mulf %69, %70 : vector<1x128xf32>
    %cst_37 = arith.constant 5.000000e-01 : f32
    %72 = vector.broadcast %cst_37 : f32 to vector<1x128xf32>
    %73 = arith.subf %71, %72 : vector<1x128xf32>
    %74 = vector.broadcast %68 : vector<1x128xf32> to vector<16x128xf32>
    %75 = arith.subf %1, %74 : vector<16x128xf32>
    %76 = math.absf %75 : vector<16x128xf32>
    %cst_38 = arith.constant 1.000000e+00 : f32
    %77 = vector.broadcast %cst_38 : f32 to vector<16x128xf32>
    %78 = arith.subf %77, %76 : vector<16x128xf32>
    %cst_39 = arith.constant 0.000000e+00 : f32
    %79 = vector.broadcast %cst_39 : f32 to vector<16x128xf32>
    %80 = arith.maximumf %78, %79 : vector<16x128xf32>
    %81 = vector.broadcast %73 : vector<1x128xf32> to vector<16x128xf32>
    %82 = arith.subf %3, %81 : vector<16x128xf32>
    %83 = math.absf %82 : vector<16x128xf32>
    %cst_40 = arith.constant 1.000000e+00 : f32
    %84 = vector.broadcast %cst_40 : f32 to vector<16x128xf32>
    %85 = arith.subf %84, %83 : vector<16x128xf32>
    %cst_41 = arith.constant 0.000000e+00 : f32
    %86 = vector.broadcast %cst_41 : f32 to vector<16x128xf32>
    %87 = arith.maximumf %85, %86 : vector<16x128xf32>
    %c2_42 = arith.constant 2 : index
    %c0_43 = arith.constant 0 : index
    %c0_44 = arith.constant 0 : index
    %88 = vector.load %arg2[%c2_42, %c0_43, %c0_44] : memref<8x16x16xf32, #tpu.memory_space<vmem>>, vector<1x16x16xf32>
    %89 = vector.shape_cast %88 : vector<1x16x16xf32> to vector<16x16xf32>
    %cst_45 = arith.constant dense<0.000000e+00> : vector<16x128xf32>
    %90 = tpu.matmul %89, %80, %cst_45 {dimension_numbers = #tpu.dot_dimension_numbers<[1], [0], [0], [1], [0, 0, 1, 1], [], []>} : vector<16x16xf32>, vector<16x128xf32>, vector<16x128xf32> -> vector<16x128xf32>
    %91 = arith.mulf %90, %87 : vector<16x128xf32>
    %cst_46 = arith.constant dense<0.000000e+00> : vector<128xf32>
    %92 = vector.multi_reduction <add>, %91, %cst_46 [0] : vector<16x128xf32> to vector<128xf32>
    %93 = vector.shape_cast %92 : vector<128xf32> to vector<1x128xf32>
    %c3 = arith.constant 3 : index
    %c0_47 = arith.constant 0 : index
    %94 = vector.load %arg3[%c3, %c0_47] : memref<8x128xf32, #tpu.memory_space<vmem>>, vector<1x128xf32>
    %cst_48 = arith.constant 1.600000e+01 : f32
    %95 = vector.broadcast %cst_48 : f32 to vector<1x128xf32>
    %96 = arith.mulf %94, %95 : vector<1x128xf32>
    %cst_49 = arith.constant 5.000000e-01 : f32
    %97 = vector.broadcast %cst_49 : f32 to vector<1x128xf32>
    %98 = arith.subf %96, %97 : vector<1x128xf32>
    %c3_50 = arith.constant 3 : index
    %c0_51 = arith.constant 0 : index
    %99 = vector.load %arg4[%c3_50, %c0_51] : memref<8x128xf32, #tpu.memory_space<vmem>>, vector<1x128xf32>
    %cst_52 = arith.constant 1.600000e+01 : f32
    %100 = vector.broadcast %cst_52 : f32 to vector<1x128xf32>
    %101 = arith.mulf %99, %100 : vector<1x128xf32>
    %cst_53 = arith.constant 5.000000e-01 : f32
    %102 = vector.broadcast %cst_53 : f32 to vector<1x128xf32>
    %103 = arith.subf %101, %102 : vector<1x128xf32>
    %104 = vector.broadcast %98 : vector<1x128xf32> to vector<16x128xf32>
    %105 = arith.subf %1, %104 : vector<16x128xf32>
    %106 = math.absf %105 : vector<16x128xf32>
    %cst_54 = arith.constant 1.000000e+00 : f32
    %107 = vector.broadcast %cst_54 : f32 to vector<16x128xf32>
    %108 = arith.subf %107, %106 : vector<16x128xf32>
    %cst_55 = arith.constant 0.000000e+00 : f32
    %109 = vector.broadcast %cst_55 : f32 to vector<16x128xf32>
    %110 = arith.maximumf %108, %109 : vector<16x128xf32>
    %111 = vector.broadcast %103 : vector<1x128xf32> to vector<16x128xf32>
    %112 = arith.subf %3, %111 : vector<16x128xf32>
    %113 = math.absf %112 : vector<16x128xf32>
    %cst_56 = arith.constant 1.000000e+00 : f32
    %114 = vector.broadcast %cst_56 : f32 to vector<16x128xf32>
    %115 = arith.subf %114, %113 : vector<16x128xf32>
    %cst_57 = arith.constant 0.000000e+00 : f32
    %116 = vector.broadcast %cst_57 : f32 to vector<16x128xf32>
    %117 = arith.maximumf %115, %116 : vector<16x128xf32>
    %c3_58 = arith.constant 3 : index
    %c0_59 = arith.constant 0 : index
    %c0_60 = arith.constant 0 : index
    %118 = vector.load %arg2[%c3_58, %c0_59, %c0_60] : memref<8x16x16xf32, #tpu.memory_space<vmem>>, vector<1x16x16xf32>
    %119 = vector.shape_cast %118 : vector<1x16x16xf32> to vector<16x16xf32>
    %cst_61 = arith.constant dense<0.000000e+00> : vector<16x128xf32>
    %120 = tpu.matmul %119, %110, %cst_61 {dimension_numbers = #tpu.dot_dimension_numbers<[1], [0], [0], [1], [0, 0, 1, 1], [], []>} : vector<16x16xf32>, vector<16x128xf32>, vector<16x128xf32> -> vector<16x128xf32>
    %121 = arith.mulf %120, %117 : vector<16x128xf32>
    %cst_62 = arith.constant dense<0.000000e+00> : vector<128xf32>
    %122 = vector.multi_reduction <add>, %121, %cst_62 [0] : vector<16x128xf32> to vector<128xf32>
    %123 = vector.shape_cast %122 : vector<128xf32> to vector<1x128xf32>
    %c4 = arith.constant 4 : index
    %c0_63 = arith.constant 0 : index
    %124 = vector.load %arg3[%c4, %c0_63] : memref<8x128xf32, #tpu.memory_space<vmem>>, vector<1x128xf32>
    %cst_64 = arith.constant 1.600000e+01 : f32
    %125 = vector.broadcast %cst_64 : f32 to vector<1x128xf32>
    %126 = arith.mulf %124, %125 : vector<1x128xf32>
    %cst_65 = arith.constant 5.000000e-01 : f32
    %127 = vector.broadcast %cst_65 : f32 to vector<1x128xf32>
    %128 = arith.subf %126, %127 : vector<1x128xf32>
    %c4_66 = arith.constant 4 : index
    %c0_67 = arith.constant 0 : index
    %129 = vector.load %arg4[%c4_66, %c0_67] : memref<8x128xf32, #tpu.memory_space<vmem>>, vector<1x128xf32>
    %cst_68 = arith.constant 1.600000e+01 : f32
    %130 = vector.broadcast %cst_68 : f32 to vector<1x128xf32>
    %131 = arith.mulf %129, %130 : vector<1x128xf32>
    %cst_69 = arith.constant 5.000000e-01 : f32
    %132 = vector.broadcast %cst_69 : f32 to vector<1x128xf32>
    %133 = arith.subf %131, %132 : vector<1x128xf32>
    %134 = vector.broadcast %128 : vector<1x128xf32> to vector<16x128xf32>
    %135 = arith.subf %1, %134 : vector<16x128xf32>
    %136 = math.absf %135 : vector<16x128xf32>
    %cst_70 = arith.constant 1.000000e+00 : f32
    %137 = vector.broadcast %cst_70 : f32 to vector<16x128xf32>
    %138 = arith.subf %137, %136 : vector<16x128xf32>
    %cst_71 = arith.constant 0.000000e+00 : f32
    %139 = vector.broadcast %cst_71 : f32 to vector<16x128xf32>
    %140 = arith.maximumf %138, %139 : vector<16x128xf32>
    %141 = vector.broadcast %133 : vector<1x128xf32> to vector<16x128xf32>
    %142 = arith.subf %3, %141 : vector<16x128xf32>
    %143 = math.absf %142 : vector<16x128xf32>
    %cst_72 = arith.constant 1.000000e+00 : f32
    %144 = vector.broadcast %cst_72 : f32 to vector<16x128xf32>
    %145 = arith.subf %144, %143 : vector<16x128xf32>
    %cst_73 = arith.constant 0.000000e+00 : f32
    %146 = vector.broadcast %cst_73 : f32 to vector<16x128xf32>
    %147 = arith.maximumf %145, %146 : vector<16x128xf32>
    %c4_74 = arith.constant 4 : index
    %c0_75 = arith.constant 0 : index
    %c0_76 = arith.constant 0 : index
    %148 = vector.load %arg2[%c4_74, %c0_75, %c0_76] : memref<8x16x16xf32, #tpu.memory_space<vmem>>, vector<1x16x16xf32>
    %149 = vector.shape_cast %148 : vector<1x16x16xf32> to vector<16x16xf32>
    %cst_77 = arith.constant dense<0.000000e+00> : vector<16x128xf32>
    %150 = tpu.matmul %149, %140, %cst_77 {dimension_numbers = #tpu.dot_dimension_numbers<[1], [0], [0], [1], [0, 0, 1, 1], [], []>} : vector<16x16xf32>, vector<16x128xf32>, vector<16x128xf32> -> vector<16x128xf32>
    %151 = arith.mulf %150, %147 : vector<16x128xf32>
    %cst_78 = arith.constant dense<0.000000e+00> : vector<128xf32>
    %152 = vector.multi_reduction <add>, %151, %cst_78 [0] : vector<16x128xf32> to vector<128xf32>
    %153 = vector.shape_cast %152 : vector<128xf32> to vector<1x128xf32>
    %c5 = arith.constant 5 : index
    %c0_79 = arith.constant 0 : index
    %154 = vector.load %arg3[%c5, %c0_79] : memref<8x128xf32, #tpu.memory_space<vmem>>, vector<1x128xf32>
    %cst_80 = arith.constant 1.600000e+01 : f32
    %155 = vector.broadcast %cst_80 : f32 to vector<1x128xf32>
    %156 = arith.mulf %154, %155 : vector<1x128xf32>
    %cst_81 = arith.constant 5.000000e-01 : f32
    %157 = vector.broadcast %cst_81 : f32 to vector<1x128xf32>
    %158 = arith.subf %156, %157 : vector<1x128xf32>
    %c5_82 = arith.constant 5 : index
    %c0_83 = arith.constant 0 : index
    %159 = vector.load %arg4[%c5_82, %c0_83] : memref<8x128xf32, #tpu.memory_space<vmem>>, vector<1x128xf32>
    %cst_84 = arith.constant 1.600000e+01 : f32
    %160 = vector.broadcast %cst_84 : f32 to vector<1x128xf32>
    %161 = arith.mulf %159, %160 : vector<1x128xf32>
    %cst_85 = arith.constant 5.000000e-01 : f32
    %162 = vector.broadcast %cst_85 : f32 to vector<1x128xf32>
    %163 = arith.subf %161, %162 : vector<1x128xf32>
    %164 = vector.broadcast %158 : vector<1x128xf32> to vector<16x128xf32>
    %165 = arith.subf %1, %164 : vector<16x128xf32>
    %166 = math.absf %165 : vector<16x128xf32>
    %cst_86 = arith.constant 1.000000e+00 : f32
    %167 = vector.broadcast %cst_86 : f32 to vector<16x128xf32>
    %168 = arith.subf %167, %166 : vector<16x128xf32>
    %cst_87 = arith.constant 0.000000e+00 : f32
    %169 = vector.broadcast %cst_87 : f32 to vector<16x128xf32>
    %170 = arith.maximumf %168, %169 : vector<16x128xf32>
    %171 = vector.broadcast %163 : vector<1x128xf32> to vector<16x128xf32>
    %172 = arith.subf %3, %171 : vector<16x128xf32>
    %173 = math.absf %172 : vector<16x128xf32>
    %cst_88 = arith.constant 1.000000e+00 : f32
    %174 = vector.broadcast %cst_88 : f32 to vector<16x128xf32>
    %175 = arith.subf %174, %173 : vector<16x128xf32>
    %cst_89 = arith.constant 0.000000e+00 : f32
    %176 = vector.broadcast %cst_89 : f32 to vector<16x128xf32>
    %177 = arith.maximumf %175, %176 : vector<16x128xf32>
    %c5_90 = arith.constant 5 : index
    %c0_91 = arith.constant 0 : index
    %c0_92 = arith.constant 0 : index
    %178 = vector.load %arg2[%c5_90, %c0_91, %c0_92] : memref<8x16x16xf32, #tpu.memory_space<vmem>>, vector<1x16x16xf32>
    %179 = vector.shape_cast %178 : vector<1x16x16xf32> to vector<16x16xf32>
    %cst_93 = arith.constant dense<0.000000e+00> : vector<16x128xf32>
    %180 = tpu.matmul %179, %170, %cst_93 {dimension_numbers = #tpu.dot_dimension_numbers<[1], [0], [0], [1], [0, 0, 1, 1], [], []>} : vector<16x16xf32>, vector<16x128xf32>, vector<16x128xf32> -> vector<16x128xf32>
    %181 = arith.mulf %180, %177 : vector<16x128xf32>
    %cst_94 = arith.constant dense<0.000000e+00> : vector<128xf32>
    %182 = vector.multi_reduction <add>, %181, %cst_94 [0] : vector<16x128xf32> to vector<128xf32>
    %183 = vector.shape_cast %182 : vector<128xf32> to vector<1x128xf32>
    %c6 = arith.constant 6 : index
    %c0_95 = arith.constant 0 : index
    %184 = vector.load %arg3[%c6, %c0_95] : memref<8x128xf32, #tpu.memory_space<vmem>>, vector<1x128xf32>
    %cst_96 = arith.constant 1.600000e+01 : f32
    %185 = vector.broadcast %cst_96 : f32 to vector<1x128xf32>
    %186 = arith.mulf %184, %185 : vector<1x128xf32>
    %cst_97 = arith.constant 5.000000e-01 : f32
    %187 = vector.broadcast %cst_97 : f32 to vector<1x128xf32>
    %188 = arith.subf %186, %187 : vector<1x128xf32>
    %c6_98 = arith.constant 6 : index
    %c0_99 = arith.constant 0 : index
    %189 = vector.load %arg4[%c6_98, %c0_99] : memref<8x128xf32, #tpu.memory_space<vmem>>, vector<1x128xf32>
    %cst_100 = arith.constant 1.600000e+01 : f32
    %190 = vector.broadcast %cst_100 : f32 to vector<1x128xf32>
    %191 = arith.mulf %189, %190 : vector<1x128xf32>
    %cst_101 = arith.constant 5.000000e-01 : f32
    %192 = vector.broadcast %cst_101 : f32 to vector<1x128xf32>
    %193 = arith.subf %191, %192 : vector<1x128xf32>
    %194 = vector.broadcast %188 : vector<1x128xf32> to vector<16x128xf32>
    %195 = arith.subf %1, %194 : vector<16x128xf32>
    %196 = math.absf %195 : vector<16x128xf32>
    %cst_102 = arith.constant 1.000000e+00 : f32
    %197 = vector.broadcast %cst_102 : f32 to vector<16x128xf32>
    %198 = arith.subf %197, %196 : vector<16x128xf32>
    %cst_103 = arith.constant 0.000000e+00 : f32
    %199 = vector.broadcast %cst_103 : f32 to vector<16x128xf32>
    %200 = arith.maximumf %198, %199 : vector<16x128xf32>
    %201 = vector.broadcast %193 : vector<1x128xf32> to vector<16x128xf32>
    %202 = arith.subf %3, %201 : vector<16x128xf32>
    %203 = math.absf %202 : vector<16x128xf32>
    %cst_104 = arith.constant 1.000000e+00 : f32
    %204 = vector.broadcast %cst_104 : f32 to vector<16x128xf32>
    %205 = arith.subf %204, %203 : vector<16x128xf32>
    %cst_105 = arith.constant 0.000000e+00 : f32
    %206 = vector.broadcast %cst_105 : f32 to vector<16x128xf32>
    %207 = arith.maximumf %205, %206 : vector<16x128xf32>
    %c6_106 = arith.constant 6 : index
    %c0_107 = arith.constant 0 : index
    %c0_108 = arith.constant 0 : index
    %208 = vector.load %arg2[%c6_106, %c0_107, %c0_108] : memref<8x16x16xf32, #tpu.memory_space<vmem>>, vector<1x16x16xf32>
    %209 = vector.shape_cast %208 : vector<1x16x16xf32> to vector<16x16xf32>
    %cst_109 = arith.constant dense<0.000000e+00> : vector<16x128xf32>
    %210 = tpu.matmul %209, %200, %cst_109 {dimension_numbers = #tpu.dot_dimension_numbers<[1], [0], [0], [1], [0, 0, 1, 1], [], []>} : vector<16x16xf32>, vector<16x128xf32>, vector<16x128xf32> -> vector<16x128xf32>
    %211 = arith.mulf %210, %207 : vector<16x128xf32>
    %cst_110 = arith.constant dense<0.000000e+00> : vector<128xf32>
    %212 = vector.multi_reduction <add>, %211, %cst_110 [0] : vector<16x128xf32> to vector<128xf32>
    %213 = vector.shape_cast %212 : vector<128xf32> to vector<1x128xf32>
    %c7 = arith.constant 7 : index
    %c0_111 = arith.constant 0 : index
    %214 = vector.load %arg3[%c7, %c0_111] : memref<8x128xf32, #tpu.memory_space<vmem>>, vector<1x128xf32>
    %cst_112 = arith.constant 1.600000e+01 : f32
    %215 = vector.broadcast %cst_112 : f32 to vector<1x128xf32>
    %216 = arith.mulf %214, %215 : vector<1x128xf32>
    %cst_113 = arith.constant 5.000000e-01 : f32
    %217 = vector.broadcast %cst_113 : f32 to vector<1x128xf32>
    %218 = arith.subf %216, %217 : vector<1x128xf32>
    %c7_114 = arith.constant 7 : index
    %c0_115 = arith.constant 0 : index
    %219 = vector.load %arg4[%c7_114, %c0_115] : memref<8x128xf32, #tpu.memory_space<vmem>>, vector<1x128xf32>
    %cst_116 = arith.constant 1.600000e+01 : f32
    %220 = vector.broadcast %cst_116 : f32 to vector<1x128xf32>
    %221 = arith.mulf %219, %220 : vector<1x128xf32>
    %cst_117 = arith.constant 5.000000e-01 : f32
    %222 = vector.broadcast %cst_117 : f32 to vector<1x128xf32>
    %223 = arith.subf %221, %222 : vector<1x128xf32>
    %224 = vector.broadcast %218 : vector<1x128xf32> to vector<16x128xf32>
    %225 = arith.subf %1, %224 : vector<16x128xf32>
    %226 = math.absf %225 : vector<16x128xf32>
    %cst_118 = arith.constant 1.000000e+00 : f32
    %227 = vector.broadcast %cst_118 : f32 to vector<16x128xf32>
    %228 = arith.subf %227, %226 : vector<16x128xf32>
    %cst_119 = arith.constant 0.000000e+00 : f32
    %229 = vector.broadcast %cst_119 : f32 to vector<16x128xf32>
    %230 = arith.maximumf %228, %229 : vector<16x128xf32>
    %231 = vector.broadcast %223 : vector<1x128xf32> to vector<16x128xf32>
    %232 = arith.subf %3, %231 : vector<16x128xf32>
    %233 = math.absf %232 : vector<16x128xf32>
    %cst_120 = arith.constant 1.000000e+00 : f32
    %234 = vector.broadcast %cst_120 : f32 to vector<16x128xf32>
    %235 = arith.subf %234, %233 : vector<16x128xf32>
    %cst_121 = arith.constant 0.000000e+00 : f32
    %236 = vector.broadcast %cst_121 : f32 to vector<16x128xf32>
    %237 = arith.maximumf %235, %236 : vector<16x128xf32>
    %c7_122 = arith.constant 7 : index
    %c0_123 = arith.constant 0 : index
    %c0_124 = arith.constant 0 : index
    %238 = vector.load %arg2[%c7_122, %c0_123, %c0_124] : memref<8x16x16xf32, #tpu.memory_space<vmem>>, vector<1x16x16xf32>
    %239 = vector.shape_cast %238 : vector<1x16x16xf32> to vector<16x16xf32>
    %cst_125 = arith.constant dense<0.000000e+00> : vector<16x128xf32>
    %240 = tpu.matmul %239, %230, %cst_125 {dimension_numbers = #tpu.dot_dimension_numbers<[1], [0], [0], [1], [0, 0, 1, 1], [], []>} : vector<16x16xf32>, vector<16x128xf32>, vector<16x128xf32> -> vector<16x128xf32>
    %241 = arith.mulf %240, %237 : vector<16x128xf32>
    %cst_126 = arith.constant dense<0.000000e+00> : vector<128xf32>
    %242 = vector.multi_reduction <add>, %241, %cst_126 [0] : vector<16x128xf32> to vector<128xf32>
    %243 = vector.shape_cast %242 : vector<128xf32> to vector<1x128xf32>
    %244 = tpu.concatenate %33, %63, %93, %123, %153, %183, %213, %243 in 0 : vector<1x128xf32>, vector<1x128xf32>, vector<1x128xf32>, vector<1x128xf32>, vector<1x128xf32>, vector<1x128xf32>, vector<1x128xf32>, vector<1x128xf32> -> vector<8x128xf32>
    %c0_127 = arith.constant 0 : index
    %c0_128 = arith.constant 0 : index
    %245 = vector.load %arg5[%c0_127, %c0_128] : memref<8x128xf32, #tpu.memory_space<vmem>>, vector<8x128xf32>
    tpu.vector_store %arg5[%c0_127, %c0_128], %244 {strides = array<i32>} : memref<8x128xf32, #tpu.memory_space<vmem>>, vector<8x128xf32>,
    return
  }
  func.func @transform_0(%arg0: i32, %arg1: i32) -> (i32, i32, i32) {
    %c0_i32 = arith.constant 0 : i32
    %c0_i32_0 = arith.constant 0 : i32
    %c0_i32_1 = arith.constant 0 : i32
    return %arg0, %c0_i32, %c0_i32_0 : i32, i32, i32
  }
  func.func @transform_1(%arg0: i32, %arg1: i32) -> (i32, i32) {
    %c0_i32 = arith.constant 0 : i32
    return %arg0, %arg1 : i32, i32
  }
  func.func @transform_2(%arg0: i32, %arg1: i32) -> (i32, i32) {
    %c0_i32 = arith.constant 0 : i32
    return %arg0, %arg1 : i32, i32
  }
  func.func @transform_3(%arg0: i32, %arg1: i32) -> (i32, i32) {
    %c0_i32 = arith.constant 0 : i32
    return %arg0, %arg1 : i32, i32
  }
}

module attributes {stable_mosaic.version = 11 : i64} {
  func.func @_fused_mask_loss_kernel(%arg0: i32, %arg1: i32, %arg2: memref<8x32x16xf32, #tpu.memory_space<vmem>>, %arg3: memref<8x128xf32, #tpu.memory_space<vmem>>, %arg4: memref<8x128xf32, #tpu.memory_space<vmem>>, %arg5: memref<8x1xf32, #tpu.memory_space<vmem>>, %arg6: memref<1x128xf32, #tpu.memory_space<vmem>>, %arg7: memref<1x1xf32, #tpu.memory_space<smem>>, %arg8: memref<1x1xf32, #tpu.memory_space<smem>>, %arg9: memref<1x1xf32, #tpu.memory_space<smem>>, %arg10: memref<8x1xf32, #tpu.memory_space<vmem>>, %arg11: memref<8x1xf32, #tpu.memory_space<vmem>>, %arg12: memref<8x1xf32, #tpu.memory_space<vmem>>, %arg13: memref<8x1xf32, #tpu.memory_space<vmem>>, %arg14: memref<1x1xf32, #tpu.memory_space<vmem>>, %arg15: memref<1x1xf32, #tpu.memory_space<vmem>>) attributes {dimension_semantics = [#tpu.dimension_semantics<arbitrary>, #tpu.dimension_semantics<arbitrary>], iteration_bounds = array<i64: 1, 1>, scalar_prefetch = 0 : i64, scratch_operands = 6 : i64, tpu.core_type = #tpu.core_type<tc>, window_params = [{transform_indices = @transform_0, window_bounds = array<i64: 8, 32, 16>}, {transform_indices = @transform_1, window_bounds = array<i64: 8, 128>}, {transform_indices = @transform_2, window_bounds = array<i64: 8, 128>}, {transform_indices = @transform_3, window_bounds = array<i64: 8, 1>}, {transform_indices = @transform_4, window_bounds = array<i64: 1, 128>}, {transform_indices = @transform_5, window_bounds = array<i64: 1, 1>}, {transform_indices = @transform_6, window_bounds = array<i64: 1, 1>}, {transform_indices = @transform_7, window_bounds = array<i64: 1, 1>}]} {
    %c0_i32 = arith.constant 0 : i32
    %0 = arith.cmpi eq, %arg0, %c0_i32 : i32
    %c0_i32_0 = arith.constant 0 : i32
    %1 = arith.cmpi eq, %arg1, %c0_i32_0 : i32
    %2 = arith.andi %0, %1 : i1
    %3 = arith.extui %2 : i1 to i32
    %c0_i32_1 = arith.constant 0 : i32
    %4 = arith.cmpi ne, %3, %c0_i32_1 : i32
    scf.if %4 {
      %cst_234 = arith.constant 0.000000e+00 : f32
      %573 = vector.broadcast %cst_234 : f32 to vector<1x1xf32>
      %c0_235 = arith.constant 0 : index
      %c0_236 = arith.constant 0 : index
      %574 = vector.load %arg14[%c0_235, %c0_236] : memref<1x1xf32, #tpu.memory_space<vmem>>, vector<1x1xf32>
      tpu.vector_store %arg14[%c0_235, %c0_236], %573 {strides = array<i32>} : memref<1x1xf32, #tpu.memory_space<vmem>>, vector<1x1xf32>,
      %cst_237 = arith.constant 0.000000e+00 : f32
      %575 = vector.broadcast %cst_237 : f32 to vector<1x1xf32>
      %c0_238 = arith.constant 0 : index
      %c0_239 = arith.constant 0 : index
      %576 = vector.load %arg15[%c0_238, %c0_239] : memref<1x1xf32, #tpu.memory_space<vmem>>, vector<1x1xf32>
      tpu.vector_store %arg15[%c0_238, %c0_239], %575 {strides = array<i32>} : memref<1x1xf32, #tpu.memory_space<vmem>>, vector<1x1xf32>,
    } else {
    }
    %c0_i32_2 = arith.constant 0 : i32
    %5 = arith.cmpi eq, %arg1, %c0_i32_2 : i32
    %6 = arith.extui %5 : i1 to i32
    %c0_i32_3 = arith.constant 0 : i32
    %7 = arith.cmpi ne, %6, %c0_i32_3 : i32
    scf.if %7 {
      %cst_234 = arith.constant 0.000000e+00 : f32
      %573 = vector.broadcast %cst_234 : f32 to vector<8x1xf32>
      %c0_235 = arith.constant 0 : index
      %c0_236 = arith.constant 0 : index
      %574 = vector.load %arg10[%c0_235, %c0_236] : memref<8x1xf32, #tpu.memory_space<vmem>>, vector<8x1xf32>
      tpu.vector_store %arg10[%c0_235, %c0_236], %573 {strides = array<i32>} : memref<8x1xf32, #tpu.memory_space<vmem>>, vector<8x1xf32>,
      %cst_237 = arith.constant 0.000000e+00 : f32
      %575 = vector.broadcast %cst_237 : f32 to vector<8x1xf32>
      %c0_238 = arith.constant 0 : index
      %c0_239 = arith.constant 0 : index
      %576 = vector.load %arg11[%c0_238, %c0_239] : memref<8x1xf32, #tpu.memory_space<vmem>>, vector<8x1xf32>
      tpu.vector_store %arg11[%c0_238, %c0_239], %575 {strides = array<i32>} : memref<8x1xf32, #tpu.memory_space<vmem>>, vector<8x1xf32>,
      %cst_240 = arith.constant 0.000000e+00 : f32
      %577 = vector.broadcast %cst_240 : f32 to vector<8x1xf32>
      %c0_241 = arith.constant 0 : index
      %c0_242 = arith.constant 0 : index
      %578 = vector.load %arg12[%c0_241, %c0_242] : memref<8x1xf32, #tpu.memory_space<vmem>>, vector<8x1xf32>
      tpu.vector_store %arg12[%c0_241, %c0_242], %577 {strides = array<i32>} : memref<8x1xf32, #tpu.memory_space<vmem>>, vector<8x1xf32>,
      %cst_243 = arith.constant 0.000000e+00 : f32
      %579 = vector.broadcast %cst_243 : f32 to vector<8x1xf32>
      %c0_244 = arith.constant 0 : index
      %c0_245 = arith.constant 0 : index
      %580 = vector.load %arg13[%c0_244, %c0_245] : memref<8x1xf32, #tpu.memory_space<vmem>>, vector<8x1xf32>
      tpu.vector_store %arg13[%c0_244, %c0_245], %579 {strides = array<i32>} : memref<8x1xf32, #tpu.memory_space<vmem>>, vector<8x1xf32>,
    } else {
    }
    %c0 = arith.constant 0 : index
    %c0_4 = arith.constant 0 : index
    %8 = vector.load %arg6[%c0, %c0_4] : memref<1x128xf32, #tpu.memory_space<vmem>>, vector<1x128xf32>
    %9 = tpu.iota {dimensions = array<i32: 0>} : vector<16x128xi32>
    %10 = arith.sitofp %9 : vector<16x128xi32> to vector<16x128xf32>
    %11 = tpu.iota {dimensions = array<i32: 0>} : vector<16x128xi32>
    %12 = arith.sitofp %11 : vector<16x128xi32> to vector<16x128xf32>
    %c0_5 = arith.constant 0 : index
    %c0_6 = arith.constant 0 : index
    %13 = vector.load %arg3[%c0_5, %c0_6] : memref<8x128xf32, #tpu.memory_space<vmem>>, vector<1x128xf32>
    %cst = arith.constant 1.600000e+01 : f32
    %14 = vector.broadcast %cst : f32 to vector<1x128xf32>
    %15 = arith.mulf %13, %14 : vector<1x128xf32>
    %cst_7 = arith.constant 5.000000e-01 : f32
    %16 = vector.broadcast %cst_7 : f32 to vector<1x128xf32>
    %17 = arith.subf %15, %16 : vector<1x128xf32>
    %c0_8 = arith.constant 0 : index
    %c0_9 = arith.constant 0 : index
    %18 = vector.load %arg4[%c0_8, %c0_9] : memref<8x128xf32, #tpu.memory_space<vmem>>, vector<1x128xf32>
    %cst_10 = arith.constant 1.600000e+01 : f32
    %19 = vector.broadcast %cst_10 : f32 to vector<1x128xf32>
    %20 = arith.mulf %18, %19 : vector<1x128xf32>
    %cst_11 = arith.constant 5.000000e-01 : f32
    %21 = vector.broadcast %cst_11 : f32 to vector<1x128xf32>
    %22 = arith.subf %20, %21 : vector<1x128xf32>
    %23 = vector.broadcast %17 : vector<1x128xf32> to vector<16x128xf32>
    %24 = arith.subf %10, %23 : vector<16x128xf32>
    %25 = math.absf %24 : vector<16x128xf32>
    %cst_12 = arith.constant 1.000000e+00 : f32
    %26 = vector.broadcast %cst_12 : f32 to vector<16x128xf32>
    %27 = arith.subf %26, %25 : vector<16x128xf32>
    %cst_13 = arith.constant 0.000000e+00 : f32
    %28 = vector.broadcast %cst_13 : f32 to vector<16x128xf32>
    %29 = arith.maximumf %27, %28 : vector<16x128xf32>
    %30 = vector.broadcast %22 : vector<1x128xf32> to vector<16x128xf32>
    %31 = arith.subf %12, %30 : vector<16x128xf32>
    %32 = math.absf %31 : vector<16x128xf32>
    %cst_14 = arith.constant 1.000000e+00 : f32
    %33 = vector.broadcast %cst_14 : f32 to vector<16x128xf32>
    %34 = arith.subf %33, %32 : vector<16x128xf32>
    %cst_15 = arith.constant 0.000000e+00 : f32
    %35 = vector.broadcast %cst_15 : f32 to vector<16x128xf32>
    %36 = arith.maximumf %34, %35 : vector<16x128xf32>
    %c0_16 = arith.constant 0 : index
    %c0_17 = arith.constant 0 : index
    %c0_18 = arith.constant 0 : index
    %37 = vector.load %arg2[%c0_16, %c0_17, %c0_18] : memref<8x32x16xf32, #tpu.memory_space<vmem>>, vector<1x32x16xf32>
    %38 = vector.shape_cast %37 : vector<1x32x16xf32> to vector<32x16xf32>
    %cst_19 = arith.constant dense<0.000000e+00> : vector<32x128xf32>
    %39 = tpu.matmul %38, %29, %cst_19 {dimension_numbers = #tpu.dot_dimension_numbers<[1], [0], [0], [1], [0, 0, 1, 1], [], []>} : vector<32x16xf32>, vector<16x128xf32>, vector<32x128xf32> -> vector<32x128xf32>
    %40 = vector.extract_strided_slice %39 {offsets = [0, 0], sizes = [16, 128], strides = [1, 1]} : vector<32x128xf32> to vector<16x128xf32>
    %41 = arith.mulf %40, %36 : vector<16x128xf32>
    %cst_20 = arith.constant dense<0.000000e+00> : vector<128xf32>
    %42 = vector.multi_reduction <add>, %41, %cst_20 [0] : vector<16x128xf32> to vector<128xf32>
    %43 = vector.shape_cast %42 : vector<128xf32> to vector<1x128xf32>
    %44 = vector.extract_strided_slice %39 {offsets = [16, 0], sizes = [16, 128], strides = [1, 1]} : vector<32x128xf32> to vector<16x128xf32>
    %45 = arith.mulf %44, %36 : vector<16x128xf32>
    %cst_21 = arith.constant dense<0.000000e+00> : vector<128xf32>
    %46 = vector.multi_reduction <add>, %45, %cst_21 [0] : vector<16x128xf32> to vector<128xf32>
    %47 = vector.shape_cast %46 : vector<128xf32> to vector<1x128xf32>
    %48 = math.absf %43 : vector<1x128xf32>
    %cst_22 = arith.constant 0.000000e+00 : f32
    %49 = vector.broadcast %cst_22 : f32 to vector<1x128xf32>
    %50 = arith.subf %49, %48 : vector<1x128xf32>
    %51 = math.exp %50 : vector<1x128xf32>
    %cst_23 = arith.constant 0.000000e+00 : f32
    %52 = vector.broadcast %cst_23 : f32 to vector<1x128xf32>
    %53 = arith.maximumf %43, %52 : vector<1x128xf32>
    %54 = arith.mulf %43, %47 : vector<1x128xf32>
    %55 = arith.subf %53, %54 : vector<1x128xf32>
    %cst_24 = arith.constant 1.000000e+00 : f32
    %56 = vector.broadcast %cst_24 : f32 to vector<1x128xf32>
    %57 = arith.addf %56, %51 : vector<1x128xf32>
    %58 = math.log %57 : vector<1x128xf32>
    %59 = arith.addf %55, %58 : vector<1x128xf32>
    %cst_25 = arith.constant 1.000000e+00 : f32
    %60 = vector.broadcast %cst_25 : f32 to vector<1x128xf32>
    %61 = arith.addf %60, %51 : vector<1x128xf32>
    %62 = tpu.reciprocal %61 {approx = true} : vector<1x128xf32> -> vector<1x128xf32>
    %cst_26 = arith.constant 0.000000e+00 : f32
    %63 = vector.broadcast %cst_26 : f32 to vector<1x128xf32>
    %64 = arith.cmpf oge, %43, %63 : vector<1x128xf32>
    %65 = arith.mulf %51, %62 : vector<1x128xf32>
    %66 = arith.select %64, %62, %65 : vector<1x128xi1>, vector<1x128xf32>
    %67 = arith.mulf %59, %8 : vector<1x128xf32>
    %cst_27 = arith.constant dense<0.000000e+00> : vector<1xf32>
    %68 = vector.multi_reduction <add>, %67, %cst_27 [1] : vector<1x128xf32> to vector<1xf32>
    %69 = vector.shape_cast %68 : vector<1xf32> to vector<1x1xf32>
    %70 = arith.mulf %66, %47 : vector<1x128xf32>
    %71 = arith.mulf %70, %8 : vector<1x128xf32>
    %cst_28 = arith.constant dense<0.000000e+00> : vector<1xf32>
    %72 = vector.multi_reduction <add>, %71, %cst_28 [1] : vector<1x128xf32> to vector<1xf32>
    %73 = vector.shape_cast %72 : vector<1xf32> to vector<1x1xf32>
    %74 = arith.mulf %66, %8 : vector<1x128xf32>
    %cst_29 = arith.constant dense<0.000000e+00> : vector<1xf32>
    %75 = vector.multi_reduction <add>, %74, %cst_29 [1] : vector<1x128xf32> to vector<1xf32>
    %76 = vector.shape_cast %75 : vector<1xf32> to vector<1x1xf32>
    %77 = arith.mulf %47, %8 : vector<1x128xf32>
    %cst_30 = arith.constant dense<0.000000e+00> : vector<1xf32>
    %78 = vector.multi_reduction <add>, %77, %cst_30 [1] : vector<1x128xf32> to vector<1xf32>
    %79 = vector.shape_cast %78 : vector<1xf32> to vector<1x1xf32>
    %c1 = arith.constant 1 : index
    %c0_31 = arith.constant 0 : index
    %80 = vector.load %arg3[%c1, %c0_31] : memref<8x128xf32, #tpu.memory_space<vmem>>, vector<1x128xf32>
    %cst_32 = arith.constant 1.600000e+01 : f32
    %81 = vector.broadcast %cst_32 : f32 to vector<1x128xf32>
    %82 = arith.mulf %80, %81 : vector<1x128xf32>
    %cst_33 = arith.constant 5.000000e-01 : f32
    %83 = vector.broadcast %cst_33 : f32 to vector<1x128xf32>
    %84 = arith.subf %82, %83 : vector<1x128xf32>
    %c1_34 = arith.constant 1 : index
    %c0_35 = arith.constant 0 : index
    %85 = vector.load %arg4[%c1_34, %c0_35] : memref<8x128xf32, #tpu.memory_space<vmem>>, vector<1x128xf32>
    %cst_36 = arith.constant 1.600000e+01 : f32
    %86 = vector.broadcast %cst_36 : f32 to vector<1x128xf32>
    %87 = arith.mulf %85, %86 : vector<1x128xf32>
    %cst_37 = arith.constant 5.000000e-01 : f32
    %88 = vector.broadcast %cst_37 : f32 to vector<1x128xf32>
    %89 = arith.subf %87, %88 : vector<1x128xf32>
    %90 = vector.broadcast %84 : vector<1x128xf32> to vector<16x128xf32>
    %91 = arith.subf %10, %90 : vector<16x128xf32>
    %92 = math.absf %91 : vector<16x128xf32>
    %cst_38 = arith.constant 1.000000e+00 : f32
    %93 = vector.broadcast %cst_38 : f32 to vector<16x128xf32>
    %94 = arith.subf %93, %92 : vector<16x128xf32>
    %cst_39 = arith.constant 0.000000e+00 : f32
    %95 = vector.broadcast %cst_39 : f32 to vector<16x128xf32>
    %96 = arith.maximumf %94, %95 : vector<16x128xf32>
    %97 = vector.broadcast %89 : vector<1x128xf32> to vector<16x128xf32>
    %98 = arith.subf %12, %97 : vector<16x128xf32>
    %99 = math.absf %98 : vector<16x128xf32>
    %cst_40 = arith.constant 1.000000e+00 : f32
    %100 = vector.broadcast %cst_40 : f32 to vector<16x128xf32>
    %101 = arith.subf %100, %99 : vector<16x128xf32>
    %cst_41 = arith.constant 0.000000e+00 : f32
    %102 = vector.broadcast %cst_41 : f32 to vector<16x128xf32>
    %103 = arith.maximumf %101, %102 : vector<16x128xf32>
    %c1_42 = arith.constant 1 : index
    %c0_43 = arith.constant 0 : index
    %c0_44 = arith.constant 0 : index
    %104 = vector.load %arg2[%c1_42, %c0_43, %c0_44] : memref<8x32x16xf32, #tpu.memory_space<vmem>>, vector<1x32x16xf32>
    %105 = vector.shape_cast %104 : vector<1x32x16xf32> to vector<32x16xf32>
    %cst_45 = arith.constant dense<0.000000e+00> : vector<32x128xf32>
    %106 = tpu.matmul %105, %96, %cst_45 {dimension_numbers = #tpu.dot_dimension_numbers<[1], [0], [0], [1], [0, 0, 1, 1], [], []>} : vector<32x16xf32>, vector<16x128xf32>, vector<32x128xf32> -> vector<32x128xf32>
    %107 = vector.extract_strided_slice %106 {offsets = [0, 0], sizes = [16, 128], strides = [1, 1]} : vector<32x128xf32> to vector<16x128xf32>
    %108 = arith.mulf %107, %103 : vector<16x128xf32>
    %cst_46 = arith.constant dense<0.000000e+00> : vector<128xf32>
    %109 = vector.multi_reduction <add>, %108, %cst_46 [0] : vector<16x128xf32> to vector<128xf32>
    %110 = vector.shape_cast %109 : vector<128xf32> to vector<1x128xf32>
    %111 = vector.extract_strided_slice %106 {offsets = [16, 0], sizes = [16, 128], strides = [1, 1]} : vector<32x128xf32> to vector<16x128xf32>
    %112 = arith.mulf %111, %103 : vector<16x128xf32>
    %cst_47 = arith.constant dense<0.000000e+00> : vector<128xf32>
    %113 = vector.multi_reduction <add>, %112, %cst_47 [0] : vector<16x128xf32> to vector<128xf32>
    %114 = vector.shape_cast %113 : vector<128xf32> to vector<1x128xf32>
    %115 = math.absf %110 : vector<1x128xf32>
    %cst_48 = arith.constant 0.000000e+00 : f32
    %116 = vector.broadcast %cst_48 : f32 to vector<1x128xf32>
    %117 = arith.subf %116, %115 : vector<1x128xf32>
    %118 = math.exp %117 : vector<1x128xf32>
    %cst_49 = arith.constant 0.000000e+00 : f32
    %119 = vector.broadcast %cst_49 : f32 to vector<1x128xf32>
    %120 = arith.maximumf %110, %119 : vector<1x128xf32>
    %121 = arith.mulf %110, %114 : vector<1x128xf32>
    %122 = arith.subf %120, %121 : vector<1x128xf32>
    %cst_50 = arith.constant 1.000000e+00 : f32
    %123 = vector.broadcast %cst_50 : f32 to vector<1x128xf32>
    %124 = arith.addf %123, %118 : vector<1x128xf32>
    %125 = math.log %124 : vector<1x128xf32>
    %126 = arith.addf %122, %125 : vector<1x128xf32>
    %cst_51 = arith.constant 1.000000e+00 : f32
    %127 = vector.broadcast %cst_51 : f32 to vector<1x128xf32>
    %128 = arith.addf %127, %118 : vector<1x128xf32>
    %129 = tpu.reciprocal %128 {approx = true} : vector<1x128xf32> -> vector<1x128xf32>
    %cst_52 = arith.constant 0.000000e+00 : f32
    %130 = vector.broadcast %cst_52 : f32 to vector<1x128xf32>
    %131 = arith.cmpf oge, %110, %130 : vector<1x128xf32>
    %132 = arith.mulf %118, %129 : vector<1x128xf32>
    %133 = arith.select %131, %129, %132 : vector<1x128xi1>, vector<1x128xf32>
    %134 = arith.mulf %126, %8 : vector<1x128xf32>
    %cst_53 = arith.constant dense<0.000000e+00> : vector<1xf32>
    %135 = vector.multi_reduction <add>, %134, %cst_53 [1] : vector<1x128xf32> to vector<1xf32>
    %136 = vector.shape_cast %135 : vector<1xf32> to vector<1x1xf32>
    %137 = arith.mulf %133, %114 : vector<1x128xf32>
    %138 = arith.mulf %137, %8 : vector<1x128xf32>
    %cst_54 = arith.constant dense<0.000000e+00> : vector<1xf32>
    %139 = vector.multi_reduction <add>, %138, %cst_54 [1] : vector<1x128xf32> to vector<1xf32>
    %140 = vector.shape_cast %139 : vector<1xf32> to vector<1x1xf32>
    %141 = arith.mulf %133, %8 : vector<1x128xf32>
    %cst_55 = arith.constant dense<0.000000e+00> : vector<1xf32>
    %142 = vector.multi_reduction <add>, %141, %cst_55 [1] : vector<1x128xf32> to vector<1xf32>
    %143 = vector.shape_cast %142 : vector<1xf32> to vector<1x1xf32>
    %144 = arith.mulf %114, %8 : vector<1x128xf32>
    %cst_56 = arith.constant dense<0.000000e+00> : vector<1xf32>
    %145 = vector.multi_reduction <add>, %144, %cst_56 [1] : vector<1x128xf32> to vector<1xf32>
    %146 = vector.shape_cast %145 : vector<1xf32> to vector<1x1xf32>
    %c2 = arith.constant 2 : index
    %c0_57 = arith.constant 0 : index
    %147 = vector.load %arg3[%c2, %c0_57] : memref<8x128xf32, #tpu.memory_space<vmem>>, vector<1x128xf32>
    %cst_58 = arith.constant 1.600000e+01 : f32
    %148 = vector.broadcast %cst_58 : f32 to vector<1x128xf32>
    %149 = arith.mulf %147, %148 : vector<1x128xf32>
    %cst_59 = arith.constant 5.000000e-01 : f32
    %150 = vector.broadcast %cst_59 : f32 to vector<1x128xf32>
    %151 = arith.subf %149, %150 : vector<1x128xf32>
    %c2_60 = arith.constant 2 : index
    %c0_61 = arith.constant 0 : index
    %152 = vector.load %arg4[%c2_60, %c0_61] : memref<8x128xf32, #tpu.memory_space<vmem>>, vector<1x128xf32>
    %cst_62 = arith.constant 1.600000e+01 : f32
    %153 = vector.broadcast %cst_62 : f32 to vector<1x128xf32>
    %154 = arith.mulf %152, %153 : vector<1x128xf32>
    %cst_63 = arith.constant 5.000000e-01 : f32
    %155 = vector.broadcast %cst_63 : f32 to vector<1x128xf32>
    %156 = arith.subf %154, %155 : vector<1x128xf32>
    %157 = vector.broadcast %151 : vector<1x128xf32> to vector<16x128xf32>
    %158 = arith.subf %10, %157 : vector<16x128xf32>
    %159 = math.absf %158 : vector<16x128xf32>
    %cst_64 = arith.constant 1.000000e+00 : f32
    %160 = vector.broadcast %cst_64 : f32 to vector<16x128xf32>
    %161 = arith.subf %160, %159 : vector<16x128xf32>
    %cst_65 = arith.constant 0.000000e+00 : f32
    %162 = vector.broadcast %cst_65 : f32 to vector<16x128xf32>
    %163 = arith.maximumf %161, %162 : vector<16x128xf32>
    %164 = vector.broadcast %156 : vector<1x128xf32> to vector<16x128xf32>
    %165 = arith.subf %12, %164 : vector<16x128xf32>
    %166 = math.absf %165 : vector<16x128xf32>
    %cst_66 = arith.constant 1.000000e+00 : f32
    %167 = vector.broadcast %cst_66 : f32 to vector<16x128xf32>
    %168 = arith.subf %167, %166 : vector<16x128xf32>
    %cst_67 = arith.constant 0.000000e+00 : f32
    %169 = vector.broadcast %cst_67 : f32 to vector<16x128xf32>
    %170 = arith.maximumf %168, %169 : vector<16x128xf32>
    %c2_68 = arith.constant 2 : index
    %c0_69 = arith.constant 0 : index
    %c0_70 = arith.constant 0 : index
    %171 = vector.load %arg2[%c2_68, %c0_69, %c0_70] : memref<8x32x16xf32, #tpu.memory_space<vmem>>, vector<1x32x16xf32>
    %172 = vector.shape_cast %171 : vector<1x32x16xf32> to vector<32x16xf32>
    %cst_71 = arith.constant dense<0.000000e+00> : vector<32x128xf32>
    %173 = tpu.matmul %172, %163, %cst_71 {dimension_numbers = #tpu.dot_dimension_numbers<[1], [0], [0], [1], [0, 0, 1, 1], [], []>} : vector<32x16xf32>, vector<16x128xf32>, vector<32x128xf32> -> vector<32x128xf32>
    %174 = vector.extract_strided_slice %173 {offsets = [0, 0], sizes = [16, 128], strides = [1, 1]} : vector<32x128xf32> to vector<16x128xf32>
    %175 = arith.mulf %174, %170 : vector<16x128xf32>
    %cst_72 = arith.constant dense<0.000000e+00> : vector<128xf32>
    %176 = vector.multi_reduction <add>, %175, %cst_72 [0] : vector<16x128xf32> to vector<128xf32>
    %177 = vector.shape_cast %176 : vector<128xf32> to vector<1x128xf32>
    %178 = vector.extract_strided_slice %173 {offsets = [16, 0], sizes = [16, 128], strides = [1, 1]} : vector<32x128xf32> to vector<16x128xf32>
    %179 = arith.mulf %178, %170 : vector<16x128xf32>
    %cst_73 = arith.constant dense<0.000000e+00> : vector<128xf32>
    %180 = vector.multi_reduction <add>, %179, %cst_73 [0] : vector<16x128xf32> to vector<128xf32>
    %181 = vector.shape_cast %180 : vector<128xf32> to vector<1x128xf32>
    %182 = math.absf %177 : vector<1x128xf32>
    %cst_74 = arith.constant 0.000000e+00 : f32
    %183 = vector.broadcast %cst_74 : f32 to vector<1x128xf32>
    %184 = arith.subf %183, %182 : vector<1x128xf32>
    %185 = math.exp %184 : vector<1x128xf32>
    %cst_75 = arith.constant 0.000000e+00 : f32
    %186 = vector.broadcast %cst_75 : f32 to vector<1x128xf32>
    %187 = arith.maximumf %177, %186 : vector<1x128xf32>
    %188 = arith.mulf %177, %181 : vector<1x128xf32>
    %189 = arith.subf %187, %188 : vector<1x128xf32>
    %cst_76 = arith.constant 1.000000e+00 : f32
    %190 = vector.broadcast %cst_76 : f32 to vector<1x128xf32>
    %191 = arith.addf %190, %185 : vector<1x128xf32>
    %192 = math.log %191 : vector<1x128xf32>
    %193 = arith.addf %189, %192 : vector<1x128xf32>
    %cst_77 = arith.constant 1.000000e+00 : f32
    %194 = vector.broadcast %cst_77 : f32 to vector<1x128xf32>
    %195 = arith.addf %194, %185 : vector<1x128xf32>
    %196 = tpu.reciprocal %195 {approx = true} : vector<1x128xf32> -> vector<1x128xf32>
    %cst_78 = arith.constant 0.000000e+00 : f32
    %197 = vector.broadcast %cst_78 : f32 to vector<1x128xf32>
    %198 = arith.cmpf oge, %177, %197 : vector<1x128xf32>
    %199 = arith.mulf %185, %196 : vector<1x128xf32>
    %200 = arith.select %198, %196, %199 : vector<1x128xi1>, vector<1x128xf32>
    %201 = arith.mulf %193, %8 : vector<1x128xf32>
    %cst_79 = arith.constant dense<0.000000e+00> : vector<1xf32>
    %202 = vector.multi_reduction <add>, %201, %cst_79 [1] : vector<1x128xf32> to vector<1xf32>
    %203 = vector.shape_cast %202 : vector<1xf32> to vector<1x1xf32>
    %204 = arith.mulf %200, %181 : vector<1x128xf32>
    %205 = arith.mulf %204, %8 : vector<1x128xf32>
    %cst_80 = arith.constant dense<0.000000e+00> : vector<1xf32>
    %206 = vector.multi_reduction <add>, %205, %cst_80 [1] : vector<1x128xf32> to vector<1xf32>
    %207 = vector.shape_cast %206 : vector<1xf32> to vector<1x1xf32>
    %208 = arith.mulf %200, %8 : vector<1x128xf32>
    %cst_81 = arith.constant dense<0.000000e+00> : vector<1xf32>
    %209 = vector.multi_reduction <add>, %208, %cst_81 [1] : vector<1x128xf32> to vector<1xf32>
    %210 = vector.shape_cast %209 : vector<1xf32> to vector<1x1xf32>
    %211 = arith.mulf %181, %8 : vector<1x128xf32>
    %cst_82 = arith.constant dense<0.000000e+00> : vector<1xf32>
    %212 = vector.multi_reduction <add>, %211, %cst_82 [1] : vector<1x128xf32> to vector<1xf32>
    %213 = vector.shape_cast %212 : vector<1xf32> to vector<1x1xf32>
    %c3 = arith.constant 3 : index
    %c0_83 = arith.constant 0 : index
    %214 = vector.load %arg3[%c3, %c0_83] : memref<8x128xf32, #tpu.memory_space<vmem>>, vector<1x128xf32>
    %cst_84 = arith.constant 1.600000e+01 : f32
    %215 = vector.broadcast %cst_84 : f32 to vector<1x128xf32>
    %216 = arith.mulf %214, %215 : vector<1x128xf32>
    %cst_85 = arith.constant 5.000000e-01 : f32
    %217 = vector.broadcast %cst_85 : f32 to vector<1x128xf32>
    %218 = arith.subf %216, %217 : vector<1x128xf32>
    %c3_86 = arith.constant 3 : index
    %c0_87 = arith.constant 0 : index
    %219 = vector.load %arg4[%c3_86, %c0_87] : memref<8x128xf32, #tpu.memory_space<vmem>>, vector<1x128xf32>
    %cst_88 = arith.constant 1.600000e+01 : f32
    %220 = vector.broadcast %cst_88 : f32 to vector<1x128xf32>
    %221 = arith.mulf %219, %220 : vector<1x128xf32>
    %cst_89 = arith.constant 5.000000e-01 : f32
    %222 = vector.broadcast %cst_89 : f32 to vector<1x128xf32>
    %223 = arith.subf %221, %222 : vector<1x128xf32>
    %224 = vector.broadcast %218 : vector<1x128xf32> to vector<16x128xf32>
    %225 = arith.subf %10, %224 : vector<16x128xf32>
    %226 = math.absf %225 : vector<16x128xf32>
    %cst_90 = arith.constant 1.000000e+00 : f32
    %227 = vector.broadcast %cst_90 : f32 to vector<16x128xf32>
    %228 = arith.subf %227, %226 : vector<16x128xf32>
    %cst_91 = arith.constant 0.000000e+00 : f32
    %229 = vector.broadcast %cst_91 : f32 to vector<16x128xf32>
    %230 = arith.maximumf %228, %229 : vector<16x128xf32>
    %231 = vector.broadcast %223 : vector<1x128xf32> to vector<16x128xf32>
    %232 = arith.subf %12, %231 : vector<16x128xf32>
    %233 = math.absf %232 : vector<16x128xf32>
    %cst_92 = arith.constant 1.000000e+00 : f32
    %234 = vector.broadcast %cst_92 : f32 to vector<16x128xf32>
    %235 = arith.subf %234, %233 : vector<16x128xf32>
    %cst_93 = arith.constant 0.000000e+00 : f32
    %236 = vector.broadcast %cst_93 : f32 to vector<16x128xf32>
    %237 = arith.maximumf %235, %236 : vector<16x128xf32>
    %c3_94 = arith.constant 3 : index
    %c0_95 = arith.constant 0 : index
    %c0_96 = arith.constant 0 : index
    %238 = vector.load %arg2[%c3_94, %c0_95, %c0_96] : memref<8x32x16xf32, #tpu.memory_space<vmem>>, vector<1x32x16xf32>
    %239 = vector.shape_cast %238 : vector<1x32x16xf32> to vector<32x16xf32>
    %cst_97 = arith.constant dense<0.000000e+00> : vector<32x128xf32>
    %240 = tpu.matmul %239, %230, %cst_97 {dimension_numbers = #tpu.dot_dimension_numbers<[1], [0], [0], [1], [0, 0, 1, 1], [], []>} : vector<32x16xf32>, vector<16x128xf32>, vector<32x128xf32> -> vector<32x128xf32>
    %241 = vector.extract_strided_slice %240 {offsets = [0, 0], sizes = [16, 128], strides = [1, 1]} : vector<32x128xf32> to vector<16x128xf32>
    %242 = arith.mulf %241, %237 : vector<16x128xf32>
    %cst_98 = arith.constant dense<0.000000e+00> : vector<128xf32>
    %243 = vector.multi_reduction <add>, %242, %cst_98 [0] : vector<16x128xf32> to vector<128xf32>
    %244 = vector.shape_cast %243 : vector<128xf32> to vector<1x128xf32>
    %245 = vector.extract_strided_slice %240 {offsets = [16, 0], sizes = [16, 128], strides = [1, 1]} : vector<32x128xf32> to vector<16x128xf32>
    %246 = arith.mulf %245, %237 : vector<16x128xf32>
    %cst_99 = arith.constant dense<0.000000e+00> : vector<128xf32>
    %247 = vector.multi_reduction <add>, %246, %cst_99 [0] : vector<16x128xf32> to vector<128xf32>
    %248 = vector.shape_cast %247 : vector<128xf32> to vector<1x128xf32>
    %249 = math.absf %244 : vector<1x128xf32>
    %cst_100 = arith.constant 0.000000e+00 : f32
    %250 = vector.broadcast %cst_100 : f32 to vector<1x128xf32>
    %251 = arith.subf %250, %249 : vector<1x128xf32>
    %252 = math.exp %251 : vector<1x128xf32>
    %cst_101 = arith.constant 0.000000e+00 : f32
    %253 = vector.broadcast %cst_101 : f32 to vector<1x128xf32>
    %254 = arith.maximumf %244, %253 : vector<1x128xf32>
    %255 = arith.mulf %244, %248 : vector<1x128xf32>
    %256 = arith.subf %254, %255 : vector<1x128xf32>
    %cst_102 = arith.constant 1.000000e+00 : f32
    %257 = vector.broadcast %cst_102 : f32 to vector<1x128xf32>
    %258 = arith.addf %257, %252 : vector<1x128xf32>
    %259 = math.log %258 : vector<1x128xf32>
    %260 = arith.addf %256, %259 : vector<1x128xf32>
    %cst_103 = arith.constant 1.000000e+00 : f32
    %261 = vector.broadcast %cst_103 : f32 to vector<1x128xf32>
    %262 = arith.addf %261, %252 : vector<1x128xf32>
    %263 = tpu.reciprocal %262 {approx = true} : vector<1x128xf32> -> vector<1x128xf32>
    %cst_104 = arith.constant 0.000000e+00 : f32
    %264 = vector.broadcast %cst_104 : f32 to vector<1x128xf32>
    %265 = arith.cmpf oge, %244, %264 : vector<1x128xf32>
    %266 = arith.mulf %252, %263 : vector<1x128xf32>
    %267 = arith.select %265, %263, %266 : vector<1x128xi1>, vector<1x128xf32>
    %268 = arith.mulf %260, %8 : vector<1x128xf32>
    %cst_105 = arith.constant dense<0.000000e+00> : vector<1xf32>
    %269 = vector.multi_reduction <add>, %268, %cst_105 [1] : vector<1x128xf32> to vector<1xf32>
    %270 = vector.shape_cast %269 : vector<1xf32> to vector<1x1xf32>
    %271 = arith.mulf %267, %248 : vector<1x128xf32>
    %272 = arith.mulf %271, %8 : vector<1x128xf32>
    %cst_106 = arith.constant dense<0.000000e+00> : vector<1xf32>
    %273 = vector.multi_reduction <add>, %272, %cst_106 [1] : vector<1x128xf32> to vector<1xf32>
    %274 = vector.shape_cast %273 : vector<1xf32> to vector<1x1xf32>
    %275 = arith.mulf %267, %8 : vector<1x128xf32>
    %cst_107 = arith.constant dense<0.000000e+00> : vector<1xf32>
    %276 = vector.multi_reduction <add>, %275, %cst_107 [1] : vector<1x128xf32> to vector<1xf32>
    %277 = vector.shape_cast %276 : vector<1xf32> to vector<1x1xf32>
    %278 = arith.mulf %248, %8 : vector<1x128xf32>
    %cst_108 = arith.constant dense<0.000000e+00> : vector<1xf32>
    %279 = vector.multi_reduction <add>, %278, %cst_108 [1] : vector<1x128xf32> to vector<1xf32>
    %280 = vector.shape_cast %279 : vector<1xf32> to vector<1x1xf32>
    %c4 = arith.constant 4 : index
    %c0_109 = arith.constant 0 : index
    %281 = vector.load %arg3[%c4, %c0_109] : memref<8x128xf32, #tpu.memory_space<vmem>>, vector<1x128xf32>
    %cst_110 = arith.constant 1.600000e+01 : f32
    %282 = vector.broadcast %cst_110 : f32 to vector<1x128xf32>
    %283 = arith.mulf %281, %282 : vector<1x128xf32>
    %cst_111 = arith.constant 5.000000e-01 : f32
    %284 = vector.broadcast %cst_111 : f32 to vector<1x128xf32>
    %285 = arith.subf %283, %284 : vector<1x128xf32>
    %c4_112 = arith.constant 4 : index
    %c0_113 = arith.constant 0 : index
    %286 = vector.load %arg4[%c4_112, %c0_113] : memref<8x128xf32, #tpu.memory_space<vmem>>, vector<1x128xf32>
    %cst_114 = arith.constant 1.600000e+01 : f32
    %287 = vector.broadcast %cst_114 : f32 to vector<1x128xf32>
    %288 = arith.mulf %286, %287 : vector<1x128xf32>
    %cst_115 = arith.constant 5.000000e-01 : f32
    %289 = vector.broadcast %cst_115 : f32 to vector<1x128xf32>
    %290 = arith.subf %288, %289 : vector<1x128xf32>
    %291 = vector.broadcast %285 : vector<1x128xf32> to vector<16x128xf32>
    %292 = arith.subf %10, %291 : vector<16x128xf32>
    %293 = math.absf %292 : vector<16x128xf32>
    %cst_116 = arith.constant 1.000000e+00 : f32
    %294 = vector.broadcast %cst_116 : f32 to vector<16x128xf32>
    %295 = arith.subf %294, %293 : vector<16x128xf32>
    %cst_117 = arith.constant 0.000000e+00 : f32
    %296 = vector.broadcast %cst_117 : f32 to vector<16x128xf32>
    %297 = arith.maximumf %295, %296 : vector<16x128xf32>
    %298 = vector.broadcast %290 : vector<1x128xf32> to vector<16x128xf32>
    %299 = arith.subf %12, %298 : vector<16x128xf32>
    %300 = math.absf %299 : vector<16x128xf32>
    %cst_118 = arith.constant 1.000000e+00 : f32
    %301 = vector.broadcast %cst_118 : f32 to vector<16x128xf32>
    %302 = arith.subf %301, %300 : vector<16x128xf32>
    %cst_119 = arith.constant 0.000000e+00 : f32
    %303 = vector.broadcast %cst_119 : f32 to vector<16x128xf32>
    %304 = arith.maximumf %302, %303 : vector<16x128xf32>
    %c4_120 = arith.constant 4 : index
    %c0_121 = arith.constant 0 : index
    %c0_122 = arith.constant 0 : index
    %305 = vector.load %arg2[%c4_120, %c0_121, %c0_122] : memref<8x32x16xf32, #tpu.memory_space<vmem>>, vector<1x32x16xf32>
    %306 = vector.shape_cast %305 : vector<1x32x16xf32> to vector<32x16xf32>
    %cst_123 = arith.constant dense<0.000000e+00> : vector<32x128xf32>
    %307 = tpu.matmul %306, %297, %cst_123 {dimension_numbers = #tpu.dot_dimension_numbers<[1], [0], [0], [1], [0, 0, 1, 1], [], []>} : vector<32x16xf32>, vector<16x128xf32>, vector<32x128xf32> -> vector<32x128xf32>
    %308 = vector.extract_strided_slice %307 {offsets = [0, 0], sizes = [16, 128], strides = [1, 1]} : vector<32x128xf32> to vector<16x128xf32>
    %309 = arith.mulf %308, %304 : vector<16x128xf32>
    %cst_124 = arith.constant dense<0.000000e+00> : vector<128xf32>
    %310 = vector.multi_reduction <add>, %309, %cst_124 [0] : vector<16x128xf32> to vector<128xf32>
    %311 = vector.shape_cast %310 : vector<128xf32> to vector<1x128xf32>
    %312 = vector.extract_strided_slice %307 {offsets = [16, 0], sizes = [16, 128], strides = [1, 1]} : vector<32x128xf32> to vector<16x128xf32>
    %313 = arith.mulf %312, %304 : vector<16x128xf32>
    %cst_125 = arith.constant dense<0.000000e+00> : vector<128xf32>
    %314 = vector.multi_reduction <add>, %313, %cst_125 [0] : vector<16x128xf32> to vector<128xf32>
    %315 = vector.shape_cast %314 : vector<128xf32> to vector<1x128xf32>
    %316 = math.absf %311 : vector<1x128xf32>
    %cst_126 = arith.constant 0.000000e+00 : f32
    %317 = vector.broadcast %cst_126 : f32 to vector<1x128xf32>
    %318 = arith.subf %317, %316 : vector<1x128xf32>
    %319 = math.exp %318 : vector<1x128xf32>
    %cst_127 = arith.constant 0.000000e+00 : f32
    %320 = vector.broadcast %cst_127 : f32 to vector<1x128xf32>
    %321 = arith.maximumf %311, %320 : vector<1x128xf32>
    %322 = arith.mulf %311, %315 : vector<1x128xf32>
    %323 = arith.subf %321, %322 : vector<1x128xf32>
    %cst_128 = arith.constant 1.000000e+00 : f32
    %324 = vector.broadcast %cst_128 : f32 to vector<1x128xf32>
    %325 = arith.addf %324, %319 : vector<1x128xf32>
    %326 = math.log %325 : vector<1x128xf32>
    %327 = arith.addf %323, %326 : vector<1x128xf32>
    %cst_129 = arith.constant 1.000000e+00 : f32
    %328 = vector.broadcast %cst_129 : f32 to vector<1x128xf32>
    %329 = arith.addf %328, %319 : vector<1x128xf32>
    %330 = tpu.reciprocal %329 {approx = true} : vector<1x128xf32> -> vector<1x128xf32>
    %cst_130 = arith.constant 0.000000e+00 : f32
    %331 = vector.broadcast %cst_130 : f32 to vector<1x128xf32>
    %332 = arith.cmpf oge, %311, %331 : vector<1x128xf32>
    %333 = arith.mulf %319, %330 : vector<1x128xf32>
    %334 = arith.select %332, %330, %333 : vector<1x128xi1>, vector<1x128xf32>
    %335 = arith.mulf %327, %8 : vector<1x128xf32>
    %cst_131 = arith.constant dense<0.000000e+00> : vector<1xf32>
    %336 = vector.multi_reduction <add>, %335, %cst_131 [1] : vector<1x128xf32> to vector<1xf32>
    %337 = vector.shape_cast %336 : vector<1xf32> to vector<1x1xf32>
    %338 = arith.mulf %334, %315 : vector<1x128xf32>
    %339 = arith.mulf %338, %8 : vector<1x128xf32>
    %cst_132 = arith.constant dense<0.000000e+00> : vector<1xf32>
    %340 = vector.multi_reduction <add>, %339, %cst_132 [1] : vector<1x128xf32> to vector<1xf32>
    %341 = vector.shape_cast %340 : vector<1xf32> to vector<1x1xf32>
    %342 = arith.mulf %334, %8 : vector<1x128xf32>
    %cst_133 = arith.constant dense<0.000000e+00> : vector<1xf32>
    %343 = vector.multi_reduction <add>, %342, %cst_133 [1] : vector<1x128xf32> to vector<1xf32>
    %344 = vector.shape_cast %343 : vector<1xf32> to vector<1x1xf32>
    %345 = arith.mulf %315, %8 : vector<1x128xf32>
    %cst_134 = arith.constant dense<0.000000e+00> : vector<1xf32>
    %346 = vector.multi_reduction <add>, %345, %cst_134 [1] : vector<1x128xf32> to vector<1xf32>
    %347 = vector.shape_cast %346 : vector<1xf32> to vector<1x1xf32>
    %c5 = arith.constant 5 : index
    %c0_135 = arith.constant 0 : index
    %348 = vector.load %arg3[%c5, %c0_135] : memref<8x128xf32, #tpu.memory_space<vmem>>, vector<1x128xf32>
    %cst_136 = arith.constant 1.600000e+01 : f32
    %349 = vector.broadcast %cst_136 : f32 to vector<1x128xf32>
    %350 = arith.mulf %348, %349 : vector<1x128xf32>
    %cst_137 = arith.constant 5.000000e-01 : f32
    %351 = vector.broadcast %cst_137 : f32 to vector<1x128xf32>
    %352 = arith.subf %350, %351 : vector<1x128xf32>
    %c5_138 = arith.constant 5 : index
    %c0_139 = arith.constant 0 : index
    %353 = vector.load %arg4[%c5_138, %c0_139] : memref<8x128xf32, #tpu.memory_space<vmem>>, vector<1x128xf32>
    %cst_140 = arith.constant 1.600000e+01 : f32
    %354 = vector.broadcast %cst_140 : f32 to vector<1x128xf32>
    %355 = arith.mulf %353, %354 : vector<1x128xf32>
    %cst_141 = arith.constant 5.000000e-01 : f32
    %356 = vector.broadcast %cst_141 : f32 to vector<1x128xf32>
    %357 = arith.subf %355, %356 : vector<1x128xf32>
    %358 = vector.broadcast %352 : vector<1x128xf32> to vector<16x128xf32>
    %359 = arith.subf %10, %358 : vector<16x128xf32>
    %360 = math.absf %359 : vector<16x128xf32>
    %cst_142 = arith.constant 1.000000e+00 : f32
    %361 = vector.broadcast %cst_142 : f32 to vector<16x128xf32>
    %362 = arith.subf %361, %360 : vector<16x128xf32>
    %cst_143 = arith.constant 0.000000e+00 : f32
    %363 = vector.broadcast %cst_143 : f32 to vector<16x128xf32>
    %364 = arith.maximumf %362, %363 : vector<16x128xf32>
    %365 = vector.broadcast %357 : vector<1x128xf32> to vector<16x128xf32>
    %366 = arith.subf %12, %365 : vector<16x128xf32>
    %367 = math.absf %366 : vector<16x128xf32>
    %cst_144 = arith.constant 1.000000e+00 : f32
    %368 = vector.broadcast %cst_144 : f32 to vector<16x128xf32>
    %369 = arith.subf %368, %367 : vector<16x128xf32>
    %cst_145 = arith.constant 0.000000e+00 : f32
    %370 = vector.broadcast %cst_145 : f32 to vector<16x128xf32>
    %371 = arith.maximumf %369, %370 : vector<16x128xf32>
    %c5_146 = arith.constant 5 : index
    %c0_147 = arith.constant 0 : index
    %c0_148 = arith.constant 0 : index
    %372 = vector.load %arg2[%c5_146, %c0_147, %c0_148] : memref<8x32x16xf32, #tpu.memory_space<vmem>>, vector<1x32x16xf32>
    %373 = vector.shape_cast %372 : vector<1x32x16xf32> to vector<32x16xf32>
    %cst_149 = arith.constant dense<0.000000e+00> : vector<32x128xf32>
    %374 = tpu.matmul %373, %364, %cst_149 {dimension_numbers = #tpu.dot_dimension_numbers<[1], [0], [0], [1], [0, 0, 1, 1], [], []>} : vector<32x16xf32>, vector<16x128xf32>, vector<32x128xf32> -> vector<32x128xf32>
    %375 = vector.extract_strided_slice %374 {offsets = [0, 0], sizes = [16, 128], strides = [1, 1]} : vector<32x128xf32> to vector<16x128xf32>
    %376 = arith.mulf %375, %371 : vector<16x128xf32>
    %cst_150 = arith.constant dense<0.000000e+00> : vector<128xf32>
    %377 = vector.multi_reduction <add>, %376, %cst_150 [0] : vector<16x128xf32> to vector<128xf32>
    %378 = vector.shape_cast %377 : vector<128xf32> to vector<1x128xf32>
    %379 = vector.extract_strided_slice %374 {offsets = [16, 0], sizes = [16, 128], strides = [1, 1]} : vector<32x128xf32> to vector<16x128xf32>
    %380 = arith.mulf %379, %371 : vector<16x128xf32>
    %cst_151 = arith.constant dense<0.000000e+00> : vector<128xf32>
    %381 = vector.multi_reduction <add>, %380, %cst_151 [0] : vector<16x128xf32> to vector<128xf32>
    %382 = vector.shape_cast %381 : vector<128xf32> to vector<1x128xf32>
    %383 = math.absf %378 : vector<1x128xf32>
    %cst_152 = arith.constant 0.000000e+00 : f32
    %384 = vector.broadcast %cst_152 : f32 to vector<1x128xf32>
    %385 = arith.subf %384, %383 : vector<1x128xf32>
    %386 = math.exp %385 : vector<1x128xf32>
    %cst_153 = arith.constant 0.000000e+00 : f32
    %387 = vector.broadcast %cst_153 : f32 to vector<1x128xf32>
    %388 = arith.maximumf %378, %387 : vector<1x128xf32>
    %389 = arith.mulf %378, %382 : vector<1x128xf32>
    %390 = arith.subf %388, %389 : vector<1x128xf32>
    %cst_154 = arith.constant 1.000000e+00 : f32
    %391 = vector.broadcast %cst_154 : f32 to vector<1x128xf32>
    %392 = arith.addf %391, %386 : vector<1x128xf32>
    %393 = math.log %392 : vector<1x128xf32>
    %394 = arith.addf %390, %393 : vector<1x128xf32>
    %cst_155 = arith.constant 1.000000e+00 : f32
    %395 = vector.broadcast %cst_155 : f32 to vector<1x128xf32>
    %396 = arith.addf %395, %386 : vector<1x128xf32>
    %397 = tpu.reciprocal %396 {approx = true} : vector<1x128xf32> -> vector<1x128xf32>
    %cst_156 = arith.constant 0.000000e+00 : f32
    %398 = vector.broadcast %cst_156 : f32 to vector<1x128xf32>
    %399 = arith.cmpf oge, %378, %398 : vector<1x128xf32>
    %400 = arith.mulf %386, %397 : vector<1x128xf32>
    %401 = arith.select %399, %397, %400 : vector<1x128xi1>, vector<1x128xf32>
    %402 = arith.mulf %394, %8 : vector<1x128xf32>
    %cst_157 = arith.constant dense<0.000000e+00> : vector<1xf32>
    %403 = vector.multi_reduction <add>, %402, %cst_157 [1] : vector<1x128xf32> to vector<1xf32>
    %404 = vector.shape_cast %403 : vector<1xf32> to vector<1x1xf32>
    %405 = arith.mulf %401, %382 : vector<1x128xf32>
    %406 = arith.mulf %405, %8 : vector<1x128xf32>
    %cst_158 = arith.constant dense<0.000000e+00> : vector<1xf32>
    %407 = vector.multi_reduction <add>, %406, %cst_158 [1] : vector<1x128xf32> to vector<1xf32>
    %408 = vector.shape_cast %407 : vector<1xf32> to vector<1x1xf32>
    %409 = arith.mulf %401, %8 : vector<1x128xf32>
    %cst_159 = arith.constant dense<0.000000e+00> : vector<1xf32>
    %410 = vector.multi_reduction <add>, %409, %cst_159 [1] : vector<1x128xf32> to vector<1xf32>
    %411 = vector.shape_cast %410 : vector<1xf32> to vector<1x1xf32>
    %412 = arith.mulf %382, %8 : vector<1x128xf32>
    %cst_160 = arith.constant dense<0.000000e+00> : vector<1xf32>
    %413 = vector.multi_reduction <add>, %412, %cst_160 [1] : vector<1x128xf32> to vector<1xf32>
    %414 = vector.shape_cast %413 : vector<1xf32> to vector<1x1xf32>
    %c6 = arith.constant 6 : index
    %c0_161 = arith.constant 0 : index
    %415 = vector.load %arg3[%c6, %c0_161] : memref<8x128xf32, #tpu.memory_space<vmem>>, vector<1x128xf32>
    %cst_162 = arith.constant 1.600000e+01 : f32
    %416 = vector.broadcast %cst_162 : f32 to vector<1x128xf32>
    %417 = arith.mulf %415, %416 : vector<1x128xf32>
    %cst_163 = arith.constant 5.000000e-01 : f32
    %418 = vector.broadcast %cst_163 : f32 to vector<1x128xf32>
    %419 = arith.subf %417, %418 : vector<1x128xf32>
    %c6_164 = arith.constant 6 : index
    %c0_165 = arith.constant 0 : index
    %420 = vector.load %arg4[%c6_164, %c0_165] : memref<8x128xf32, #tpu.memory_space<vmem>>, vector<1x128xf32>
    %cst_166 = arith.constant 1.600000e+01 : f32
    %421 = vector.broadcast %cst_166 : f32 to vector<1x128xf32>
    %422 = arith.mulf %420, %421 : vector<1x128xf32>
    %cst_167 = arith.constant 5.000000e-01 : f32
    %423 = vector.broadcast %cst_167 : f32 to vector<1x128xf32>
    %424 = arith.subf %422, %423 : vector<1x128xf32>
    %425 = vector.broadcast %419 : vector<1x128xf32> to vector<16x128xf32>
    %426 = arith.subf %10, %425 : vector<16x128xf32>
    %427 = math.absf %426 : vector<16x128xf32>
    %cst_168 = arith.constant 1.000000e+00 : f32
    %428 = vector.broadcast %cst_168 : f32 to vector<16x128xf32>
    %429 = arith.subf %428, %427 : vector<16x128xf32>
    %cst_169 = arith.constant 0.000000e+00 : f32
    %430 = vector.broadcast %cst_169 : f32 to vector<16x128xf32>
    %431 = arith.maximumf %429, %430 : vector<16x128xf32>
    %432 = vector.broadcast %424 : vector<1x128xf32> to vector<16x128xf32>
    %433 = arith.subf %12, %432 : vector<16x128xf32>
    %434 = math.absf %433 : vector<16x128xf32>
    %cst_170 = arith.constant 1.000000e+00 : f32
    %435 = vector.broadcast %cst_170 : f32 to vector<16x128xf32>
    %436 = arith.subf %435, %434 : vector<16x128xf32>
    %cst_171 = arith.constant 0.000000e+00 : f32
    %437 = vector.broadcast %cst_171 : f32 to vector<16x128xf32>
    %438 = arith.maximumf %436, %437 : vector<16x128xf32>
    %c6_172 = arith.constant 6 : index
    %c0_173 = arith.constant 0 : index
    %c0_174 = arith.constant 0 : index
    %439 = vector.load %arg2[%c6_172, %c0_173, %c0_174] : memref<8x32x16xf32, #tpu.memory_space<vmem>>, vector<1x32x16xf32>
    %440 = vector.shape_cast %439 : vector<1x32x16xf32> to vector<32x16xf32>
    %cst_175 = arith.constant dense<0.000000e+00> : vector<32x128xf32>
    %441 = tpu.matmul %440, %431, %cst_175 {dimension_numbers = #tpu.dot_dimension_numbers<[1], [0], [0], [1], [0, 0, 1, 1], [], []>} : vector<32x16xf32>, vector<16x128xf32>, vector<32x128xf32> -> vector<32x128xf32>
    %442 = vector.extract_strided_slice %441 {offsets = [0, 0], sizes = [16, 128], strides = [1, 1]} : vector<32x128xf32> to vector<16x128xf32>
    %443 = arith.mulf %442, %438 : vector<16x128xf32>
    %cst_176 = arith.constant dense<0.000000e+00> : vector<128xf32>
    %444 = vector.multi_reduction <add>, %443, %cst_176 [0] : vector<16x128xf32> to vector<128xf32>
    %445 = vector.shape_cast %444 : vector<128xf32> to vector<1x128xf32>
    %446 = vector.extract_strided_slice %441 {offsets = [16, 0], sizes = [16, 128], strides = [1, 1]} : vector<32x128xf32> to vector<16x128xf32>
    %447 = arith.mulf %446, %438 : vector<16x128xf32>
    %cst_177 = arith.constant dense<0.000000e+00> : vector<128xf32>
    %448 = vector.multi_reduction <add>, %447, %cst_177 [0] : vector<16x128xf32> to vector<128xf32>
    %449 = vector.shape_cast %448 : vector<128xf32> to vector<1x128xf32>
    %450 = math.absf %445 : vector<1x128xf32>
    %cst_178 = arith.constant 0.000000e+00 : f32
    %451 = vector.broadcast %cst_178 : f32 to vector<1x128xf32>
    %452 = arith.subf %451, %450 : vector<1x128xf32>
    %453 = math.exp %452 : vector<1x128xf32>
    %cst_179 = arith.constant 0.000000e+00 : f32
    %454 = vector.broadcast %cst_179 : f32 to vector<1x128xf32>
    %455 = arith.maximumf %445, %454 : vector<1x128xf32>
    %456 = arith.mulf %445, %449 : vector<1x128xf32>
    %457 = arith.subf %455, %456 : vector<1x128xf32>
    %cst_180 = arith.constant 1.000000e+00 : f32
    %458 = vector.broadcast %cst_180 : f32 to vector<1x128xf32>
    %459 = arith.addf %458, %453 : vector<1x128xf32>
    %460 = math.log %459 : vector<1x128xf32>
    %461 = arith.addf %457, %460 : vector<1x128xf32>
    %cst_181 = arith.constant 1.000000e+00 : f32
    %462 = vector.broadcast %cst_181 : f32 to vector<1x128xf32>
    %463 = arith.addf %462, %453 : vector<1x128xf32>
    %464 = tpu.reciprocal %463 {approx = true} : vector<1x128xf32> -> vector<1x128xf32>
    %cst_182 = arith.constant 0.000000e+00 : f32
    %465 = vector.broadcast %cst_182 : f32 to vector<1x128xf32>
    %466 = arith.cmpf oge, %445, %465 : vector<1x128xf32>
    %467 = arith.mulf %453, %464 : vector<1x128xf32>
    %468 = arith.select %466, %464, %467 : vector<1x128xi1>, vector<1x128xf32>
    %469 = arith.mulf %461, %8 : vector<1x128xf32>
    %cst_183 = arith.constant dense<0.000000e+00> : vector<1xf32>
    %470 = vector.multi_reduction <add>, %469, %cst_183 [1] : vector<1x128xf32> to vector<1xf32>
    %471 = vector.shape_cast %470 : vector<1xf32> to vector<1x1xf32>
    %472 = arith.mulf %468, %449 : vector<1x128xf32>
    %473 = arith.mulf %472, %8 : vector<1x128xf32>
    %cst_184 = arith.constant dense<0.000000e+00> : vector<1xf32>
    %474 = vector.multi_reduction <add>, %473, %cst_184 [1] : vector<1x128xf32> to vector<1xf32>
    %475 = vector.shape_cast %474 : vector<1xf32> to vector<1x1xf32>
    %476 = arith.mulf %468, %8 : vector<1x128xf32>
    %cst_185 = arith.constant dense<0.000000e+00> : vector<1xf32>
    %477 = vector.multi_reduction <add>, %476, %cst_185 [1] : vector<1x128xf32> to vector<1xf32>
    %478 = vector.shape_cast %477 : vector<1xf32> to vector<1x1xf32>
    %479 = arith.mulf %449, %8 : vector<1x128xf32>
    %cst_186 = arith.constant dense<0.000000e+00> : vector<1xf32>
    %480 = vector.multi_reduction <add>, %479, %cst_186 [1] : vector<1x128xf32> to vector<1xf32>
    %481 = vector.shape_cast %480 : vector<1xf32> to vector<1x1xf32>
    %c7 = arith.constant 7 : index
    %c0_187 = arith.constant 0 : index
    %482 = vector.load %arg3[%c7, %c0_187] : memref<8x128xf32, #tpu.memory_space<vmem>>, vector<1x128xf32>
    %cst_188 = arith.constant 1.600000e+01 : f32
    %483 = vector.broadcast %cst_188 : f32 to vector<1x128xf32>
    %484 = arith.mulf %482, %483 : vector<1x128xf32>
    %cst_189 = arith.constant 5.000000e-01 : f32
    %485 = vector.broadcast %cst_189 : f32 to vector<1x128xf32>
    %486 = arith.subf %484, %485 : vector<1x128xf32>
    %c7_190 = arith.constant 7 : index
    %c0_191 = arith.constant 0 : index
    %487 = vector.load %arg4[%c7_190, %c0_191] : memref<8x128xf32, #tpu.memory_space<vmem>>, vector<1x128xf32>
    %cst_192 = arith.constant 1.600000e+01 : f32
    %488 = vector.broadcast %cst_192 : f32 to vector<1x128xf32>
    %489 = arith.mulf %487, %488 : vector<1x128xf32>
    %cst_193 = arith.constant 5.000000e-01 : f32
    %490 = vector.broadcast %cst_193 : f32 to vector<1x128xf32>
    %491 = arith.subf %489, %490 : vector<1x128xf32>
    %492 = vector.broadcast %486 : vector<1x128xf32> to vector<16x128xf32>
    %493 = arith.subf %10, %492 : vector<16x128xf32>
    %494 = math.absf %493 : vector<16x128xf32>
    %cst_194 = arith.constant 1.000000e+00 : f32
    %495 = vector.broadcast %cst_194 : f32 to vector<16x128xf32>
    %496 = arith.subf %495, %494 : vector<16x128xf32>
    %cst_195 = arith.constant 0.000000e+00 : f32
    %497 = vector.broadcast %cst_195 : f32 to vector<16x128xf32>
    %498 = arith.maximumf %496, %497 : vector<16x128xf32>
    %499 = vector.broadcast %491 : vector<1x128xf32> to vector<16x128xf32>
    %500 = arith.subf %12, %499 : vector<16x128xf32>
    %501 = math.absf %500 : vector<16x128xf32>
    %cst_196 = arith.constant 1.000000e+00 : f32
    %502 = vector.broadcast %cst_196 : f32 to vector<16x128xf32>
    %503 = arith.subf %502, %501 : vector<16x128xf32>
    %cst_197 = arith.constant 0.000000e+00 : f32
    %504 = vector.broadcast %cst_197 : f32 to vector<16x128xf32>
    %505 = arith.maximumf %503, %504 : vector<16x128xf32>
    %c7_198 = arith.constant 7 : index
    %c0_199 = arith.constant 0 : index
    %c0_200 = arith.constant 0 : index
    %506 = vector.load %arg2[%c7_198, %c0_199, %c0_200] : memref<8x32x16xf32, #tpu.memory_space<vmem>>, vector<1x32x16xf32>
    %507 = vector.shape_cast %506 : vector<1x32x16xf32> to vector<32x16xf32>
    %cst_201 = arith.constant dense<0.000000e+00> : vector<32x128xf32>
    %508 = tpu.matmul %507, %498, %cst_201 {dimension_numbers = #tpu.dot_dimension_numbers<[1], [0], [0], [1], [0, 0, 1, 1], [], []>} : vector<32x16xf32>, vector<16x128xf32>, vector<32x128xf32> -> vector<32x128xf32>
    %509 = vector.extract_strided_slice %508 {offsets = [0, 0], sizes = [16, 128], strides = [1, 1]} : vector<32x128xf32> to vector<16x128xf32>
    %510 = arith.mulf %509, %505 : vector<16x128xf32>
    %cst_202 = arith.constant dense<0.000000e+00> : vector<128xf32>
    %511 = vector.multi_reduction <add>, %510, %cst_202 [0] : vector<16x128xf32> to vector<128xf32>
    %512 = vector.shape_cast %511 : vector<128xf32> to vector<1x128xf32>
    %513 = vector.extract_strided_slice %508 {offsets = [16, 0], sizes = [16, 128], strides = [1, 1]} : vector<32x128xf32> to vector<16x128xf32>
    %514 = arith.mulf %513, %505 : vector<16x128xf32>
    %cst_203 = arith.constant dense<0.000000e+00> : vector<128xf32>
    %515 = vector.multi_reduction <add>, %514, %cst_203 [0] : vector<16x128xf32> to vector<128xf32>
    %516 = vector.shape_cast %515 : vector<128xf32> to vector<1x128xf32>
    %517 = math.absf %512 : vector<1x128xf32>
    %cst_204 = arith.constant 0.000000e+00 : f32
    %518 = vector.broadcast %cst_204 : f32 to vector<1x128xf32>
    %519 = arith.subf %518, %517 : vector<1x128xf32>
    %520 = math.exp %519 : vector<1x128xf32>
    %cst_205 = arith.constant 0.000000e+00 : f32
    %521 = vector.broadcast %cst_205 : f32 to vector<1x128xf32>
    %522 = arith.maximumf %512, %521 : vector<1x128xf32>
    %523 = arith.mulf %512, %516 : vector<1x128xf32>
    %524 = arith.subf %522, %523 : vector<1x128xf32>
    %cst_206 = arith.constant 1.000000e+00 : f32
    %525 = vector.broadcast %cst_206 : f32 to vector<1x128xf32>
    %526 = arith.addf %525, %520 : vector<1x128xf32>
    %527 = math.log %526 : vector<1x128xf32>
    %528 = arith.addf %524, %527 : vector<1x128xf32>
    %cst_207 = arith.constant 1.000000e+00 : f32
    %529 = vector.broadcast %cst_207 : f32 to vector<1x128xf32>
    %530 = arith.addf %529, %520 : vector<1x128xf32>
    %531 = tpu.reciprocal %530 {approx = true} : vector<1x128xf32> -> vector<1x128xf32>
    %cst_208 = arith.constant 0.000000e+00 : f32
    %532 = vector.broadcast %cst_208 : f32 to vector<1x128xf32>
    %533 = arith.cmpf oge, %512, %532 : vector<1x128xf32>
    %534 = arith.mulf %520, %531 : vector<1x128xf32>
    %535 = arith.select %533, %531, %534 : vector<1x128xi1>, vector<1x128xf32>
    %536 = arith.mulf %528, %8 : vector<1x128xf32>
    %cst_209 = arith.constant dense<0.000000e+00> : vector<1xf32>
    %537 = vector.multi_reduction <add>, %536, %cst_209 [1] : vector<1x128xf32> to vector<1xf32>
    %538 = vector.shape_cast %537 : vector<1xf32> to vector<1x1xf32>
    %539 = arith.mulf %535, %516 : vector<1x128xf32>
    %540 = arith.mulf %539, %8 : vector<1x128xf32>
    %cst_210 = arith.constant dense<0.000000e+00> : vector<1xf32>
    %541 = vector.multi_reduction <add>, %540, %cst_210 [1] : vector<1x128xf32> to vector<1xf32>
    %542 = vector.shape_cast %541 : vector<1xf32> to vector<1x1xf32>
    %543 = arith.mulf %535, %8 : vector<1x128xf32>
    %cst_211 = arith.constant dense<0.000000e+00> : vector<1xf32>
    %544 = vector.multi_reduction <add>, %543, %cst_211 [1] : vector<1x128xf32> to vector<1xf32>
    %545 = vector.shape_cast %544 : vector<1xf32> to vector<1x1xf32>
    %546 = arith.mulf %516, %8 : vector<1x128xf32>
    %cst_212 = arith.constant dense<0.000000e+00> : vector<1xf32>
    %547 = vector.multi_reduction <add>, %546, %cst_212 [1] : vector<1x128xf32> to vector<1xf32>
    %548 = vector.shape_cast %547 : vector<1xf32> to vector<1x1xf32>
    %c0_213 = arith.constant 0 : index
    %c0_214 = arith.constant 0 : index
    %549 = vector.load %arg10[%c0_213, %c0_214] : memref<8x1xf32, #tpu.memory_space<vmem>>, vector<8x1xf32>
    %550 = tpu.concatenate %69, %136, %203, %270, %337, %404, %471, %538 in 0 : vector<1x1xf32>, vector<1x1xf32>, vector<1x1xf32>, vector<1x1xf32>, vector<1x1xf32>, vector<1x1xf32>, vector<1x1xf32>, vector<1x1xf32> -> vector<8x1xf32>
    %551 = arith.addf %549, %550 : vector<8x1xf32>
    %c0_215 = arith.constant 0 : index
    %c0_216 = arith.constant 0 : index
    %552 = vector.load %arg10[%c0_215, %c0_216] : memref<8x1xf32, #tpu.memory_space<vmem>>, vector<8x1xf32>
    tpu.vector_store %arg10[%c0_215, %c0_216], %551 {strides = array<i32>} : memref<8x1xf32, #tpu.memory_space<vmem>>, vector<8x1xf32>,
    %c0_217 = arith.constant 0 : index
    %c0_218 = arith.constant 0 : index
    %553 = vector.load %arg11[%c0_217, %c0_218] : memref<8x1xf32, #tpu.memory_space<vmem>>, vector<8x1xf32>
    %554 = tpu.concatenate %73, %140, %207, %274, %341, %408, %475, %542 in 0 : vector<1x1xf32>, vector<1x1xf32>, vector<1x1xf32>, vector<1x1xf32>, vector<1x1xf32>, vector<1x1xf32>, vector<1x1xf32>, vector<1x1xf32> -> vector<8x1xf32>
    %555 = arith.addf %553, %554 : vector<8x1xf32>
    %c0_219 = arith.constant 0 : index
    %c0_220 = arith.constant 0 : index
    %556 = vector.load %arg11[%c0_219, %c0_220] : memref<8x1xf32, #tpu.memory_space<vmem>>, vector<8x1xf32>
    tpu.vector_store %arg11[%c0_219, %c0_220], %555 {strides = array<i32>} : memref<8x1xf32, #tpu.memory_space<vmem>>, vector<8x1xf32>,
    %c0_221 = arith.constant 0 : index
    %c0_222 = arith.constant 0 : index
    %557 = vector.load %arg12[%c0_221, %c0_222] : memref<8x1xf32, #tpu.memory_space<vmem>>, vector<8x1xf32>
    %558 = tpu.concatenate %76, %143, %210, %277, %344, %411, %478, %545 in 0 : vector<1x1xf32>, vector<1x1xf32>, vector<1x1xf32>, vector<1x1xf32>, vector<1x1xf32>, vector<1x1xf32>, vector<1x1xf32>, vector<1x1xf32> -> vector<8x1xf32>
    %559 = arith.addf %557, %558 : vector<8x1xf32>
    %c0_223 = arith.constant 0 : index
    %c0_224 = arith.constant 0 : index
    %560 = vector.load %arg12[%c0_223, %c0_224] : memref<8x1xf32, #tpu.memory_space<vmem>>, vector<8x1xf32>
    tpu.vector_store %arg12[%c0_223, %c0_224], %559 {strides = array<i32>} : memref<8x1xf32, #tpu.memory_space<vmem>>, vector<8x1xf32>,
    %c0_225 = arith.constant 0 : index
    %c0_226 = arith.constant 0 : index
    %561 = vector.load %arg13[%c0_225, %c0_226] : memref<8x1xf32, #tpu.memory_space<vmem>>, vector<8x1xf32>
    %562 = tpu.concatenate %79, %146, %213, %280, %347, %414, %481, %548 in 0 : vector<1x1xf32>, vector<1x1xf32>, vector<1x1xf32>, vector<1x1xf32>, vector<1x1xf32>, vector<1x1xf32>, vector<1x1xf32>, vector<1x1xf32> -> vector<8x1xf32>
    %563 = arith.addf %561, %562 : vector<8x1xf32>
    %c0_227 = arith.constant 0 : index
    %c0_228 = arith.constant 0 : index
    %564 = vector.load %arg13[%c0_227, %c0_228] : memref<8x1xf32, #tpu.memory_space<vmem>>, vector<8x1xf32>
    tpu.vector_store %arg13[%c0_227, %c0_228], %563 {strides = array<i32>} : memref<8x1xf32, #tpu.memory_space<vmem>>, vector<8x1xf32>,
    %c0_i32_229 = arith.constant 0 : i32
    %565 = arith.cmpi eq, %arg1, %c0_i32_229 : i32
    %566 = arith.extui %565 : i1 to i32
    %c0_i32_230 = arith.constant 0 : i32
    %567 = arith.cmpi ne, %566, %c0_i32_230 : i32
    scf.if %567 {
      %c0_234 = arith.constant 0 : index
      %c0_235 = arith.constant 0 : index
      %573 = vector.load %arg5[%c0_234, %c0_235] : memref<8x1xf32, #tpu.memory_space<vmem>>, vector<8x1xf32>
      %c0_236 = arith.constant 0 : index
      %c0_237 = arith.constant 0 : index
      %574 = vector.load %arg10[%c0_236, %c0_237] : memref<8x1xf32, #tpu.memory_space<vmem>>, vector<8x1xf32>
      %cst_238 = arith.constant 6.250000e-02 : f32
      %575 = vector.broadcast %cst_238 : f32 to vector<8x1xf32>
      %576 = arith.mulf %574, %575 : vector<8x1xf32>
      %c0_239 = arith.constant 0 : index
      %c0_240 = arith.constant 0 : index
      %577 = vector.load %arg11[%c0_239, %c0_240] : memref<8x1xf32, #tpu.memory_space<vmem>>, vector<8x1xf32>
      %cst_241 = arith.constant 2.000000e+00 : f32
      %578 = vector.broadcast %cst_241 : f32 to vector<8x1xf32>
      %579 = arith.mulf %578, %577 : vector<8x1xf32>
      %cst_242 = arith.constant 1.000000e+00 : f32
      %580 = vector.broadcast %cst_242 : f32 to vector<8x1xf32>
      %581 = arith.addf %579, %580 : vector<8x1xf32>
      %c0_243 = arith.constant 0 : index
      %c0_244 = arith.constant 0 : index
      %582 = vector.load %arg12[%c0_243, %c0_244] : memref<8x1xf32, #tpu.memory_space<vmem>>, vector<8x1xf32>
      %c0_245 = arith.constant 0 : index
      %c0_246 = arith.constant 0 : index
      %583 = vector.load %arg13[%c0_245, %c0_246] : memref<8x1xf32, #tpu.memory_space<vmem>>, vector<8x1xf32>
      %584 = arith.addf %582, %583 : vector<8x1xf32>
      %cst_247 = arith.constant 1.000000e+00 : f32
      %585 = vector.broadcast %cst_247 : f32 to vector<8x1xf32>
      %586 = arith.addf %584, %585 : vector<8x1xf32>
      %587 = arith.divf %581, %586 : vector<8x1xf32>
      %cst_248 = arith.constant 1.000000e+00 : f32
      %588 = vector.broadcast %cst_248 : f32 to vector<8x1xf32>
      %589 = arith.subf %588, %587 : vector<8x1xf32>
      %c0_249 = arith.constant 0 : index
      %c0_250 = arith.constant 0 : index
      %590 = vector.load %arg14[%c0_249, %c0_250] : memref<1x1xf32, #tpu.memory_space<vmem>>, vector<1x1xf32>
      %591 = arith.mulf %576, %573 : vector<8x1xf32>
      %592 = vector.shape_cast %591 : vector<8x1xf32> to vector<1x8x1xf32>
      %cst_251 = arith.constant dense<0.000000e+00> : vector<1xf32>
      %593 = vector.multi_reduction <add>, %592, %cst_251 [1, 2] : vector<1x8x1xf32> to vector<1xf32>
      %594 = vector.shape_cast %593 : vector<1xf32> to vector<1x1x1xf32>
      %595 = vector.extract %594[0, 0, 0] : f32 from vector<1x1x1xf32>
      %596 = vector.broadcast %595 : f32 to vector<1x1xf32>
      %597 = arith.addf %590, %596 : vector<1x1xf32>
      %c0_252 = arith.constant 0 : index
      %c0_253 = arith.constant 0 : index
      %598 = vector.load %arg14[%c0_252, %c0_253] : memref<1x1xf32, #tpu.memory_space<vmem>>, vector<1x1xf32>
      tpu.vector_store %arg14[%c0_252, %c0_253], %597 {strides = array<i32>} : memref<1x1xf32, #tpu.memory_space<vmem>>, vector<1x1xf32>,
      %c0_254 = arith.constant 0 : index
      %c0_255 = arith.constant 0 : index
      %599 = vector.load %arg15[%c0_254, %c0_255] : memref<1x1xf32, #tpu.memory_space<vmem>>, vector<1x1xf32>
      %600 = arith.mulf %589, %573 : vector<8x1xf32>
      %601 = vector.shape_cast %600 : vector<8x1xf32> to vector<1x8x1xf32>
      %cst_256 = arith.constant dense<0.000000e+00> : vector<1xf32>
      %602 = vector.multi_reduction <add>, %601, %cst_256 [1, 2] : vector<1x8x1xf32> to vector<1xf32>
      %603 = vector.shape_cast %602 : vector<1xf32> to vector<1x1x1xf32>
      %604 = vector.extract %603[0, 0, 0] : f32 from vector<1x1x1xf32>
      %605 = vector.broadcast %604 : f32 to vector<1x1xf32>
      %606 = arith.addf %599, %605 : vector<1x1xf32>
      %c0_257 = arith.constant 0 : index
      %c0_258 = arith.constant 0 : index
      %607 = vector.load %arg15[%c0_257, %c0_258] : memref<1x1xf32, #tpu.memory_space<vmem>>, vector<1x1xf32>
      tpu.vector_store %arg15[%c0_257, %c0_258], %606 {strides = array<i32>} : memref<1x1xf32, #tpu.memory_space<vmem>>, vector<1x1xf32>,
    } else {
    }
    %c0_i32_231 = arith.constant 0 : i32
    %568 = arith.cmpi eq, %arg0, %c0_i32_231 : i32
    %c0_i32_232 = arith.constant 0 : i32
    %569 = arith.cmpi eq, %arg1, %c0_i32_232 : i32
    %570 = arith.andi %568, %569 : i1
    %571 = arith.extui %570 : i1 to i32
    %c0_i32_233 = arith.constant 0 : i32
    %572 = arith.cmpi ne, %571, %c0_i32_233 : i32
    scf.if %572 {
      %c0_234 = arith.constant 0 : index
      %c0_235 = arith.constant 0 : index
      %573 = memref.load %arg7[%c0_234, %c0_235] : memref<1x1xf32, #tpu.memory_space<smem>>
      %c0_236 = arith.constant 0 : index
      %c0_237 = arith.constant 0 : index
      %574 = vector.load %arg14[%c0_236, %c0_237] : memref<1x1xf32, #tpu.memory_space<vmem>>, vector<1x1xf32>
      %575 = vector.broadcast %573 : f32 to vector<1x1xf32>
      %576 = arith.divf %574, %575 : vector<1x1xf32>
      %577 = vector.extract %576[0, 0] : f32 from vector<1x1xf32>
      %c0_238 = arith.constant 0 : index
      %c0_239 = arith.constant 0 : index
      %578 = memref.load %arg8[%c0_238, %c0_239] : memref<1x1xf32, #tpu.memory_space<smem>>
      memref.store %577, %arg8[%c0_238, %c0_239] : memref<1x1xf32, #tpu.memory_space<smem>>
      %c0_240 = arith.constant 0 : index
      %c0_241 = arith.constant 0 : index
      %579 = vector.load %arg15[%c0_240, %c0_241] : memref<1x1xf32, #tpu.memory_space<vmem>>, vector<1x1xf32>
      %580 = vector.broadcast %573 : f32 to vector<1x1xf32>
      %581 = arith.divf %579, %580 : vector<1x1xf32>
      %582 = vector.extract %581[0, 0] : f32 from vector<1x1xf32>
      %c0_242 = arith.constant 0 : index
      %c0_243 = arith.constant 0 : index
      %583 = memref.load %arg9[%c0_242, %c0_243] : memref<1x1xf32, #tpu.memory_space<smem>>
      memref.store %582, %arg9[%c0_242, %c0_243] : memref<1x1xf32, #tpu.memory_space<smem>>
    } else {
    }
    return
  }
  func.func @transform_0(%arg0: i32, %arg1: i32) -> (i32, i32, i32) {
    %c0_i32 = arith.constant 0 : i32
    %c0_i32_0 = arith.constant 0 : i32
    %c0_i32_1 = arith.constant 0 : i32
    return %arg0, %c0_i32, %c0_i32_0 : i32, i32, i32
  }
  func.func @transform_1(%arg0: i32, %arg1: i32) -> (i32, i32) {
    %c0_i32 = arith.constant 0 : i32
    return %arg0, %arg1 : i32, i32
  }
  func.func @transform_2(%arg0: i32, %arg1: i32) -> (i32, i32) {
    %c0_i32 = arith.constant 0 : i32
    return %arg0, %arg1 : i32, i32
  }
  func.func @transform_3(%arg0: i32, %arg1: i32) -> (i32, i32) {
    %c0_i32 = arith.constant 0 : i32
    %c0_i32_0 = arith.constant 0 : i32
    return %arg0, %c0_i32 : i32, i32
  }
  func.func @transform_4(%arg0: i32, %arg1: i32) -> (i32, i32) {
    %c0_i32 = arith.constant 0 : i32
    %c0_i32_0 = arith.constant 0 : i32
    return %c0_i32, %arg1 : i32, i32
  }
  func.func @transform_5(%arg0: i32, %arg1: i32) -> (i32, i32) {
    %c0_i32 = arith.constant 0 : i32
    %c0_i32_0 = arith.constant 0 : i32
    %c0_i32_1 = arith.constant 0 : i32
    return %c0_i32, %c0_i32_0 : i32, i32
  }
  func.func @transform_6(%arg0: i32, %arg1: i32) -> (i32, i32) {
    %c0_i32 = arith.constant 0 : i32
    %c0_i32_0 = arith.constant 0 : i32
    %c0_i32_1 = arith.constant 0 : i32
    return %c0_i32, %c0_i32_0 : i32, i32
  }
  func.func @transform_7(%arg0: i32, %arg1: i32) -> (i32, i32) {
    %c0_i32 = arith.constant 0 : i32
    %c0_i32_0 = arith.constant 0 : i32
    %c0_i32_1 = arith.constant 0 : i32
    return %c0_i32, %c0_i32_0 : i32, i32
  }
}

module attributes {stable_mosaic.version = 11 : i64} {
  func.func @_ce_kernel(%arg0: i32, %arg1: memref<8x128xf32, #tpu.memory_space<vmem>>, %arg2: memref<1x128xi32, #tpu.memory_space<vmem>>, %arg3: memref<1x128xf32, #tpu.memory_space<vmem>>, %arg4: memref<8x1xf32, #tpu.memory_space<vmem>>, %arg5: memref<1x1xf32, #tpu.memory_space<smem>>, %arg6: memref<1x1xf32, #tpu.memory_space<vmem>>, %arg7: memref<1x1xf32, #tpu.memory_space<vmem>>) attributes {dimension_semantics = [#tpu.dimension_semantics<arbitrary>], iteration_bounds = array<i64: 1>, scalar_prefetch = 0 : i64, scratch_operands = 2 : i64, tpu.core_type = #tpu.core_type<tc>, window_params = [{transform_indices = @transform_0, window_bounds = array<i64: 8, 128>}, {transform_indices = @transform_1, window_bounds = array<i64: 1, 128>}, {transform_indices = @transform_2, window_bounds = array<i64: 1, 128>}, {pipeline_mode = #tpu.pipeline_mode<synchronous>, transform_indices = @transform_3, window_bounds = array<i64: 8, 1>}, {transform_indices = @transform_4, window_bounds = array<i64: 1, 1>}]} {
    %c0_i32 = arith.constant 0 : i32
    %0 = arith.cmpi eq, %arg0, %c0_i32 : i32
    %1 = arith.extui %0 : i1 to i32
    %c0_i32_0 = arith.constant 0 : i32
    %2 = arith.cmpi ne, %1, %c0_i32_0 : i32
    scf.if %2 {
      %cst_23 = arith.constant 0.000000e+00 : f32
      %50 = vector.broadcast %cst_23 : f32 to vector<1x1xf32>
      %c0_24 = arith.constant 0 : index
      %c0_25 = arith.constant 0 : index
      %51 = vector.load %arg6[%c0_24, %c0_25] : memref<1x1xf32, #tpu.memory_space<vmem>>, vector<1x1xf32>
      tpu.vector_store %arg6[%c0_24, %c0_25], %50 {strides = array<i32>} : memref<1x1xf32, #tpu.memory_space<vmem>>, vector<1x1xf32>,
      %cst_26 = arith.constant 0.000000e+00 : f32
      %52 = vector.broadcast %cst_26 : f32 to vector<1x1xf32>
      %c0_27 = arith.constant 0 : index
      %c0_28 = arith.constant 0 : index
      %53 = vector.load %arg7[%c0_27, %c0_28] : memref<1x1xf32, #tpu.memory_space<vmem>>, vector<1x1xf32>
      tpu.vector_store %arg7[%c0_27, %c0_28], %52 {strides = array<i32>} : memref<1x1xf32, #tpu.memory_space<vmem>>, vector<1x1xf32>,
    } else {
    }
    %c0 = arith.constant 0 : index
    %c0_1 = arith.constant 0 : index
    %3 = vector.load %arg1[%c0, %c0_1] : memref<8x128xf32, #tpu.memory_space<vmem>>, vector<8x128xf32>
    %c0_2 = arith.constant 0 : index
    %c0_3 = arith.constant 0 : index
    %4 = vector.load %arg2[%c0_2, %c0_3] : memref<1x128xi32, #tpu.memory_space<vmem>>, vector<1x128xi32>
    %c0_4 = arith.constant 0 : index
    %c0_5 = arith.constant 0 : index
    %5 = vector.load %arg3[%c0_4, %c0_5] : memref<1x128xf32, #tpu.memory_space<vmem>>, vector<1x128xf32>
    %c0_6 = arith.constant 0 : index
    %c0_7 = arith.constant 0 : index
    %6 = vector.load %arg4[%c0_6, %c0_7] : memref<8x1xf32, #tpu.memory_space<vmem>>, vector<8x1xf32>
    %7 = tpu.iota {dimensions = array<i32: 0>} : vector<8x128xi32>
    %8 = vector.broadcast %4 : vector<1x128xi32> to vector<8x128xi32>
    %9 = arith.cmpi eq, %7, %8 : vector<8x128xi32>
    %10 = arith.extui %9 : vector<8x128xi1> to vector<8x128xi32>
    %11 = arith.sitofp %10 : vector<8x128xi32> to vector<8x128xf32>
    %cst = arith.constant dense<0xFF800000> : vector<128xf32>
    %12 = vector.multi_reduction <maximumf>, %3, %cst [0] : vector<8x128xf32> to vector<128xf32>
    %13 = vector.shape_cast %12 : vector<128xf32> to vector<1x128xf32>
    %14 = vector.broadcast %13 : vector<1x128xf32> to vector<8x128xf32>
    %15 = arith.subf %3, %14 : vector<8x128xf32>
    %16 = math.exp %15 : vector<8x128xf32>
    %cst_8 = arith.constant dense<0.000000e+00> : vector<128xf32>
    %17 = vector.multi_reduction <add>, %16, %cst_8 [0] : vector<8x128xf32> to vector<128xf32>
    %18 = vector.shape_cast %17 : vector<128xf32> to vector<1x128xf32>
    %19 = math.log %18 : vector<1x128xf32>
    %20 = arith.addf %13, %19 : vector<1x128xf32>
    %21 = arith.mulf %3, %11 : vector<8x128xf32>
    %cst_9 = arith.constant dense<0.000000e+00> : vector<128xf32>
    %22 = vector.multi_reduction <add>, %21, %cst_9 [0] : vector<8x128xf32> to vector<128xf32>
    %23 = vector.shape_cast %22 : vector<128xf32> to vector<1x128xf32>
    %24 = vector.broadcast %6 : vector<8x1xf32> to vector<8x128xf32>
    %25 = arith.mulf %24, %11 : vector<8x128xf32>
    %cst_10 = arith.constant dense<0.000000e+00> : vector<128xf32>
    %26 = vector.multi_reduction <add>, %25, %cst_10 [0] : vector<8x128xf32> to vector<128xf32>
    %27 = vector.shape_cast %26 : vector<128xf32> to vector<1x128xf32>
    %28 = arith.mulf %27, %5 : vector<1x128xf32>
    %c0_11 = arith.constant 0 : index
    %c0_12 = arith.constant 0 : index
    %29 = vector.load %arg6[%c0_11, %c0_12] : memref<1x1xf32, #tpu.memory_space<vmem>>, vector<1x1xf32>
    %30 = arith.subf %20, %23 : vector<1x128xf32>
    %31 = arith.mulf %28, %30 : vector<1x128xf32>
    %32 = vector.shape_cast %31 : vector<1x128xf32> to vector<1x1x128xf32>
    %cst_13 = arith.constant dense<0.000000e+00> : vector<1xf32>
    %33 = vector.multi_reduction <add>, %32, %cst_13 [1, 2] : vector<1x1x128xf32> to vector<1xf32>
    %34 = vector.shape_cast %33 : vector<1xf32> to vector<1x1x1xf32>
    %35 = vector.extract %34[0, 0, 0] : f32 from vector<1x1x1xf32>
    %36 = vector.broadcast %35 : f32 to vector<1x1xf32>
    %37 = arith.addf %29, %36 : vector<1x1xf32>
    %c0_14 = arith.constant 0 : index
    %c0_15 = arith.constant 0 : index
    %38 = vector.load %arg6[%c0_14, %c0_15] : memref<1x1xf32, #tpu.memory_space<vmem>>, vector<1x1xf32>
    tpu.vector_store %arg6[%c0_14, %c0_15], %37 {strides = array<i32>} : memref<1x1xf32, #tpu.memory_space<vmem>>, vector<1x1xf32>,
    %c0_16 = arith.constant 0 : index
    %c0_17 = arith.constant 0 : index
    %39 = vector.load %arg7[%c0_16, %c0_17] : memref<1x1xf32, #tpu.memory_space<vmem>>, vector<1x1xf32>
    %40 = vector.shape_cast %28 : vector<1x128xf32> to vector<1x1x128xf32>
    %cst_18 = arith.constant dense<0.000000e+00> : vector<1xf32>
    %41 = vector.multi_reduction <add>, %40, %cst_18 [1, 2] : vector<1x1x128xf32> to vector<1xf32>
    %42 = vector.shape_cast %41 : vector<1xf32> to vector<1x1x1xf32>
    %43 = vector.extract %42[0, 0, 0] : f32 from vector<1x1x1xf32>
    %44 = vector.broadcast %43 : f32 to vector<1x1xf32>
    %45 = arith.addf %39, %44 : vector<1x1xf32>
    %c0_19 = arith.constant 0 : index
    %c0_20 = arith.constant 0 : index
    %46 = vector.load %arg7[%c0_19, %c0_20] : memref<1x1xf32, #tpu.memory_space<vmem>>, vector<1x1xf32>
    tpu.vector_store %arg7[%c0_19, %c0_20], %45 {strides = array<i32>} : memref<1x1xf32, #tpu.memory_space<vmem>>, vector<1x1xf32>,
    %c0_i32_21 = arith.constant 0 : i32
    %47 = arith.cmpi eq, %arg0, %c0_i32_21 : i32
    %48 = arith.extui %47 : i1 to i32
    %c0_i32_22 = arith.constant 0 : i32
    %49 = arith.cmpi ne, %48, %c0_i32_22 : i32
    scf.if %49 {
      %c0_23 = arith.constant 0 : index
      %c0_24 = arith.constant 0 : index
      %50 = vector.load %arg6[%c0_23, %c0_24] : memref<1x1xf32, #tpu.memory_space<vmem>>, vector<1x1xf32>
      %c0_25 = arith.constant 0 : index
      %c0_26 = arith.constant 0 : index
      %51 = vector.load %arg7[%c0_25, %c0_26] : memref<1x1xf32, #tpu.memory_space<vmem>>, vector<1x1xf32>
      %52 = arith.divf %50, %51 : vector<1x1xf32>
      %53 = vector.extract %52[0, 0] : f32 from vector<1x1xf32>
      %c0_27 = arith.constant 0 : index
      %c0_28 = arith.constant 0 : index
      %54 = memref.load %arg5[%c0_27, %c0_28] : memref<1x1xf32, #tpu.memory_space<smem>>
      memref.store %53, %arg5[%c0_27, %c0_28] : memref<1x1xf32, #tpu.memory_space<smem>>
    } else {
    }
    return
  }
  func.func @transform_0(%arg0: i32) -> (i32, i32) {
    %c0_i32 = arith.constant 0 : i32
    %c0_i32_0 = arith.constant 0 : i32
    return %c0_i32, %arg0 : i32, i32
  }
  func.func @transform_1(%arg0: i32) -> (i32, i32) {
    %c0_i32 = arith.constant 0 : i32
    %c0_i32_0 = arith.constant 0 : i32
    return %c0_i32, %arg0 : i32, i32
  }
  func.func @transform_2(%arg0: i32) -> (i32, i32) {
    %c0_i32 = arith.constant 0 : i32
    %c0_i32_0 = arith.constant 0 : i32
    return %c0_i32, %arg0 : i32, i32
  }
  func.func @transform_3(%arg0: i32) -> (i32, i32) {
    %c0_i32 = arith.constant 0 : i32
    %c0_i32_0 = arith.constant 0 : i32
    %c0_i32_1 = arith.constant 0 : i32
    return %c0_i32, %c0_i32_0 : i32, i32
  }
  func.func @transform_4(%arg0: i32) -> (i32, i32) {
    %c0_i32 = arith.constant 0 : i32
    %c0_i32_0 = arith.constant 0 : i32
    %c0_i32_1 = arith.constant 0 : i32
    return %c0_i32, %c0_i32_0 : i32, i32
  }
}

</mosaic_0001>

<llo_original>
// kernel: _device_losses.4
$region0: #{_device_losses.4}
  #allocation0 [shape = 'u32[]', space=smem, size = 0x4, offset = 0x4, fixed_abs, tag = 'smem constant byte address 0x4 - core index']
  #allocation1 [shape = 'u32[144,128]{1,0:T(1,128)}', space=vmem, size = 0x12000, scoped, tag = 'internal scratch']
  %s0 = inlined_call_operand.vmem [shape: f32[8,16,16], index: 0, kind: input, shape index: {}]
  %s1 = inlined_call_operand.vmem [shape: f32[8,128], index: 1, kind: input, shape index: {}]
  %s2 = inlined_call_operand.vmem [shape: f32[8,128], index: 2, kind: input, shape index: {}]
  %s3 = inlined_call_operand.vmem [shape: f32[8,128], index: 3, kind: output, shape index: {}]
  %s4 = sld [smem:[#allocation0]]
  $region22: #{_device_losses.4} parent=0
    _
  %s6 = ssub.s32 1, %s4
  %s7 = scalar_select 0, %s6, %s4
  // Predicated region
  $region2: #{_device_losses.4} parent=0 // pred_check
    _
  $region3: #{_device_losses.4} parent=0 // pred_check_branch
    %9 = sbr.rel (0) target = $region5
  $region4: #{_device_losses.4} parent=0 // pred_region
    _
  $region5: #{_device_losses.4} parent=0 // pred_fallthru
    _
  // Predicated region
  $region6: #{_device_losses.4} parent=0 // pred_check
    _
  $region7: #{_device_losses.4} parent=0 // pred_check_branch
    %11 = sbr.rel (0) target = $region9
  $region8: #{_device_losses.4} parent=0 // pred_region
    _
  $region9: #{_device_losses.4} parent=0 // pred_fallthru
    _
  // Predicated region
  $region10: #{_device_losses.4} parent=0 // pred_check
    _
  $region11: #{_device_losses.4} parent=0 // pred_check_branch
    %13 = sbr.rel (0) target = $region13
  $region12: #{_device_losses.4} parent=0 // pred_region
    _
  $region13: #{_device_losses.4} parent=0 // pred_fallthru
    _
  %v14 = vlaneseq
  %v15 = vshrl.u32 %v14, 7
  %v16 = vadd.s32 %v15, 8
  %v17 = vcvt.s32.f32 %v15
  %v18 = vcvt.s32.f32 %v16
  %v19 = vld [vmem:[%s1] sm:$0x1]
  %v20 = vmul.f32 %v19, 16.0
  %v21 = vsub.f32 %v20, 0.5
  %v22 = vld [vmem:[%s2] sm:$0x1]
  %v23 = vmul.f32 %v22, 16.0
  %v24 = vsub.f32 %v23, 0.5
  %v25 = vlaneseq
  %v26 = vshrl.u32 %v25, 7
  %v27 = vsub.s32 0, %v26
  %v28 = vrot.slane %v21, %v27
  %v29 = vsub.f32 %v17, %v28
  %v30 = vsub.f32 %v18, %v28
  %v31 = vand.u32 2147483647, %v29
  %v32 = vand.u32 2147483647, %v30
  %v33 = vsub.f32 1.0, %v31
  %v34 = vsub.f32 1.0, %v32
  %v35 = vmax.f32 %v33, 0.0
  %v36 = vmax.f32 %v34, 0.0
  %v37 = vlaneseq
  %v38 = vshrl.u32 %v37, 7
  %v39 = vsub.s32 0, %v38
  %v40 = vrot.slane %v24, %v39
  %v41 = vsub.f32 %v17, %v40
  %v42 = vsub.f32 %v18, %v40
  %v43 = vand.u32 2147483647, %v41
  %v44 = vand.u32 2147483647, %v42
  %v45 = vsub.f32 1.0, %v43
  %v46 = vsub.f32 1.0, %v44
  %v47 = vmax.f32 %v45, 0.0
  %v48 = vmax.f32 %v46, 0.0
  %v49 = vld [vmem:[%s0] sm:$0xff]
  %v50 = vld [vmem:[%s0 + $0x8] sm:$0xff]
  %vm51 = vcmask 130048
  %v53 = vsel %vm51, %v49, 0
  %v56 = vsel %vm51, %v50, 0
  %58 = vmatprep.subr.mxu0 0.0
  %59 = vmatpush1.msra.mxu0 %v35
  %60 = vmatprep.subr.mxu0 0.0
  %61 = vmatpush1.msra.mxu0 %v36
  %62 = vmatprep.subr.mxu0 0.0
  %63 = vmatpush1.msra.mxu0 0.0
  %64 = vmatprep.subr.mxu0 0.0
  %65 = vmatpush1.msra.mxu0 0.0
  %66 = vmatprep.subr.mxu0 0.0
  %67 = vmatpush1.msra.mxu0 0.0
  %68 = vmatprep.subr.mxu0 0.0
  %69 = vmatpush1.msra.mxu0 0.0
  %70 = vmatprep.subr.mxu0 0.0
  %71 = vmatpush1.msra.mxu0 0.0
  %72 = vmatprep.subr.mxu0 0.0
  %73 = vmatpush1.msra.mxu0 0.0
  %74 = vmatprep.subr.mxu0 0.0
  %75 = vmatpush1.msra.mxu0 0.0
  %76 = vmatprep.subr.mxu0 0.0
  %77 = vmatpush1.msra.mxu0 0.0
  %78 = vmatprep.subr.mxu0 0.0
  %79 = vmatpush1.msra.mxu0 0.0
  %80 = vmatprep.subr.mxu0 0.0
  %81 = vmatpush1.msra.mxu0 0.0
  %82 = vmatprep.subr.mxu0 0.0
  %83 = vmatpush1.msra.mxu0 0.0
  %84 = vmatprep.subr.mxu0 0.0
  %85 = vmatpush1.msra.mxu0 0.0
  %86 = vmatprep.subr.mxu0 0.0
  %87 = vmatpush1.msra.mxu0 0.0
  %88 = vmatprep.subr.mxu0 0.0
  %89 = vmatpush1.msra.mxu0 0.0
  %90 = vmatprep.subr.mxu0 0.0
  %91 = vmatpush1.msra.mxu0 0.0
  %92 = vmatprep.subr.mxu0 0.0
  %93 = vmatpush1.msra.mxu0 0.0
  %94 = vmatprep.subr.mxu0 0.0
  %95 = vmatpush1.msra.mxu0 0.0
  %96 = vmatprep.subr.mxu0 0.0
  %97 = vmatpush1.msra.mxu0 0.0
  %98 = vmatprep.subr.mxu0 0.0
  %99 = vmatpush1.msra.mxu0 0.0
  %100 = vmatprep.subr.mxu0 0.0
  %101 = vmatpush1.msra.mxu0 0.0
  %102 = vmatprep.subr.mxu0 0.0
  %103 = vmatpush1.msra.mxu0 0.0
  %104 = vmatprep.subr.mxu0 0.0
  %105 = vmatpush1.msra.mxu0 0.0
  %106 = vmatprep.subr.mxu0 0.0
  %107 = vmatpush1.msra.mxu0 0.0
  %108 = vmatprep.subr.mxu0 0.0
  %109 = vmatpush1.msra.mxu0 0.0
  %110 = vmatprep.subr.mxu0 0.0
  %111 = vmatpush1.msra.mxu0 0.0
  %112 = vmatprep.subr.mxu0 0.0
  %113 = vmatpush1.msra.mxu0 0.0
  %114 = vmatprep.subr.mxu0 0.0
  %115 = vmatpush1.msra.mxu0 0.0
  %116 = vmatprep.subr.mxu0 0.0
  %117 = vmatpush1.msra.mxu0 0.0
  %118 = vmatprep.subr.mxu0 0.0
  %119 = vmatpush1.msra.mxu0 0.0
  %120 = vmatprep.subr.mxu0 0.0
  %121 = vmatpush1.msra.mxu0 0.0
  %122 = vmatprep.mubr.f32.mxu0 0.0
  %123 = vmatmul.mubr.f32.gmra.mrb[0].mxu0 %v53
  %v124 = vpop.f32.mrb[0].mxu0
  %v125 = vadd.f32 0.0, %v124
  %v126 = vpop.f32.mrb[0].mxu0
  %127 = vmatprep.mubr.f32.mxu0 0.0
  %128 = vmatmul.mubr.f32.gmra.mrb[0].mxu0 %v56
  %v129 = vpop.f32.mrb[0].mxu0
  %v130 = vadd.f32 0.0, %v129
  %v131 = vpop.f32.mrb[0].mxu0
  %132 = vdwg.mxu0
  %v133 = vmul.f32 %v125, %v47
  %v134 = vmul.f32 %v130, %v48
  %v135 = vadd.f32 %v133, %v134
  %v136 = vrot.slane %v135, 4
  %v137 = vadd.f32 %v135, %v136
  %v138 = vrot.slane %v137, 2
  %v139 = vadd.f32 %v137, %v138
  %v140 = vrot.slane %v139, 1
  %v141 = vadd.f32 %v139, %v140
  %v142 = vld [vmem:[%s1 + $0x1] sm:$0x1]
  %v143 = vmul.f32 %v142, 16.0
  %v144 = vsub.f32 %v143, 0.5
  %v145 = vld [vmem:[%s2 + $0x1] sm:$0x1]
  %v146 = vmul.f32 %v145, 16.0
  %v147 = vsub.f32 %v146, 0.5
  %v148 = vlaneseq
  %v149 = vshrl.u32 %v148, 7
  %v150 = vsub.s32 0, %v149
  %v151 = vrot.slane %v144, %v150
  %v152 = vsub.f32 %v17, %v151
  %v153 = vsub.f32 %v18, %v151
  %v154 = vand.u32 2147483647, %v152
  %v155 = vand.u32 2147483647, %v153
  %v156 = vsub.f32 1.0, %v154
  %v157 = vsub.f32 1.0, %v155
  %v158 = vmax.f32 %v156, 0.0
  %v159 = vmax.f32 %v157, 0.0
  %v160 = vlaneseq
  %v161 = vshrl.u32 %v160, 7
  %v162 = vsub.s32 0, %v161
  %v163 = vrot.slane %v147, %v162
  %v164 = vsub.f32 %v17, %v163
  %v165 = vsub.f32 %v18, %v163
  %v166 = vand.u32 2147483647, %v164
  %v167 = vand.u32 2147483647, %v165
  %v168 = vsub.f32 1.0, %v166
  %v169 = vsub.f32 1.0, %v167
  %v170 = vmax.f32 %v168, 0.0
  %v171 = vmax.f32 %v169, 0.0
  %s172 = scalar_lea.vmem %s0, 16
  %v173 = vld [vmem:[%s172] sm:$0xff]
  %v174 = vld [vmem:[%s172 + $0x8] sm:$0xff]
  %v176 = vsel %vm51, %v173, 0
  %v179 = vsel %vm51, %v174, 0
  %181 = vmatprep.subr.mxu0 0.0
  %182 = vmatpush1.msra.mxu0 %v158
  %183 = vmatprep.subr.mxu0 0.0
  %184 = vmatpush1.msra.mxu0 %v159
  %185 = vmatprep.subr.mxu0 0.0
  %186 = vmatpush1.msra.mxu0 0.0
  %187 = vmatprep.subr.mxu0 0.0
  %188 = vmatpush1.msra.mxu0 0.0
  %189 = vmatprep.subr.mxu0 0.0
  %190 = vmatpush1.msra.mxu0 0.0
  %191 = vmatprep.subr.mxu0 0.0
  %192 = vmatpush1.msra.mxu0 0.0
  %193 = vmatprep.subr.mxu0 0.0
  %194 = vmatpush1.msra.mxu0 0.0
  %195 = vmatprep.subr.mxu0 0.0
  %196 = vmatpush1.msra.mxu0 0.0
  %197 = vmatprep.subr.mxu0 0.0
  %198 = vmatpush1.msra.mxu0 0.0
  %199 = vmatprep.subr.mxu0 0.0
  %200 = vmatpush1.msra.mxu0 0.0
  %201 = vmatprep.subr.mxu0 0.0
  %202 = vmatpush1.msra.mxu0 0.0
  %203 = vmatprep.subr.mxu0 0.0
  %204 = vmatpush1.msra.mxu0 0.0
  %205 = vmatprep.subr.mxu0 0.0
  %206 = vmatpush1.msra.mxu0 0.0
  %207 = vmatprep.subr.mxu0 0.0
  %208 = vmatpush1.msra.mxu0 0.0
  %209 = vmatprep.subr.mxu0 0.0
  %210 = vmatpush1.msra.mxu0 0.0
  %211 = vmatprep.subr.mxu0 0.0
  %212 = vmatpush1.msra.mxu0 0.0
  %213 = vmatprep.subr.mxu0 0.0
  %214 = vmatpush1.msra.mxu0 0.0
  %215 = vmatprep.subr.mxu0 0.0
  %216 = vmatpush1.msra.mxu0 0.0
  %217 = vmatprep.subr.mxu0 0.0
  %218 = vmatpush1.msra.mxu0 0.0
  %219 = vmatprep.subr.mxu0 0.0
  %220 = vmatpush1.msra.mxu0 0.0
  %221 = vmatprep.subr.mxu0 0.0
  %222 = vmatpush1.msra.mxu0 0.0
  %223 = vmatprep.subr.mxu0 0.0
  %224 = vmatpush1.msra.mxu0 0.0
  %225 = vmatprep.subr.mxu0 0.0
  %226 = vmatpush1.msra.mxu0 0.0
  %227 = vmatprep.subr.mxu0 0.0
  %228 = vmatpush1.msra.mxu0 0.0
  %229 = vmatprep.subr.mxu0 0.0
  %230 = vmatpush1.msra.mxu0 0.0
  %231 = vmatprep.subr.mxu0 0.0
  %232 = vmatpush1.msra.mxu0 0.0
  %233 = vmatprep.subr.mxu0 0.0
  %234 = vmatpush1.msra.mxu0 0.0
  %235 = vmatprep.subr.mxu0 0.0
  %236 = vmatpush1.msra.mxu0 0.0
  %237 = vmatprep.subr.mxu0 0.0
  %238 = vmatpush1.msra.mxu0 0.0
  %239 = vmatprep.subr.mxu0 0.0
  %240 = vmatpush1.msra.mxu0 0.0
  %241 = vmatprep.subr.mxu0 0.0
  %242 = vmatpush1.msra.mxu0 0.0
  %243 = vmatprep.subr.mxu0 0.0
  %244 = vmatpush1.msra.mxu0 0.0
  %245 = vmatprep.mubr.f32.mxu0 0.0
  %246 = vmatmul.mubr.f32.gmra.mrb[0].mxu0 %v176
  %v247 = vpop.f32.mrb[0].mxu0
  %v248 = vadd.f32 0.0, %v247
  %v249 = vpop.f32.mrb[0].mxu0
  %250 = vmatprep.mubr.f32.mxu0 0.0
  %251 = vmatmul.mubr.f32.gmra.mrb[0].mxu0 %v179
  %v252 = vpop.f32.mrb[0].mxu0
  %v253 = vadd.f32 0.0, %v252
  %v254 = vpop.f32.mrb[0].mxu0
  %255 = vdwg.mxu0
  %v256 = vmul.f32 %v248, %v170
  %v257 = vmul.f32 %v253, %v171
  %v258 = vadd.f32 %v256, %v257
  %v259 = vrot.slane %v258, 4
  %v260 = vadd.f32 %v258, %v259
  %v261 = vrot.slane %v260, 2
  %v262 = vadd.f32 %v260, %v261
  %v263 = vrot.slane %v262, 1
  %v264 = vadd.f32 %v262, %v263
  %v265 = vld [vmem:[%s1 + $0x2] sm:$0x1]
  %v266 = vmul.f32 %v265, 16.0
  %v267 = vsub.f32 %v266, 0.5
  %v268 = vld [vmem:[%s2 + $0x2] sm:$0x1]
  %v269 = vmul.f32 %v268, 16.0
  %v270 = vsub.f32 %v269, 0.5
  %v271 = vlaneseq
  %v272 = vshrl.u32 %v271, 7
  %v273 = vsub.s32 0, %v272
  %v274 = vrot.slane %v267, %v273
  %v275 = vsub.f32 %v17, %v274
  %v276 = vsub.f32 %v18, %v274
  %v277 = vand.u32 2147483647, %v275
  %v278 = vand.u32 2147483647, %v276
  %v279 = vsub.f32 1.0, %v277
  %v280 = vsub.f32 1.0, %v278
  %v281 = vmax.f32 %v279, 0.0
  %v282 = vmax.f32 %v280, 0.0
  %v283 = vlaneseq
  %v284 = vshrl.u32 %v283, 7
  %v285 = vsub.s32 0, %v284
  %v286 = vrot.slane %v270, %v285
  %v287 = vsub.f32 %v17, %v286
  %v288 = vsub.f32 %v18, %v286
  %v289 = vand.u32 2147483647, %v287
  %v290 = vand.u32 2147483647, %v288
  %v291 = vsub.f32 1.0, %v289
  %v292 = vsub.f32 1.0, %v290
  %v293 = vmax.f32 %v291, 0.0
  %v294 = vmax.f32 %v292, 0.0
  %s295 = scalar_lea.vmem %s0, 32
  %v296 = vld [vmem:[%s295] sm:$0xff]
  %v297 = vld [vmem:[%s295 + $0x8] sm:$0xff]
  %v299 = vsel %vm51, %v296, 0
  %v302 = vsel %vm51, %v297, 0
  %304 = vmatprep.subr.mxu0 0.0
  %305 = vmatpush1.msra.mxu0 %v281
  %306 = vmatprep.subr.mxu0 0.0
  %307 = vmatpush1.msra.mxu0 %v282
  %308 = vmatprep.subr.mxu0 0.0
  %309 = vmatpush1.msra.mxu0 0.0
  %310 = vmatprep.subr.mxu0 0.0
  %311 = vmatpush1.msra.mxu0 0.0
  %312 = vmatprep.subr.mxu0 0.0
  %313 = vmatpush1.msra.mxu0 0.0
  %314 = vmatprep.subr.mxu0 0.0
  %315 = vmatpush1.msra.mxu0 0.0
  %316 = vmatprep.subr.mxu0 0.0
  %317 = vmatpush1.msra.mxu0 0.0
  %318 = vmatprep.subr.mxu0 0.0
  %319 = vmatpush1.msra.mxu0 0.0
  %320 = vmatprep.subr.mxu0 0.0
  %321 = vmatpush1.msra.mxu0 0.0
  %322 = vmatprep.subr.mxu0 0.0
  %323 = vmatpush1.msra.mxu0 0.0
  %324 = vmatprep.subr.mxu0 0.0
  %325 = vmatpush1.msra.mxu0 0.0
  %326 = vmatprep.subr.mxu0 0.0
  %327 = vmatpush1.msra.mxu0 0.0
  %328 = vmatprep.subr.mxu0 0.0
  %329 = vmatpush1.msra.mxu0 0.0
  %330 = vmatprep.subr.mxu0 0.0
  %331 = vmatpush1.msra.mxu0 0.0
  %332 = vmatprep.subr.mxu0 0.0
  %333 = vmatpush1.msra.mxu0 0.0
  %334 = vmatprep.subr.mxu0 0.0
  %335 = vmatpush1.msra.mxu0 0.0
  %336 = vmatprep.subr.mxu0 0.0
  %337 = vmatpush1.msra.mxu0 0.0
  %338 = vmatprep.subr.mxu0 0.0
  %339 = vmatpush1.msra.mxu0 0.0
  %340 = vmatprep.subr.mxu0 0.0
  %341 = vmatpush1.msra.mxu0 0.0
  %342 = vmatprep.subr.mxu0 0.0
  %343 = vmatpush1.msra.mxu0 0.0
  %344 = vmatprep.subr.mxu0 0.0
  %345 = vmatpush1.msra.mxu0 0.0
  %346 = vmatprep.subr.mxu0 0.0
  %347 = vmatpush1.msra.mxu0 0.0
  %348 = vmatprep.subr.mxu0 0.0
  %349 = vmatpush1.msra.mxu0 0.0
  %350 = vmatprep.subr.mxu0 0.0
  %351 = vmatpush1.msra.mxu0 0.0
  %352 = vmatprep.subr.mxu0 0.0
  %353 = vmatpush1.msra.mxu0 0.0
  %354 = vmatprep.subr.mxu0 0.0
  %355 = vmatpush1.msra.mxu0 0.0
  %356 = vmatprep.subr.mxu0 0.0
  %357 = vmatpush1.msra.mxu0 0.0
  %358 = vmatprep.subr.mxu0 0.0
  %359 = vmatpush1.msra.mxu0 0.0
  %360 = vmatprep.subr.mxu0 0.0
  %361 = vmatpush1.msra.mxu0 0.0
  %362 = vmatprep.subr.mxu0 0.0
  %363 = vmatpush1.msra.mxu0 0.0
  %364 = vmatprep.subr.mxu0 0.0
  %365 = vmatpush1.msra.mxu0 0.0
  %366 = vmatprep.subr.mxu0 0.0
  %367 = vmatpush1.msra.mxu0 0.0
  %368 = vmatprep.mubr.f32.mxu0 0.0
  %369 = vmatmul.mubr.f32.gmra.mrb[0].mxu0 %v299
  %v370 = vpop.f32.mrb[0].mxu0
  %v371 = vadd.f32 0.0, %v370
  %v372 = vpop.f32.mrb[0].mxu0
  %373 = vmatprep.mubr.f32.mxu0 0.0
  %374 = vmatmul.mubr.f32.gmra.mrb[0].mxu0 %v302
  %v375 = vpop.f32.mrb[0].mxu0
  %v376 = vadd.f32 0.0, %v375
  %v377 = vpop.f32.mrb[0].mxu0
  %378 = vdwg.mxu0
  %v379 = vmul.f32 %v371, %v293
  %v380 = vmul.f32 %v376, %v294
  %v381 = vadd.f32 %v379, %v380
  %v382 = vrot.slane %v381, 4
  %v383 = vadd.f32 %v381, %v382
  %v384 = vrot.slane %v383, 2
  %v385 = vadd.f32 %v383, %v384
  %v386 = vrot.slane %v385, 1
  %v387 = vadd.f32 %v385, %v386
  %v388 = vld [vmem:[%s1 + $0x3] sm:$0x1]
  %v389 = vmul.f32 %v388, 16.0
  %v390 = vsub.f32 %v389, 0.5
  %v391 = vld [vmem:[%s2 + $0x3] sm:$0x1]
  %v392 = vmul.f32 %v391, 16.0
  %v393 = vsub.f32 %v392, 0.5
  %v394 = vlaneseq
  %v395 = vshrl.u32 %v394, 7
  %v396 = vsub.s32 0, %v395
  %v397 = vrot.slane %v390, %v396
  %v398 = vsub.f32 %v17, %v397
  %v399 = vsub.f32 %v18, %v397
  %v400 = vand.u32 2147483647, %v398
  %v401 = vand.u32 2147483647, %v399
  %v402 = vsub.f32 1.0, %v400
  %v403 = vsub.f32 1.0, %v401
  %v404 = vmax.f32 %v402, 0.0
  %v405 = vmax.f32 %v403, 0.0
  %v406 = vlaneseq
  %v407 = vshrl.u32 %v406, 7
  %v408 = vsub.s32 0, %v407
  %v409 = vrot.slane %v393, %v408
  %v410 = vsub.f32 %v17, %v409
  %v411 = vsub.f32 %v18, %v409
  %v412 = vand.u32 2147483647, %v410
  %v413 = vand.u32 2147483647, %v411
  %v414 = vsub.f32 1.0, %v412
  %v415 = vsub.f32 1.0, %v413
  %v416 = vmax.f32 %v414, 0.0
  %v417 = vmax.f32 %v415, 0.0
  %s418 = scalar_lea.vmem %s0, 48
  %v419 = vld [vmem:[%s418] sm:$0xff]
  %v420 = vld [vmem:[%s418 + $0x8] sm:$0xff]
  %v422 = vsel %vm51, %v419, 0
  %v425 = vsel %vm51, %v420, 0
  %427 = vmatprep.subr.mxu0 0.0
  %428 = vmatpush1.msra.mxu0 %v404
  %429 = vmatprep.subr.mxu0 0.0
  %430 = vmatpush1.msra.mxu0 %v405
  %431 = vmatprep.subr.mxu0 0.0
  %432 = vmatpush1.msra.mxu0 0.0
  %433 = vmatprep.subr.mxu0 0.0
  %434 = vmatpush1.msra.mxu0 0.0
  %435 = vmatprep.subr.mxu0 0.0
  %436 = vmatpush1.msra.mxu0 0.0
  %437 = vmatprep.subr.mxu0 0.0
  %438 = vmatpush1.msra.mxu0 0.0
  %439 = vmatprep.subr.mxu0 0.0
  %440 = vmatpush1.msra.mxu0 0.0
  %441 = vmatprep.subr.mxu0 0.0
  %442 = vmatpush1.msra.mxu0 0.0
  %443 = vmatprep.subr.mxu0 0.0
  %444 = vmatpush1.msra.mxu0 0.0
  %445 = vmatprep.subr.mxu0 0.0
  %446 = vmatpush1.msra.mxu0 0.0
  %447 = vmatprep.subr.mxu0 0.0
  %448 = vmatpush1.msra.mxu0 0.0
  %449 = vmatprep.subr.mxu0 0.0
  %450 = vmatpush1.msra.mxu0 0.0
  %451 = vmatprep.subr.mxu0 0.0
  %452 = vmatpush1.msra.mxu0 0.0
  %453 = vmatprep.subr.mxu0 0.0
  %454 = vmatpush1.msra.mxu0 0.0
  %455 = vmatprep.subr.mxu0 0.0
  %456 = vmatpush1.msra.mxu0 0.0
  %457 = vmatprep.subr.mxu0 0.0
  %458 = vmatpush1.msra.mxu0 0.0
  %459 = vmatprep.subr.mxu0 0.0
  %460 = vmatpush1.msra.mxu0 0.0
  %461 = vmatprep.subr.mxu0 0.0
  %462 = vmatpush1.msra.mxu0 0.0
  %463 = vmatprep.subr.mxu0 0.0
  %464 = vmatpush1.msra.mxu0 0.0
  %465 = vmatprep.subr.mxu0 0.0
  %466 = vmatpush1.msra.mxu0 0.0
  %467 = vmatprep.subr.mxu0 0.0
  %468 = vmatpush1.msra.mxu0 0.0
  %469 = vmatprep.subr.mxu0 0.0
  %470 = vmatpush1.msra.mxu0 0.0
  %471 = vmatprep.subr.mxu0 0.0
  %472 = vmatpush1.msra.mxu0 0.0
  %473 = vmatprep.subr.mxu0 0.0
  %474 = vmatpush1.msra.mxu0 0.0
  %475 = vmatprep.subr.mxu0 0.0
  %476 = vmatpush1.msra.mxu0 0.0
  %477 = vmatprep.subr.mxu0 0.0
  %478 = vmatpush1.msra.mxu0 0.0
  %479 = vmatprep.subr.mxu0 0.0
  %480 = vmatpush1.msra.mxu0 0.0
  %481 = vmatprep.subr.mxu0 0.0
  %482 = vmatpush1.msra.mxu0 0.0
  %483 = vmatprep.subr.mxu0 0.0
  %484 = vmatpush1.msra.mxu0 0.0
  %485 = vmatprep.subr.mxu0 0.0
  %486 = vmatpush1.msra.mxu0 0.0
  %487 = vmatprep.subr.mxu0 0.0
  %488 = vmatpush1.msra.mxu0 0.0
  %489 = vmatprep.subr.mxu0 0.0
  %490 = vmatpush1.msra.mxu0 0.0
  %491 = vmatprep.mubr.f32.mxu0 0.0
  %492 = vmatmul.mubr.f32.gmra.mrb[0].mxu0 %v422
  %v493 = vpop.f32.mrb[0].mxu0
  %v494 = vadd.f32 0.0, %v493
  %v495 = vpop.f32.mrb[0].mxu0
  %496 = vmatprep.mubr.f32.mxu0 0.0
  %497 = vmatmul.mubr.f32.gmra.mrb[0].mxu0 %v425
  %v498 = vpop.f32.mrb[0].mxu0
  %v499 = vadd.f32 0.0, %v498
  %v500 = vpop.f32.mrb[0].mxu0
  %501 = vdwg.mxu0
  %v502 = vmul.f32 %v494, %v416
  %v503 = vmul.f32 %v499, %v417
  %v504 = vadd.f32 %v502, %v503
  %v505 = vrot.slane %v504, 4
  %v506 = vadd.f32 %v504, %v505
  %v507 = vrot.slane %v506, 2
  %v508 = vadd.f32 %v506, %v507
  %v509 = vrot.slane %v508, 1
  %v510 = vadd.f32 %v508, %v509
  %v511 = vld [vmem:[%s1 + $0x4] sm:$0x1]
  %v512 = vmul.f32 %v511, 16.0
  %v513 = vsub.f32 %v512, 0.5
  %v514 = vld [vmem:[%s2 + $0x4] sm:$0x1]
  %v515 = vmul.f32 %v514, 16.0
  %v516 = vsub.f32 %v515, 0.5
  %v517 = vlaneseq
  %v518 = vshrl.u32 %v517, 7
  %v519 = vsub.s32 0, %v518
  %v520 = vrot.slane %v513, %v519
  %v521 = vsub.f32 %v17, %v520
  %v522 = vsub.f32 %v18, %v520
  %v523 = vand.u32 2147483647, %v521
  %v524 = vand.u32 2147483647, %v522
  %v525 = vsub.f32 1.0, %v523
  %v526 = vsub.f32 1.0, %v524
  %v527 = vmax.f32 %v525, 0.0
  %v528 = vmax.f32 %v526, 0.0
  %v529 = vlaneseq
  %v530 = vshrl.u32 %v529, 7
  %v531 = vsub.s32 0, %v530
  %v532 = vrot.slane %v516, %v531
  %v533 = vsub.f32 %v17, %v532
  %v534 = vsub.f32 %v18, %v532
  %v535 = vand.u32 2147483647, %v533
  %v536 = vand.u32 2147483647, %v534
  %v537 = vsub.f32 1.0, %v535
  %v538 = vsub.f32 1.0, %v536
  %v539 = vmax.f32 %v537, 0.0
  %v540 = vmax.f32 %v538, 0.0
  %s541 = scalar_lea.vmem %s0, 64
  %v542 = vld [vmem:[%s541] sm:$0xff]
  %v543 = vld [vmem:[%s541 + $0x8] sm:$0xff]
  %v545 = vsel %vm51, %v542, 0
  %v548 = vsel %vm51, %v543, 0
  %550 = vmatprep.subr.mxu0 0.0
  %551 = vmatpush1.msra.mxu0 %v527
  %552 = vmatprep.subr.mxu0 0.0
  %553 = vmatpush1.msra.mxu0 %v528
  %554 = vmatprep.subr.mxu0 0.0
  %555 = vmatpush1.msra.mxu0 0.0
  %556 = vmatprep.subr.mxu0 0.0
  %557 = vmatpush1.msra.mxu0 0.0
  %558 = vmatprep.subr.mxu0 0.0
  %559 = vmatpush1.msra.mxu0 0.0
  %560 = vmatprep.subr.mxu0 0.0
  %561 = vmatpush1.msra.mxu0 0.0
  %562 = vmatprep.subr.mxu0 0.0
  %563 = vmatpush1.msra.mxu0 0.0
  %564 = vmatprep.subr.mxu0 0.0
  %565 = vmatpush1.msra.mxu0 0.0
  %566 = vmatprep.subr.mxu0 0.0
  %567 = vmatpush1.msra.mxu0 0.0
  %568 = vmatprep.subr.mxu0 0.0
  %569 = vmatpush1.msra.mxu0 0.0
  %570 = vmatprep.subr.mxu0 0.0
  %571 = vmatpush1.msra.mxu0 0.0
  %572 = vmatprep.subr.mxu0 0.0
  %573 = vmatpush1.msra.mxu0 0.0
  %574 = vmatprep.subr.mxu0 0.0
  %575 = vmatpush1.msra.mxu0 0.0
  %576 = vmatprep.subr.mxu0 0.0
  %577 = vmatpush1.msra.mxu0 0.0
  %578 = vmatprep.subr.mxu0 0.0
  %579 = vmatpush1.msra.mxu0 0.0
  %580 = vmatprep.subr.mxu0 0.0
  %581 = vmatpush1.msra.mxu0 0.0
  %582 = vmatprep.subr.mxu0 0.0
  %583 = vmatpush1.msra.mxu0 0.0
  %584 = vmatprep.subr.mxu0 0.0
  %585 = vmatpush1.msra.mxu0 0.0
  %586 = vmatprep.subr.mxu0 0.0
  %587 = vmatpush1.msra.mxu0 0.0
  %588 = vmatprep.subr.mxu0 0.0
  %589 = vmatpush1.msra.mxu0 0.0
  %590 = vmatprep.subr.mxu0 0.0
  %591 = vmatpush1.msra.mxu0 0.0
  %592 = vmatprep.subr.mxu0 0.0
  %593 = vmatpush1.msra.mxu0 0.0
  %594 = vmatprep.subr.mxu0 0.0
  %595 = vmatpush1.msra.mxu0 0.0
  %596 = vmatprep.subr.mxu0 0.0
  %597 = vmatpush1.msra.mxu0 0.0
  %598 = vmatprep.subr.mxu0 0.0
  %599 = vmatpush1.msra.mxu0 0.0
  %600 = vmatprep.subr.mxu0 0.0
  %601 = vmatpush1.msra.mxu0 0.0
  %602 = vmatprep.subr.mxu0 0.0
  %603 = vmatpush1.msra.mxu0 0.0
  %604 = vmatprep.subr.mxu0 0.0
  %605 = vmatpush1.msra.mxu0 0.0
  %606 = vmatprep.subr.mxu0 0.0
  %607 = vmatpush1.msra.mxu0 0.0
  %608 = vmatprep.subr.mxu0 0.0
  %609 = vmatpush1.msra.mxu0 0.0
  %610 = vmatprep.subr.mxu0 0.0
  %611 = vmatpush1.msra.mxu0 0.0
  %612 = vmatprep.subr.mxu0 0.0
  %613 = vmatpush1.msra.mxu0 0.0
  %614 = vmatprep.mubr.f32.mxu0 0.0
  %615 = vmatmul.mubr.f32.gmra.mrb[0].mxu0 %v545
  %v616 = vpop.f32.mrb[0].mxu0
  %v617 = vadd.f32 0.0, %v616
  %v618 = vpop.f32.mrb[0].mxu0
  %619 = vmatprep.mubr.f32.mxu0 0.0
  %620 = vmatmul.mubr.f32.gmra.mrb[0].mxu0 %v548
  %v621 = vpop.f32.mrb[0].mxu0
  %v622 = vadd.f32 0.0, %v621
  %v623 = vpop.f32.mrb[0].mxu0
  %624 = vdwg.mxu0
  %v625 = vmul.f32 %v617, %v539
  %v626 = vmul.f32 %v622, %v540
  %v627 = vadd.f32 %v625, %v626
  %v628 = vrot.slane %v627, 4
  %v629 = vadd.f32 %v627, %v628
  %v630 = vrot.slane %v629, 2
  %v631 = vadd.f32 %v629, %v630
  %v632 = vrot.slane %v631, 1
  %v633 = vadd.f32 %v631, %v632
  %v634 = vld [vmem:[%s1 + $0x5] sm:$0x1]
  %v635 = vmul.f32 %v634, 16.0
  %v636 = vsub.f32 %v635, 0.5
  %v637 = vld [vmem:[%s2 + $0x5] sm:$0x1]
  %v638 = vmul.f32 %v637, 16.0
  %v639 = vsub.f32 %v638, 0.5
  %v640 = vlaneseq
  %v641 = vshrl.u32 %v640, 7
  %v642 = vsub.s32 0, %v641
  %v643 = vrot.slane %v636, %v642
  %v644 = vsub.f32 %v17, %v643
  %v645 = vsub.f32 %v18, %v643
  %v646 = vand.u32 2147483647, %v644
  %v647 = vand.u32 2147483647, %v645
  %v648 = vsub.f32 1.0, %v646
  %v649 = vsub.f32 1.0, %v647
  %v650 = vmax.f32 %v648, 0.0
  %v651 = vmax.f32 %v649, 0.0
  %v652 = vlaneseq
  %v653 = vshrl.u32 %v652, 7
  %v654 = vsub.s32 0, %v653
  %v655 = vrot.slane %v639, %v654
  %v656 = vsub.f32 %v17, %v655
  %v657 = vsub.f32 %v18, %v655
  %v658 = vand.u32 2147483647, %v656
  %v659 = vand.u32 2147483647, %v657
  %v660 = vsub.f32 1.0, %v658
  %v661 = vsub.f32 1.0, %v659
  %v662 = vmax.f32 %v660, 0.0
  %v663 = vmax.f32 %v661, 0.0
  %s664 = scalar_lea.vmem %s0, 80
  %v665 = vld [vmem:[%s664] sm:$0xff]
  %v666 = vld [vmem:[%s664 + $0x8] sm:$0xff]
  %v668 = vsel %vm51, %v665, 0
  %v671 = vsel %vm51, %v666, 0
  %673 = vmatprep.subr.mxu0 0.0
  %674 = vmatpush1.msra.mxu0 %v650
  %675 = vmatprep.subr.mxu0 0.0
  %676 = vmatpush1.msra.mxu0 %v651
  %677 = vmatprep.subr.mxu0 0.0
  %678 = vmatpush1.msra.mxu0 0.0
  %679 = vmatprep.subr.mxu0 0.0
  %680 = vmatpush1.msra.mxu0 0.0
  %681 = vmatprep.subr.mxu0 0.0
  %682 = vmatpush1.msra.mxu0 0.0
  %683 = vmatprep.subr.mxu0 0.0
  %684 = vmatpush1.msra.mxu0 0.0
  %685 = vmatprep.subr.mxu0 0.0
  %686 = vmatpush1.msra.mxu0 0.0
  %687 = vmatprep.subr.mxu0 0.0
  %688 = vmatpush1.msra.mxu0 0.0
  %689 = vmatprep.subr.mxu0 0.0
  %690 = vmatpush1.msra.mxu0 0.0
  %691 = vmatprep.subr.mxu0 0.0
  %692 = vmatpush1.msra.mxu0 0.0
  %693 = vmatprep.subr.mxu0 0.0
  %694 = vmatpush1.msra.mxu0 0.0
  %695 = vmatprep.subr.mxu0 0.0
  %696 = vmatpush1.msra.mxu0 0.0
  %697 = vmatprep.subr.mxu0 0.0
  %698 = vmatpush1.msra.mxu0 0.0
  %699 = vmatprep.subr.mxu0 0.0
  %700 = vmatpush1.msra.mxu0 0.0
  %701 = vmatprep.subr.mxu0 0.0
  %702 = vmatpush1.msra.mxu0 0.0
  %703 = vmatprep.subr.mxu0 0.0
  %704 = vmatpush1.msra.mxu0 0.0
  %705 = vmatprep.subr.mxu0 0.0
  %706 = vmatpush1.msra.mxu0 0.0
  %707 = vmatprep.subr.mxu0 0.0
  %708 = vmatpush1.msra.mxu0 0.0
  %709 = vmatprep.subr.mxu0 0.0
  %710 = vmatpush1.msra.mxu0 0.0
  %711 = vmatprep.subr.mxu0 0.0
  %712 = vmatpush1.msra.mxu0 0.0
  %713 = vmatprep.subr.mxu0 0.0
  %714 = vmatpush1.msra.mxu0 0.0
  %715 = vmatprep.subr.mxu0 0.0
  %716 = vmatpush1.msra.mxu0 0.0
  %717 = vmatprep.subr.mxu0 0.0
  %718 = vmatpush1.msra.mxu0 0.0
  %719 = vmatprep.subr.mxu0 0.0
  %720 = vmatpush1.msra.mxu0 0.0
  %721 = vmatprep.subr.mxu0 0.0
  %722 = vmatpush1.msra.mxu0 0.0
  %723 = vmatprep.subr.mxu0 0.0
  %724 = vmatpush1.msra.mxu0 0.0
  %725 = vmatprep.subr.mxu0 0.0
  %726 = vmatpush1.msra.mxu0 0.0
  %727 = vmatprep.subr.mxu0 0.0
  %728 = vmatpush1.msra.mxu0 0.0
  %729 = vmatprep.subr.mxu0 0.0
  %730 = vmatpush1.msra.mxu0 0.0
  %731 = vmatprep.subr.mxu0 0.0
  %732 = vmatpush1.msra.mxu0 0.0
  %733 = vmatprep.subr.mxu0 0.0
  %734 = vmatpush1.msra.mxu0 0.0
  %735 = vmatprep.subr.mxu0 0.0
  %736 = vmatpush1.msra.mxu0 0.0
  %737 = vmatprep.mubr.f32.mxu0 0.0
  %738 = vmatmul.mubr.f32.gmra.mrb[0].mxu0 %v668
  %v739 = vpop.f32.mrb[0].mxu0
  %v740 = vadd.f32 0.0, %v739
  %v741 = vpop.f32.mrb[0].mxu0
  %742 = vmatprep.mubr.f32.mxu0 0.0
  %743 = vmatmul.mubr.f32.gmra.mrb[0].mxu0 %v671
  %v744 = vpop.f32.mrb[0].mxu0
  %v745 = vadd.f32 0.0, %v744
  %v746 = vpop.f32.mrb[0].mxu0
  %747 = vdwg.mxu0
  %v748 = vmul.f32 %v740, %v662
  %v749 = vmul.f32 %v745, %v663
  %v750 = vadd.f32 %v748, %v749
  %v751 = vrot.slane %v750, 4
  %v752 = vadd.f32 %v750, %v751
  %v753 = vrot.slane %v752, 2
  %v754 = vadd.f32 %v752, %v753
  %v755 = vrot.slane %v754, 1
  %v756 = vadd.f32 %v754, %v755
  %v757 = vld [vmem:[%s1 + $0x6] sm:$0x1]
  %v758 = vmul.f32 %v757, 16.0
  %v759 = vsub.f32 %v758, 0.5
  %v760 = vld [vmem:[%s2 + $0x6] sm:$0x1]
  %v761 = vmul.f32 %v760, 16.0
  %v762 = vsub.f32 %v761, 0.5
  %v763 = vlaneseq
  %v764 = vshrl.u32 %v763, 7
  %v765 = vsub.s32 0, %v764
  %v766 = vrot.slane %v759, %v765
  %v767 = vsub.f32 %v17, %v766
  %v768 = vsub.f32 %v18, %v766
  %v769 = vand.u32 2147483647, %v767
  %v770 = vand.u32 2147483647, %v768
  %v771 = vsub.f32 1.0, %v769
  %v772 = vsub.f32 1.0, %v770
  %v773 = vmax.f32 %v771, 0.0
  %v774 = vmax.f32 %v772, 0.0
  %v775 = vlaneseq
  %v776 = vshrl.u32 %v775, 7
  %v777 = vsub.s32 0, %v776
  %v778 = vrot.slane %v762, %v777
  %v779 = vsub.f32 %v17, %v778
  %v780 = vsub.f32 %v18, %v778
  %v781 = vand.u32 2147483647, %v779
  %v782 = vand.u32 2147483647, %v780
  %v783 = vsub.f32 1.0, %v781
  %v784 = vsub.f32 1.0, %v782
  %v785 = vmax.f32 %v783, 0.0
  %v786 = vmax.f32 %v784, 0.0
  %s787 = scalar_lea.vmem %s0, 96
  %v788 = vld [vmem:[%s787] sm:$0xff]
  %v789 = vld [vmem:[%s787 + $0x8] sm:$0xff]
  %v791 = vsel %vm51, %v788, 0
  %v794 = vsel %vm51, %v789, 0
  %796 = vmatprep.subr.mxu0 0.0
  %797 = vmatpush1.msra.mxu0 %v773
  %798 = vmatprep.subr.mxu0 0.0
  %799 = vmatpush1.msra.mxu0 %v774
  %800 = vmatprep.subr.mxu0 0.0
  %801 = vmatpush1.msra.mxu0 0.0
  %802 = vmatprep.subr.mxu0 0.0
  %803 = vmatpush1.msra.mxu0 0.0
  %804 = vmatprep.subr.mxu0 0.0
  %805 = vmatpush1.msra.mxu0 0.0
  %806 = vmatprep.subr.mxu0 0.0
  %807 = vmatpush1.msra.mxu0 0.0
  %808 = vmatprep.subr.mxu0 0.0
  %809 = vmatpush1.msra.mxu0 0.0
  %810 = vmatprep.subr.mxu0 0.0
  %811 = vmatpush1.msra.mxu0 0.0
  %812 = vmatprep.subr.mxu0 0.0
  %813 = vmatpush1.msra.mxu0 0.0
  %814 = vmatprep.subr.mxu0 0.0
  %815 = vmatpush1.msra.mxu0 0.0
  %816 = vmatprep.subr.mxu0 0.0
  %817 = vmatpush1.msra.mxu0 0.0
  %818 = vmatprep.subr.mxu0 0.0
  %819 = vmatpush1.msra.mxu0 0.0
  %820 = vmatprep.subr.mxu0 0.0
  %821 = vmatpush1.msra.mxu0 0.0
  %822 = vmatprep.subr.mxu0 0.0
  %823 = vmatpush1.msra.mxu0 0.0
  %824 = vmatprep.subr.mxu0 0.0
  %825 = vmatpush1.msra.mxu0 0.0
  %826 = vmatprep.subr.mxu0 0.0
  %827 = vmatpush1.msra.mxu0 0.0
  %828 = vmatprep.subr.mxu0 0.0
  %829 = vmatpush1.msra.mxu0 0.0
  %830 = vmatprep.subr.mxu0 0.0
  %831 = vmatpush1.msra.mxu0 0.0
  %832 = vmatprep.subr.mxu0 0.0
  %833 = vmatpush1.msra.mxu0 0.0
  %834 = vmatprep.subr.mxu0 0.0
  %835 = vmatpush1.msra.mxu0 0.0
  %836 = vmatprep.subr.mxu0 0.0
  %837 = vmatpush1.msra.mxu0 0.0
  %838 = vmatprep.subr.mxu0 0.0
  %839 = vmatpush1.msra.mxu0 0.0
  %840 = vmatprep.subr.mxu0 0.0
  %841 = vmatpush1.msra.mxu0 0.0
  %842 = vmatprep.subr.mxu0 0.0
  %843 = vmatpush1.msra.mxu0 0.0
  %844 = vmatprep.subr.mxu0 0.0
  %845 = vmatpush1.msra.mxu0 0.0
  %846 = vmatprep.subr.mxu0 0.0
  %847 = vmatpush1.msra.mxu0 0.0
  %848 = vmatprep.subr.mxu0 0.0
  %849 = vmatpush1.msra.mxu0 0.0
  %850 = vmatprep.subr.mxu0 0.0
  %851 = vmatpush1.msra.mxu0 0.0
  %852 = vmatprep.subr.mxu0 0.0
  %853 = vmatpush1.msra.mxu0 0.0
  %854 = vmatprep.subr.mxu0 0.0
  %855 = vmatpush1.msra.mxu0 0.0
  %856 = vmatprep.subr.mxu0 0.0
  %857 = vmatpush1.msra.mxu0 0.0
  %858 = vmatprep.subr.mxu0 0.0
  %859 = vmatpush1.msra.mxu0 0.0
  %860 = vmatprep.mubr.f32.mxu0 0.0
  %861 = vmatmul.mubr.f32.gmra.mrb[0].mxu0 %v791
  %v862 = vpop.f32.mrb[0].mxu0
  %v863 = vadd.f32 0.0, %v862
  %v864 = vpop.f32.mrb[0].mxu0
  %865 = vmatprep.mubr.f32.mxu0 0.0
  %866 = vmatmul.mubr.f32.gmra.mrb[0].mxu0 %v794
  %v867 = vpop.f32.mrb[0].mxu0
  %v868 = vadd.f32 0.0, %v867
  %v869 = vpop.f32.mrb[0].mxu0
  %870 = vdwg.mxu0
  %v871 = vmul.f32 %v863, %v785
  %v872 = vmul.f32 %v868, %v786
  %v873 = vadd.f32 %v871, %v872
  %v874 = vrot.slane %v873, 4
  %v875 = vadd.f32 %v873, %v874
  %v876 = vrot.slane %v875, 2
  %v877 = vadd.f32 %v875, %v876
  %v878 = vrot.slane %v877, 1
  %v879 = vadd.f32 %v877, %v878
  %v880 = vld [vmem:[%s1 + $0x7] sm:$0x1]
  %v881 = vmul.f32 %v880, 16.0
  %v882 = vsub.f32 %v881, 0.5
  %v883 = vld [vmem:[%s2 + $0x7] sm:$0x1]
  %v884 = vmul.f32 %v883, 16.0
  %v885 = vsub.f32 %v884, 0.5
  %v886 = vlaneseq
  %v887 = vshrl.u32 %v886, 7
  %v888 = vsub.s32 0, %v887
  %v889 = vrot.slane %v882, %v888
  %v890 = vsub.f32 %v17, %v889
  %v891 = vsub.f32 %v18, %v889
  %v892 = vand.u32 2147483647, %v890
  %v893 = vand.u32 2147483647, %v891
  %v894 = vsub.f32 1.0, %v892
  %v895 = vsub.f32 1.0, %v893
  %v896 = vmax.f32 %v894, 0.0
  %v897 = vmax.f32 %v895, 0.0
  %v898 = vlaneseq
  %v899 = vshrl.u32 %v898, 7
  %v900 = vsub.s32 0, %v899
  %v901 = vrot.slane %v885, %v900
  %v902 = vsub.f32 %v17, %v901
  %v903 = vsub.f32 %v18, %v901
  %v904 = vand.u32 2147483647, %v902
  %v905 = vand.u32 2147483647, %v903
  %v906 = vsub.f32 1.0, %v904
  %v907 = vsub.f32 1.0, %v905
  %v908 = vmax.f32 %v906, 0.0
  %v909 = vmax.f32 %v907, 0.0
  %s910 = scalar_lea.vmem %s0, 112
  %v911 = vld [vmem:[%s910] sm:$0xff]
  %v912 = vld [vmem:[%s910 + $0x8] sm:$0xff]
  %v914 = vsel %vm51, %v911, 0
  %v917 = vsel %vm51, %v912, 0
  %919 = vmatprep.subr.mxu0 0.0
  %920 = vmatpush1.msra.mxu0 %v896
  %921 = vmatprep.subr.mxu0 0.0
  %922 = vmatpush1.msra.mxu0 %v897
  %923 = vmatprep.subr.mxu0 0.0
  %924 = vmatpush1.msra.mxu0 0.0
  %925 = vmatprep.subr.mxu0 0.0
  %926 = vmatpush1.msra.mxu0 0.0
  %927 = vmatprep.subr.mxu0 0.0
  %928 = vmatpush1.msra.mxu0 0.0
  %929 = vmatprep.subr.mxu0 0.0
  %930 = vmatpush1.msra.mxu0 0.0
  %931 = vmatprep.subr.mxu0 0.0
  %932 = vmatpush1.msra.mxu0 0.0
  %933 = vmatprep.subr.mxu0 0.0
  %934 = vmatpush1.msra.mxu0 0.0
  %935 = vmatprep.subr.mxu0 0.0
  %936 = vmatpush1.msra.mxu0 0.0
  %937 = vmatprep.subr.mxu0 0.0
  %938 = vmatpush1.msra.mxu0 0.0
  %939 = vmatprep.subr.mxu0 0.0
  %940 = vmatpush1.msra.mxu0 0.0
  %941 = vmatprep.subr.mxu0 0.0
  %942 = vmatpush1.msra.mxu0 0.0
  %943 = vmatprep.subr.mxu0 0.0
  %944 = vmatpush1.msra.mxu0 0.0
  %945 = vmatprep.subr.mxu0 0.0
  %946 = vmatpush1.msra.mxu0 0.0
  %947 = vmatprep.subr.mxu0 0.0
  %948 = vmatpush1.msra.mxu0 0.0
  %949 = vmatprep.subr.mxu0 0.0
  %950 = vmatpush1.msra.mxu0 0.0
  %951 = vmatprep.subr.mxu0 0.0
  %952 = vmatpush1.msra.mxu0 0.0
  %953 = vmatprep.subr.mxu0 0.0
  %954 = vmatpush1.msra.mxu0 0.0
  %955 = vmatprep.subr.mxu0 0.0
  %956 = vmatpush1.msra.mxu0 0.0
  %957 = vmatprep.subr.mxu0 0.0
  %958 = vmatpush1.msra.mxu0 0.0
  %959 = vmatprep.subr.mxu0 0.0
  %960 = vmatpush1.msra.mxu0 0.0
  %961 = vmatprep.subr.mxu0 0.0
  %962 = vmatpush1.msra.mxu0 0.0
  %963 = vmatprep.subr.mxu0 0.0
  %964 = vmatpush1.msra.mxu0 0.0
  %965 = vmatprep.subr.mxu0 0.0
  %966 = vmatpush1.msra.mxu0 0.0
  %967 = vmatprep.subr.mxu0 0.0
  %968 = vmatpush1.msra.mxu0 0.0
  %969 = vmatprep.subr.mxu0 0.0
  %970 = vmatpush1.msra.mxu0 0.0
  %971 = vmatprep.subr.mxu0 0.0
  %972 = vmatpush1.msra.mxu0 0.0
  %973 = vmatprep.subr.mxu0 0.0
  %974 = vmatpush1.msra.mxu0 0.0
  %975 = vmatprep.subr.mxu0 0.0
  %976 = vmatpush1.msra.mxu0 0.0
  %977 = vmatprep.subr.mxu0 0.0
  %978 = vmatpush1.msra.mxu0 0.0
  %979 = vmatprep.subr.mxu0 0.0
  %980 = vmatpush1.msra.mxu0 0.0
  %981 = vmatprep.subr.mxu0 0.0
  %982 = vmatpush1.msra.mxu0 0.0
  %983 = vmatprep.mubr.f32.mxu0 0.0
  %984 = vmatmul.mubr.f32.gmra.mrb[0].mxu0 %v914
  %v985 = vpop.f32.mrb[0].mxu0
  %v986 = vadd.f32 0.0, %v985
  %v987 = vpop.f32.mrb[0].mxu0
  %988 = vmatprep.mubr.f32.mxu0 0.0
  %989 = vmatmul.mubr.f32.gmra.mrb[0].mxu0 %v917
  %v990 = vpop.f32.mrb[0].mxu0
  %v991 = vadd.f32 0.0, %v990
  %v992 = vpop.f32.mrb[0].mxu0
  %993 = vdwg.mxu0
  %v994 = vmul.f32 %v986, %v908
  %v995 = vmul.f32 %v991, %v909
  %v996 = vadd.f32 %v994, %v995
  %v997 = vrot.slane %v996, 4
  %v998 = vadd.f32 %v996, %v997
  %v999 = vrot.slane %v998, 2
  %v1000 = vadd.f32 %v998, %v999
  %v1001 = vrot.slane %v1000, 1
  %v1002 = vadd.f32 %v1000, %v1001
  %vm1003 = vcmask 1040384
  %v1004 = vsel %vm1003, %v141, %v264
  %vm1005 = vcmask 1041408
  %v1006 = vsel %vm1005, %v1004, %v387
  %vm1007 = vcmask 1042432
  %v1008 = vsel %vm1007, %v1006, %v510
  %vm1009 = vcmask 1043456
  %v1010 = vsel %vm1009, %v1008, %v633
  %vm1011 = vcmask 1044480
  %v1012 = vsel %vm1011, %v1010, %v756
  %vm1013 = vcmask 1045504
  %v1014 = vsel %vm1013, %v1012, %v879
  %vm1015 = vcmask 1046528
  %v1016 = vsel %vm1015, %v1014, %v1002
  %1017 = vst [vmem:[%s3] sm:$0xff] %v1016
  // Predicated region
  $region14: #{_device_losses.4} parent=0 // pred_check
    _
  $region15: #{_device_losses.4} parent=0 // pred_check_branch
    %1019 = sbr.rel (0) target = $region17
  $region16: #{_device_losses.4} parent=0 // pred_region
    _
  $region17: #{_device_losses.4} parent=0 // pred_fallthru
    _
  // Predicated region
  $region18: #{_device_losses.4} parent=0 // pred_check
    _
  $region19: #{_device_losses.4} parent=0 // pred_check_branch
    %1021 = sbr.rel (0) target = $region21
  $region20: #{_device_losses.4} parent=0 // pred_region
    _
  $region21: #{_device_losses.4} parent=0 // pred_fallthru
    _

// kernel: _device_losses.3
$region0: #{_device_losses.3}
  #allocation0 [shape = 'u32[]', space=smem, size = 0x4, offset = 0x4, fixed_abs, tag = 'smem constant byte address 0x4 - core index']
  #allocation1 [shape = 'u32[144,128]{1,0:T(1,128)}', space=vmem, size = 0x12000, scoped, tag = 'internal scratch']
  #allocation2 [shape = 'f32[1,1]{1,0:T(1,128)}', space=vmem, size = 0x200, scoped, tag = 'scratch operand']
  #allocation3 [shape = 'f32[1,1]{1,0:T(1,128)}', space=vmem, size = 0x200, scoped, tag = 'scratch operand']
  %s0 = inlined_call_operand.vmem [shape: f32[8,128], index: 0, kind: input, shape index: {}]
  %s1 = inlined_call_operand.vmem [shape: s32[1,128], index: 1, kind: input, shape index: {}]
  %s2 = inlined_call_operand.vmem [shape: f32[1,128], index: 2, kind: input, shape index: {}]
  %s3 = inlined_call_operand.vmem [shape: f32[8,1], index: 3, kind: input, shape index: {}]
  %s4 = inlined_call_operand.hbm [shape: f32[1,1], index: 4, kind: output, shape index: {}]
  %s5 = sld [smem:[#allocation0]]
  $region34: #{_device_losses.3} parent=0
    _
  %s7 = ssub.s32 1, %s5
  %s8 = scalar_select 0, %s7, %s5
  $region1: #{_device_losses.3} parent=0
    #allocation4 [shape = 'u8[512]{0}', space=smem, size = 0x200, scoped, tag = 'output window, operand 0, single buffered']
    #allocation5 [shape = 's32[1]{0}', space=sflag, size = 0x4, scoped, tag = 'scoped memory for _device_losses.3']
    %9 = vsyncpa [#allocation5], 0
    // Predicated region
    $region2: #{_device_losses.3} parent=1 // pred_check
      _
    $region3: #{_device_losses.3} parent=1 // pred_check_branch
      %11 = sbr.rel (0) target = $region5
    $region4: #{_device_losses.3} parent=1 // pred_region
      _
    $region5: #{_device_losses.3} parent=1 // pred_fallthru
      _
    // Predicated region
    $region6: #{_device_losses.3} parent=1 // pred_check
      _
    $region7: #{_device_losses.3} parent=1 // pred_check_branch
      %13 = sbr.rel (0) target = $region9
    $region8: #{_device_losses.3} parent=1 // pred_region
      _
    $region9: #{_device_losses.3} parent=1 // pred_fallthru
      _
    // Predicated region
    $region10: #{_device_losses.3} parent=1 // pred_check
      _
    $region11: #{_device_losses.3} parent=1 // pred_check_branch
      %15 = sbr.rel (0) target = $region13
    $region12: #{_device_losses.3} parent=1 // pred_region
      _
    $region13: #{_device_losses.3} parent=1 // pred_fallthru
      _
    // Predicated region
    $region14: #{_device_losses.3} parent=1 // pred_check
      _
    $region15: #{_device_losses.3} parent=1 // pred_check_branch
      %17 = sbr.rel (0) target = $region17
    $region16: #{_device_losses.3} parent=1 // pred_region
      _
    $region17: #{_device_losses.3} parent=1 // pred_fallthru
      _
    %p18 = scmp.eq.s32.totalorder 0, 0
    // Predicated region
    $region18: #{_device_losses.3} parent=1 // pred_check
      %p19 = pneg %p18
    $region19: #{_device_losses.3} parent=1 // pred_check_branch
      %21 = sbr.rel (%p19) target = $region21
    $region20: #{_device_losses.3} parent=1 // pred_region
      %vm22 = vcmask 0
      %23 = vst.msk [vmem:[#allocation2] sm:$0x1] %vm22, 0.0
      %24 = vst.msk [vmem:[#allocation3] sm:$0x1] %vm22, 0.0
    $region21: #{_device_losses.3} parent=1 // pred_fallthru
      _
    %v25 = vld [vmem:[%s0] sm:$0xff]
    %v26 = vld [vmem:[%s1] sm:$0x1]
    %v27 = vld [vmem:[%s2] sm:$0x1]
    %v28 = vld [vmem:[%s3] sm:$0xff]
    %v29 = vlaneseq
    %v30 = vshrl.u32 %v29, 7
    %v31 = vlaneseq
    %v32 = vshrl.u32 %v31, 7
    %v33 = vsub.s32 0, %v32
    %v34 = vrot.slane %v26, %v33
    %vm35 = vcmp.eq.s32.totalorder %v30, %v34
    %v36 = vsel %vm35, 1, 0
    %v37 = vcvt.s32.f32 %v36
    %v38 = vrot.slane %v25, 4
    %v39 = vmax.f32 %v25, %v38
    %v40 = vrot.slane %v39, 2
    %v41 = vmax.f32 %v39, %v40
    %v42 = vrot.slane %v41, 1
    %v43 = vmax.f32 %v41, %v42
    %v44 = vsub.f32 %v25, %v43
    %v45 = vmul.f32 %v44, 1.442695
    %v46 = vpow.pop %v45
    %v47 = vrot.slane %v46, 4
    %v48 = vadd.f32 %v46, %v47
    %v49 = vrot.slane %v48, 2
    %v50 = vadd.f32 %v48, %v49
    %v51 = vrot.slane %v50, 1
    %v52 = vadd.f32 %v50, %v51
    %v53 = vlog2.pop %v52
    %v54 = vmul.f32 %v53, 0.6931472
    %v55 = vadd.f32 %v43, %v54
    %v56 = vmul.f32 %v25, %v37
    %v57 = vrot.slane %v56, 4
    %v58 = vadd.f32 %v56, %v57
    %v59 = vrot.slane %v58, 2
    %v60 = vadd.f32 %v58, %v59
    %v61 = vrot.slane %v60, 1
    %v62 = vadd.f32 %v60, %v61
    %64 = vset.pattern.permute.xlu0 0
    %65 = vperm.xlu0 %64, %v28
    %v66 = vpop.permute.xlu0 %65
    %v68 = vmul.f32 %v66, %v37
    %v69 = vrot.slane %v68, 4
    %v70 = vadd.f32 %v68, %v69
    %v71 = vrot.slane %v70, 2
    %v72 = vadd.f32 %v70, %v71
    %v73 = vrot.slane %v72, 1
    %v74 = vadd.f32 %v72, %v73
    %v75 = vmul.f32 %v74, %v27
    %v76 = vld [vmem:[#allocation2] sm:$0x1]
    %v77 = vsub.f32 %v55, %v62
    %v78 = vmul.f32 %v75, %v77
    %vm79 = vcmask 1040384
    %v80 = vsel %vm79, %v78, 0.0
    %81 = vadd.xlane.f32.xlu0 %v80
    %v82 = vpop.xlane.xlu0 %81
    %v83 = vrot.slane %v82, 4
    %v84 = vadd.f32 %v82, %v83
    %v85 = vrot.slane %v84, 2
    %v86 = vadd.f32 %v84, %v85
    %v87 = vrot.slane %v86, 1
    %v88 = vadd.f32 %v86, %v87
    %s89 = vtos %v88
    %v90 = vstv %s89
    %v91 = vadd.f32 %v76, %v90
    %vm92 = vcmask 0
    %93 = vst.msk [vmem:[#allocation2] sm:$0x1] %vm92, %v91
    %v94 = vld [vmem:[#allocation3] sm:$0x1]
    %v95 = vsel %vm79, %v75, 0.0
    %96 = vadd.xlane.f32.xlu0 %v95
    %v97 = vpop.xlane.xlu0 %96
    %v98 = vrot.slane %v97, 4
    %v99 = vadd.f32 %v97, %v98
    %v100 = vrot.slane %v99, 2
    %v101 = vadd.f32 %v99, %v100
    %v102 = vrot.slane %v101, 1
    %v103 = vadd.f32 %v101, %v102
    %s104 = vtos %v103
    %v105 = vstv %s104
    %v106 = vadd.f32 %v94, %v105
    %107 = vst.msk [vmem:[#allocation3] sm:$0x1] %vm92, %v106
    // Predicated region
    $region22: #{_device_losses.3} parent=1 // pred_check
      %p108 = pneg %p18
    $region23: #{_device_losses.3} parent=1 // pred_check_branch
      %110 = sbr.rel (%p108) target = $region25
    $region24: #{_device_losses.3} parent=1 // pred_region
      %v111 = vld [vmem:[#allocation2] sm:$0x1]
      %v112 = vld [vmem:[#allocation3] sm:$0x1]
      %v113 = vrcp.pop %v112
      %v114 = vmul.f32 %v111, %v113
      %s115 = vtos %v114
      %s116 = scalar_lea.smem [#allocation4], 0
      %117 = sst [smem:[%s116]] %s115
    $region25: #{_device_losses.3} parent=1 // pred_fallthru
      _
    // Predicated region
    $region26: #{_device_losses.3} parent=1 // pred_check
      _
    $region27: #{_device_losses.3} parent=1 // pred_check_branch
      %119 = sbr.rel (0) target = $region29
    $region28: #{_device_losses.3} parent=1 // pred_region
      %s121 = ssub.s32 16, 16
      %122 = vsyncadd [#allocation5], %s121
      %125 = dma.smem_to_hbm [#allocation4], 16, %s4, [#allocation5]
    $region29: #{_device_losses.3} parent=1 // pred_fallthru
      _
    // Predicated region
    $region30: #{_device_losses.3} parent=1 // pred_check
      _
    $region31: #{_device_losses.3} parent=1 // pred_check_branch
      %127 = sbr.rel (0) target = $region33
    $region32: #{_device_losses.3} parent=1 // pred_region
      %128 = dma.done [#allocation5], 16
    $region33: #{_device_losses.3} parent=1 // pred_fallthru
      _
    %129 = sfence
    %130 = vsyncpa [#allocation5], 1

// kernel: _device_losses.5
$region0: #{_device_losses.5}
  #allocation0 [shape = 'u32[]', space=smem, size = 0x4, offset = 0x4, fixed_abs, tag = 'smem constant byte address 0x4 - core index']
  #allocation1 [shape = 'u32[144,128]{1,0:T(1,128)}', space=vmem, size = 0x12000, scoped, tag = 'internal scratch']
  #allocation2 [shape = 'f32[8,1]{1,0:T(8,128)}', space=vmem, size = 0x1000, scoped, tag = 'scratch operand']
  #allocation3 [shape = 'f32[8,1]{1,0:T(8,128)}', space=vmem, size = 0x1000, scoped, tag = 'scratch operand']
  #allocation4 [shape = 'f32[8,1]{1,0:T(8,128)}', space=vmem, size = 0x1000, scoped, tag = 'scratch operand']
  #allocation5 [shape = 'f32[8,1]{1,0:T(8,128)}', space=vmem, size = 0x1000, scoped, tag = 'scratch operand']
  #allocation6 [shape = 'f32[1,1]{1,0:T(1,128)}', space=vmem, size = 0x200, scoped, tag = 'scratch operand']
  #allocation7 [shape = 'f32[1,1]{1,0:T(1,128)}', space=vmem, size = 0x200, scoped, tag = 'scratch operand']
  #allocation8 [shape = 'f32[1,1]{1,0:T(1,128)S(6)}', space=smem, size = 0x200, scoped, tag = 'scoped memory for _device_losses.5']
  %s0 = inlined_call_operand.vmem [shape: f32[8,32,16], index: 0, kind: input, shape index: {}]
  %s1 = inlined_call_operand.vmem [shape: f32[8,128], index: 1, kind: input, shape index: {}]
  %s2 = inlined_call_operand.vmem [shape: f32[8,128], index: 2, kind: input, shape index: {}]
  %s3 = inlined_call_operand.vmem [shape: f32[8,1], index: 3, kind: input, shape index: {}]
  %s4 = inlined_call_operand.vmem [shape: f32[1,128], index: 4, kind: input, shape index: {}]
  %s5 = inlined_call_operand.<no memory space> [shape: f32[1,1], index: 5, kind: input, shape index: {}]
  %s6 = inlined_call_operand.hbm [shape: f32[1,1], index: 6, kind: output, shape index: {0}]
  %s7 = inlined_call_operand.hbm [shape: f32[1,1], index: 7, kind: output, shape index: {1}]
  %8 = xla_tuple %s6, %s7
  %s9 = sld [smem:[#allocation0]]
  $region58: #{_device_losses.5} parent=0
    _
  %s11 = ssub.s32 1, %s9
  %s12 = scalar_select 0, %s11, %s9
  %13 = sst [smem:[#allocation8]] %s5
  $region1: #{_device_losses.5} parent=0
    #allocation9 [shape = 'u8[512]{0}', space=smem, size = 0x200, scoped, tag = 'output window, operand 0, single buffered']
    #allocation10 [shape = 's32[1]{0}', space=sflag, size = 0x4, scoped, tag = 'scoped memory for _device_losses.5']
    #allocation11 [shape = 'u8[512]{0}', space=smem, size = 0x200, scoped, tag = 'output window, operand 1, single buffered']
    #allocation12 [shape = 's32[1]{0}', space=sflag, size = 0x4, scoped, tag = 'scoped memory for _device_losses.5']
    %14 = vsyncpa [#allocation10], 0
    %15 = vsyncpa [#allocation12], 0
    // Predicated region
    $region2: #{_device_losses.5} parent=1 // pred_check
      _
    $region3: #{_device_losses.5} parent=1 // pred_check_branch
      %17 = sbr.rel (0) target = $region5
    $region4: #{_device_losses.5} parent=1 // pred_region
      _
    $region5: #{_device_losses.5} parent=1 // pred_fallthru
      _
    // Predicated region
    $region6: #{_device_losses.5} parent=1 // pred_check
      _
    $region7: #{_device_losses.5} parent=1 // pred_check_branch
      %19 = sbr.rel (0) target = $region9
    $region8: #{_device_losses.5} parent=1 // pred_region
      _
    $region9: #{_device_losses.5} parent=1 // pred_fallthru
      _
    // Predicated region
    $region10: #{_device_losses.5} parent=1 // pred_check
      _
    $region11: #{_device_losses.5} parent=1 // pred_check_branch
      %21 = sbr.rel (0) target = $region13
    $region12: #{_device_losses.5} parent=1 // pred_region
      _
    $region13: #{_device_losses.5} parent=1 // pred_fallthru
      _
    // Predicated region
    $region14: #{_device_losses.5} parent=1 // pred_check
      _
    $region15: #{_device_losses.5} parent=1 // pred_check_branch
      %23 = sbr.rel (0) target = $region17
    $region16: #{_device_losses.5} parent=1 // pred_region
      _
    $region17: #{_device_losses.5} parent=1 // pred_fallthru
      _
    // Predicated region
    $region18: #{_device_losses.5} parent=1 // pred_check
      _
    $region19: #{_device_losses.5} parent=1 // pred_check_branch
      %25 = sbr.rel (0) target = $region21
    $region20: #{_device_losses.5} parent=1 // pred_region
      _
    $region21: #{_device_losses.5} parent=1 // pred_fallthru
      _
    // Predicated region
    $region22: #{_device_losses.5} parent=1 // pred_check
      _
    $region23: #{_device_losses.5} parent=1 // pred_check_branch
      %27 = sbr.rel (0) target = $region25
    $region24: #{_device_losses.5} parent=1 // pred_region
      _
    $region25: #{_device_losses.5} parent=1 // pred_fallthru
      _
    %p28 = scmp.eq.s32.totalorder 0, 0
    %p29 = scmp.eq.s32.totalorder 0, 0
    %p30 = pnand %p28, %p29
    %p31 = pneg %p30
    // Predicated region
    $region26: #{_device_losses.5} parent=1 // pred_check
      _
    $region27: #{_device_losses.5} parent=1 // pred_check_branch
      %33 = sbr.rel (%p30) target = $region29
    $region28: #{_device_losses.5} parent=1 // pred_region
      %vm34 = vcmask 0
      %35 = vst.msk [vmem:[#allocation6] sm:$0x1] %vm34, 0.0
      %36 = vst.msk [vmem:[#allocation7] sm:$0x1] %vm34, 0.0
    $region29: #{_device_losses.5} parent=1 // pred_fallthru
      _
    // Predicated region
    $region30: #{_device_losses.5} parent=1 // pred_check
      %p37 = pneg %p29
    $region31: #{_device_losses.5} parent=1 // pred_check_branch
      %39 = sbr.rel (%p37) target = $region33
    $region32: #{_device_losses.5} parent=1 // pred_region
      %vm40 = vcmask 7168
      %41 = vst.msk [vmem:[#allocation2] sm:$0xff] %vm40, 0.0
      %42 = vst.msk [vmem:[#allocation3] sm:$0xff] %vm40, 0.0
      %43 = vst.msk [vmem:[#allocation4] sm:$0xff] %vm40, 0.0
      %44 = vst.msk [vmem:[#allocation5] sm:$0xff] %vm40, 0.0
    $region33: #{_device_losses.5} parent=1 // pred_fallthru
      _
    %v45 = vld [vmem:[%s4] sm:$0x1]
    %v46 = vlaneseq
    %v47 = vshrl.u32 %v46, 7
    %v48 = vadd.s32 %v47, 8
    %v49 = vcvt.s32.f32 %v47
    %v50 = vcvt.s32.f32 %v48
    %v51 = vld [vmem:[%s1] sm:$0x1]
    %v52 = vmul.f32 %v51, 16.0
    %v53 = vsub.f32 %v52, 0.5
    %v54 = vld [vmem:[%s2] sm:$0x1]
    %v55 = vmul.f32 %v54, 16.0
    %v56 = vsub.f32 %v55, 0.5
    %v57 = vlaneseq
    %v58 = vshrl.u32 %v57, 7
    %v59 = vsub.s32 0, %v58
    %v60 = vrot.slane %v53, %v59
    %v61 = vsub.f32 %v49, %v60
    %v62 = vsub.f32 %v50, %v60
    %v63 = vand.u32 2147483647, %v61
    %v64 = vand.u32 2147483647, %v62
    %v65 = vsub.f32 1.0, %v63
    %v66 = vsub.f32 1.0, %v64
    %v67 = vmax.f32 %v65, 0.0
    %v68 = vmax.f32 %v66, 0.0
    %v69 = vlaneseq
    %v70 = vshrl.u32 %v69, 7
    %v71 = vsub.s32 0, %v70
    %v72 = vrot.slane %v56, %v71
    %v73 = vsub.f32 %v49, %v72
    %v74 = vsub.f32 %v50, %v72
    %v75 = vand.u32 2147483647, %v73
    %v76 = vand.u32 2147483647, %v74
    %v77 = vsub.f32 1.0, %v75
    %v78 = vsub.f32 1.0, %v76
    %v79 = vmax.f32 %v77, 0.0
    %v80 = vmax.f32 %v78, 0.0
    %v81 = vld [vmem:[%s0] sm:$0xff]
    %v82 = vld [vmem:[%s0 + $0x8] sm:$0xff]
    %v83 = vld [vmem:[%s0 + $0x10] sm:$0xff]
    %v84 = vld [vmem:[%s0 + $0x18] sm:$0xff]
    %vm85 = vcmask 130048
    %v87 = vsel %vm85, %v81, 0
    %v90 = vsel %vm85, %v82, 0
    %v93 = vsel %vm85, %v83, 0
    %v96 = vsel %vm85, %v84, 0
    %98 = vmatprep.subr.mxu0 0.0
    %99 = vmatpush1.msra.mxu0 %v67
    %100 = vmatprep.subr.mxu0 0.0
    %101 = vmatpush1.msra.mxu0 %v68
    %102 = vmatprep.subr.mxu0 0.0
    %103 = vmatpush1.msra.mxu0 0.0
    %104 = vmatprep.subr.mxu0 0.0
    %105 = vmatpush1.msra.mxu0 0.0
    %106 = vmatprep.subr.mxu0 0.0
    %107 = vmatpush1.msra.mxu0 0.0
    %108 = vmatprep.subr.mxu0 0.0
    %109 = vmatpush1.msra.mxu0 0.0
    %110 = vmatprep.subr.mxu0 0.0
    %111 = vmatpush1.msra.mxu0 0.0
    %112 = vmatprep.subr.mxu0 0.0
    %113 = vmatpush1.msra.mxu0 0.0
    %114 = vmatprep.subr.mxu0 0.0
    %115 = vmatpush1.msra.mxu0 0.0
    %116 = vmatprep.subr.mxu0 0.0
    %117 = vmatpush1.msra.mxu0 0.0
    %118 = vmatprep.subr.mxu0 0.0
    %119 = vmatpush1.msra.mxu0 0.0
    %120 = vmatprep.subr.mxu0 0.0
    %121 = vmatpush1.msra.mxu0 0.0
    %122 = vmatprep.subr.mxu0 0.0
    %123 = vmatpush1.msra.mxu0 0.0
    %124 = vmatprep.subr.mxu0 0.0
    %125 = vmatpush1.msra.mxu0 0.0
    %126 = vmatprep.subr.mxu0 0.0
    %127 = vmatpush1.msra.mxu0 0.0
    %128 = vmatprep.subr.mxu0 0.0
    %129 = vmatpush1.msra.mxu0 0.0
    %130 = vmatprep.subr.mxu0 0.0
    %131 = vmatpush1.msra.mxu0 0.0
    %132 = vmatprep.subr.mxu0 0.0
    %133 = vmatpush1.msra.mxu0 0.0
    %134 = vmatprep.subr.mxu0 0.0
    %135 = vmatpush1.msra.mxu0 0.0
    %136 = vmatprep.subr.mxu0 0.0
    %137 = vmatpush1.msra.mxu0 0.0
    %138 = vmatprep.subr.mxu0 0.0
    %139 = vmatpush1.msra.mxu0 0.0
    %140 = vmatprep.subr.mxu0 0.0
    %141 = vmatpush1.msra.mxu0 0.0
    %142 = vmatprep.subr.mxu0 0.0
    %143 = vmatpush1.msra.mxu0 0.0
    %144 = vmatprep.subr.mxu0 0.0
    %145 = vmatpush1.msra.mxu0 0.0
    %146 = vmatprep.subr.mxu0 0.0
    %147 = vmatpush1.msra.mxu0 0.0
    %148 = vmatprep.subr.mxu0 0.0
    %149 = vmatpush1.msra.mxu0 0.0
    %150 = vmatprep.subr.mxu0 0.0
    %151 = vmatpush1.msra.mxu0 0.0
    %152 = vmatprep.subr.mxu0 0.0
    %153 = vmatpush1.msra.mxu0 0.0
    %154 = vmatprep.subr.mxu0 0.0
    %155 = vmatpush1.msra.mxu0 0.0
    %156 = vmatprep.subr.mxu0 0.0
    %157 = vmatpush1.msra.mxu0 0.0
    %158 = vmatprep.subr.mxu0 0.0
    %159 = vmatpush1.msra.mxu0 0.0
    %160 = vmatprep.subr.mxu0 0.0
    %161 = vmatpush1.msra.mxu0 0.0
    %162 = vmatprep.mubr.f32.mxu0 0.0
    %163 = vmatmul.mubr.f32.gmra.mrb[0].mxu0 %v87
    %v164 = vpop.f32.mrb[0].mxu0
    %v165 = vadd.f32 0.0, %v164
    %v166 = vpop.f32.mrb[0].mxu0
    %167 = vmatprep.mubr.f32.mxu0 0.0
    %168 = vmatmul.mubr.f32.gmra.mrb[0].mxu0 %v90
    %v169 = vpop.f32.mrb[0].mxu0
    %v170 = vadd.f32 0.0, %v169
    %v171 = vpop.f32.mrb[0].mxu0
    %172 = vmatprep.mubr.f32.mxu0 0.0
    %173 = vmatmul.mubr.f32.gmra.mrb[0].mxu0 %v93
    %v174 = vpop.f32.mrb[0].mxu0
    %v175 = vadd.f32 0.0, %v174
    %v176 = vpop.f32.mrb[0].mxu0
    %177 = vmatprep.mubr.f32.mxu0 0.0
    %178 = vmatmul.mubr.f32.gmra.mrb[0].mxu0 %v96
    %v179 = vpop.f32.mrb[0].mxu0
    %v180 = vadd.f32 0.0, %v179
    %v181 = vpop.f32.mrb[0].mxu0
    %182 = vdwg.mxu0
    %v183 = vmul.f32 %v165, %v79
    %v184 = vmul.f32 %v170, %v80
    %v185 = vadd.f32 %v183, %v184
    %v186 = vrot.slane %v185, 4
    %v187 = vadd.f32 %v185, %v186
    %v188 = vrot.slane %v187, 2
    %v189 = vadd.f32 %v187, %v188
    %v190 = vrot.slane %v189, 1
    %v191 = vadd.f32 %v189, %v190
    %v192 = vmul.f32 %v175, %v79
    %v193 = vmul.f32 %v180, %v80
    %v194 = vadd.f32 %v192, %v193
    %v195 = vrot.slane %v194, 4
    %v196 = vadd.f32 %v194, %v195
    %v197 = vrot.slane %v196, 2
    %v198 = vadd.f32 %v196, %v197
    %v199 = vrot.slane %v198, 1
    %v200 = vadd.f32 %v198, %v199
    %v201 = vand.u32 2147483647, %v191
    %v202 = vsub.f32 0.0, %v201
    %v203 = vmul.f32 %v202, 1.442695
    %v204 = vpow.pop %v203
    %v205 = vmax.f32 %v191, 0.0
    %v206 = vmul.f32 %v191, %v200
    %v207 = vsub.f32 %v205, %v206
    %v208 = vadd.f32 %v204, 1.0
    %v209 = vlog2.pop %v208
    %v210 = vmul.f32 %v209, 0.6931472
    %v211 = vadd.f32 %v207, %v210
    %v212 = vrcp.pop %v208
    %vm213 = vcmp.ge.f32.partialorder %v191, 0.0
    %v214 = vmul.f32 %v204, %v212
    %v215 = vsel %vm213, %v212, %v214
    %v216 = vmul.f32 %v211, %v45
    %vm217 = vcmask 1040384
    %v218 = vsel %vm217, %v216, 0.0
    %219 = vadd.xlane.f32.xlu0 %v218
    %v220 = vpop.xlane.xlu0 %219
    %v221 = vmul.f32 %v215, %v200
    %v222 = vmul.f32 %v221, %v45
    %v223 = vsel %vm217, %v222, 0.0
    %224 = vadd.xlane.f32.xlu0 %v223
    %v225 = vpop.xlane.xlu0 %224
    %v226 = vmul.f32 %v215, %v45
    %v227 = vsel %vm217, %v226, 0.0
    %228 = vadd.xlane.f32.xlu0 %v227
    %v229 = vpop.xlane.xlu0 %228
    %v230 = vmul.f32 %v200, %v45
    %v231 = vsel %vm217, %v230, 0.0
    %232 = vadd.xlane.f32.xlu0 %v231
    %v233 = vpop.xlane.xlu0 %232
    %v234 = vld [vmem:[%s1 + $0x1] sm:$0x1]
    %v235 = vmul.f32 %v234, 16.0
    %v236 = vsub.f32 %v235, 0.5
    %v237 = vld [vmem:[%s2 + $0x1] sm:$0x1]
    %v238 = vmul.f32 %v237, 16.0
    %v239 = vsub.f32 %v238, 0.5
    %v240 = vlaneseq
    %v241 = vshrl.u32 %v240, 7
    %v242 = vsub.s32 0, %v241
    %v243 = vrot.slane %v236, %v242
    %v244 = vsub.f32 %v49, %v243
    %v245 = vsub.f32 %v50, %v243
    %v246 = vand.u32 2147483647, %v244
    %v247 = vand.u32 2147483647, %v245
    %v248 = vsub.f32 1.0, %v246
    %v249 = vsub.f32 1.0, %v247
    %v250 = vmax.f32 %v248, 0.0
    %v251 = vmax.f32 %v249, 0.0
    %v252 = vlaneseq
    %v253 = vshrl.u32 %v252, 7
    %v254 = vsub.s32 0, %v253
    %v255 = vrot.slane %v239, %v254
    %v256 = vsub.f32 %v49, %v255
    %v257 = vsub.f32 %v50, %v255
    %v258 = vand.u32 2147483647, %v256
    %v259 = vand.u32 2147483647, %v257
    %v260 = vsub.f32 1.0, %v258
    %v261 = vsub.f32 1.0, %v259
    %v262 = vmax.f32 %v260, 0.0
    %v263 = vmax.f32 %v261, 0.0
    %s264 = scalar_lea.vmem %s0, 32
    %v265 = vld [vmem:[%s264] sm:$0xff]
    %v266 = vld [vmem:[%s264 + $0x8] sm:$0xff]
    %v267 = vld [vmem:[%s264 + $0x10] sm:$0xff]
    %v268 = vld [vmem:[%s264 + $0x18] sm:$0xff]
    %v270 = vsel %vm85, %v265, 0
    %v273 = vsel %vm85, %v266, 0
    %v276 = vsel %vm85, %v267, 0
    %v279 = vsel %vm85, %v268, 0
    %281 = vmatprep.subr.mxu0 0.0
    %282 = vmatpush1.msra.mxu0 %v250
    %283 = vmatprep.subr.mxu0 0.0
    %284 = vmatpush1.msra.mxu0 %v251
    %285 = vmatprep.subr.mxu0 0.0
    %286 = vmatpush1.msra.mxu0 0.0
    %287 = vmatprep.subr.mxu0 0.0
    %288 = vmatpush1.msra.mxu0 0.0
    %289 = vmatprep.subr.mxu0 0.0
    %290 = vmatpush1.msra.mxu0 0.0
    %291 = vmatprep.subr.mxu0 0.0
    %292 = vmatpush1.msra.mxu0 0.0
    %293 = vmatprep.subr.mxu0 0.0
    %294 = vmatpush1.msra.mxu0 0.0
    %295 = vmatprep.subr.mxu0 0.0
    %296 = vmatpush1.msra.mxu0 0.0
    %297 = vmatprep.subr.mxu0 0.0
    %298 = vmatpush1.msra.mxu0 0.0
    %299 = vmatprep.subr.mxu0 0.0
    %300 = vmatpush1.msra.mxu0 0.0
    %301 = vmatprep.subr.mxu0 0.0
    %302 = vmatpush1.msra.mxu0 0.0
    %303 = vmatprep.subr.mxu0 0.0
    %304 = vmatpush1.msra.mxu0 0.0
    %305 = vmatprep.subr.mxu0 0.0
    %306 = vmatpush1.msra.mxu0 0.0
    %307 = vmatprep.subr.mxu0 0.0
    %308 = vmatpush1.msra.mxu0 0.0
    %309 = vmatprep.subr.mxu0 0.0
    %310 = vmatpush1.msra.mxu0 0.0
    %311 = vmatprep.subr.mxu0 0.0
    %312 = vmatpush1.msra.mxu0 0.0
    %313 = vmatprep.subr.mxu0 0.0
    %314 = vmatpush1.msra.mxu0 0.0
    %315 = vmatprep.subr.mxu0 0.0
    %316 = vmatpush1.msra.mxu0 0.0
    %317 = vmatprep.subr.mxu0 0.0
    %318 = vmatpush1.msra.mxu0 0.0
    %319 = vmatprep.subr.mxu0 0.0
    %320 = vmatpush1.msra.mxu0 0.0
    %321 = vmatprep.subr.mxu0 0.0
    %322 = vmatpush1.msra.mxu0 0.0
    %323 = vmatprep.subr.mxu0 0.0
    %324 = vmatpush1.msra.mxu0 0.0
    %325 = vmatprep.subr.mxu0 0.0
    %326 = vmatpush1.msra.mxu0 0.0
    %327 = vmatprep.subr.mxu0 0.0
    %328 = vmatpush1.msra.mxu0 0.0
    %329 = vmatprep.subr.mxu0 0.0
    %330 = vmatpush1.msra.mxu0 0.0
    %331 = vmatprep.subr.mxu0 0.0
    %332 = vmatpush1.msra.mxu0 0.0
    %333 = vmatprep.subr.mxu0 0.0
    %334 = vmatpush1.msra.mxu0 0.0
    %335 = vmatprep.subr.mxu0 0.0
    %336 = vmatpush1.msra.mxu0 0.0
    %337 = vmatprep.subr.mxu0 0.0
    %338 = vmatpush1.msra.mxu0 0.0
    %339 = vmatprep.subr.mxu0 0.0
    %340 = vmatpush1.msra.mxu0 0.0
    %341 = vmatprep.subr.mxu0 0.0
    %342 = vmatpush1.msra.mxu0 0.0
    %343 = vmatprep.subr.mxu0 0.0
    %344 = vmatpush1.msra.mxu0 0.0
    %345 = vmatprep.mubr.f32.mxu0 0.0
    %346 = vmatmul.mubr.f32.gmra.mrb[0].mxu0 %v270
    %v347 = vpop.f32.mrb[0].mxu0
    %v348 = vadd.f32 0.0, %v347
    %v349 = vpop.f32.mrb[0].mxu0
    %350 = vmatprep.mubr.f32.mxu0 0.0
    %351 = vmatmul.mubr.f32.gmra.mrb[0].mxu0 %v273
    %v352 = vpop.f32.mrb[0].mxu0
    %v353 = vadd.f32 0.0, %v352
    %v354 = vpop.f32.mrb[0].mxu0
    %355 = vmatprep.mubr.f32.mxu0 0.0
    %356 = vmatmul.mubr.f32.gmra.mrb[0].mxu0 %v276
    %v357 = vpop.f32.mrb[0].mxu0
    %v358 = vadd.f32 0.0, %v357
    %v359 = vpop.f32.mrb[0].mxu0
    %360 = vmatprep.mubr.f32.mxu0 0.0
    %361 = vmatmul.mubr.f32.gmra.mrb[0].mxu0 %v279
    %v362 = vpop.f32.mrb[0].mxu0
    %v363 = vadd.f32 0.0, %v362
    %v364 = vpop.f32.mrb[0].mxu0
    %365 = vdwg.mxu0
    %v366 = vmul.f32 %v348, %v262
    %v367 = vmul.f32 %v353, %v263
    %v368 = vadd.f32 %v366, %v367
    %v369 = vrot.slane %v368, 4
    %v370 = vadd.f32 %v368, %v369
    %v371 = vrot.slane %v370, 2
    %v372 = vadd.f32 %v370, %v371
    %v373 = vrot.slane %v372, 1
    %v374 = vadd.f32 %v372, %v373
    %v375 = vmul.f32 %v358, %v262
    %v376 = vmul.f32 %v363, %v263
    %v377 = vadd.f32 %v375, %v376
    %v378 = vrot.slane %v377, 4
    %v379 = vadd.f32 %v377, %v378
    %v380 = vrot.slane %v379, 2
    %v381 = vadd.f32 %v379, %v380
    %v382 = vrot.slane %v381, 1
    %v383 = vadd.f32 %v381, %v382
    %v384 = vand.u32 2147483647, %v374
    %v385 = vsub.f32 0.0, %v384
    %v386 = vmul.f32 %v385, 1.442695
    %v387 = vpow.pop %v386
    %v388 = vmax.f32 %v374, 0.0
    %v389 = vmul.f32 %v374, %v383
    %v390 = vsub.f32 %v388, %v389
    %v391 = vadd.f32 %v387, 1.0
    %v392 = vlog2.pop %v391
    %v393 = vmul.f32 %v392, 0.6931472
    %v394 = vadd.f32 %v390, %v393
    %v395 = vrcp.pop %v391
    %vm396 = vcmp.ge.f32.partialorder %v374, 0.0
    %v397 = vmul.f32 %v387, %v395
    %v398 = vsel %vm396, %v395, %v397
    %v399 = vmul.f32 %v394, %v45
    %v400 = vsel %vm217, %v399, 0.0
    %401 = vadd.xlane.f32.xlu0 %v400
    %v402 = vpop.xlane.xlu0 %401
    %v403 = vmul.f32 %v398, %v383
    %v404 = vmul.f32 %v403, %v45
    %v405 = vsel %vm217, %v404, 0.0
    %406 = vadd.xlane.f32.xlu0 %v405
    %v407 = vpop.xlane.xlu0 %406
    %v408 = vmul.f32 %v398, %v45
    %v409 = vsel %vm217, %v408, 0.0
    %410 = vadd.xlane.f32.xlu0 %v409
    %v411 = vpop.xlane.xlu0 %410
    %v412 = vmul.f32 %v383, %v45
    %v413 = vsel %vm217, %v412, 0.0
    %414 = vadd.xlane.f32.xlu0 %v413
    %v415 = vpop.xlane.xlu0 %414
    %v416 = vld [vmem:[%s1 + $0x2] sm:$0x1]
    %v417 = vmul.f32 %v416, 16.0
    %v418 = vsub.f32 %v417, 0.5
    %v419 = vld [vmem:[%s2 + $0x2] sm:$0x1]
    %v420 = vmul.f32 %v419, 16.0
    %v421 = vsub.f32 %v420, 0.5
    %v422 = vlaneseq
    %v423 = vshrl.u32 %v422, 7
    %v424 = vsub.s32 0, %v423
    %v425 = vrot.slane %v418, %v424
    %v426 = vsub.f32 %v49, %v425
    %v427 = vsub.f32 %v50, %v425
    %v428 = vand.u32 2147483647, %v426
    %v429 = vand.u32 2147483647, %v427
    %v430 = vsub.f32 1.0, %v428
    %v431 = vsub.f32 1.0, %v429
    %v432 = vmax.f32 %v430, 0.0
    %v433 = vmax.f32 %v431, 0.0
    %v434 = vlaneseq
    %v435 = vshrl.u32 %v434, 7
    %v436 = vsub.s32 0, %v435
    %v437 = vrot.slane %v421, %v436
    %v438 = vsub.f32 %v49, %v437
    %v439 = vsub.f32 %v50, %v437
    %v440 = vand.u32 2147483647, %v438
    %v441 = vand.u32 2147483647, %v439
    %v442 = vsub.f32 1.0, %v440
    %v443 = vsub.f32 1.0, %v441
    %v444 = vmax.f32 %v442, 0.0
    %v445 = vmax.f32 %v443, 0.0
    %s446 = scalar_lea.vmem %s0, 64
    %v447 = vld [vmem:[%s446] sm:$0xff]
    %v448 = vld [vmem:[%s446 + $0x8] sm:$0xff]
    %v449 = vld [vmem:[%s446 + $0x10] sm:$0xff]
    %v450 = vld [vmem:[%s446 + $0x18] sm:$0xff]
    %v452 = vsel %vm85, %v447, 0
    %v455 = vsel %vm85, %v448, 0
    %v458 = vsel %vm85, %v449, 0
    %v461 = vsel %vm85, %v450, 0
    %463 = vmatprep.subr.mxu0 0.0
    %464 = vmatpush1.msra.mxu0 %v432
    %465 = vmatprep.subr.mxu0 0.0
    %466 = vmatpush1.msra.mxu0 %v433
    %467 = vmatprep.subr.mxu0 0.0
    %468 = vmatpush1.msra.mxu0 0.0
    %469 = vmatprep.subr.mxu0 0.0
    %470 = vmatpush1.msra.mxu0 0.0
    %471 = vmatprep.subr.mxu0 0.0
    %472 = vmatpush1.msra.mxu0 0.0
    %473 = vmatprep.subr.mxu0 0.0
    %474 = vmatpush1.msra.mxu0 0.0
    %475 = vmatprep.subr.mxu0 0.0
    %476 = vmatpush1.msra.mxu0 0.0
    %477 = vmatprep.subr.mxu0 0.0
    %478 = vmatpush1.msra.mxu0 0.0
    %479 = vmatprep.subr.mxu0 0.0
    %480 = vmatpush1.msra.mxu0 0.0
    %481 = vmatprep.subr.mxu0 0.0
    %482 = vmatpush1.msra.mxu0 0.0
    %483 = vmatprep.subr.mxu0 0.0
    %484 = vmatpush1.msra.mxu0 0.0
    %485 = vmatprep.subr.mxu0 0.0
    %486 = vmatpush1.msra.mxu0 0.0
    %487 = vmatprep.subr.mxu0 0.0
    %488 = vmatpush1.msra.mxu0 0.0
    %489 = vmatprep.subr.mxu0 0.0
    %490 = vmatpush1.msra.mxu0 0.0
    %491 = vmatprep.subr.mxu0 0.0
    %492 = vmatpush1.msra.mxu0 0.0
    %493 = vmatprep.subr.mxu0 0.0
    %494 = vmatpush1.msra.mxu0 0.0
    %495 = vmatprep.subr.mxu0 0.0
    %496 = vmatpush1.msra.mxu0 0.0
    %497 = vmatprep.subr.mxu0 0.0
    %498 = vmatpush1.msra.mxu0 0.0
    %499 = vmatprep.subr.mxu0 0.0
    %500 = vmatpush1.msra.mxu0 0.0
    %501 = vmatprep.subr.mxu0 0.0
    %502 = vmatpush1.msra.mxu0 0.0
    %503 = vmatprep.subr.mxu0 0.0
    %504 = vmatpush1.msra.mxu0 0.0
    %505 = vmatprep.subr.mxu0 0.0
    %506 = vmatpush1.msra.mxu0 0.0
    %507 = vmatprep.subr.mxu0 0.0
    %508 = vmatpush1.msra.mxu0 0.0
    %509 = vmatprep.subr.mxu0 0.0
    %510 = vmatpush1.msra.mxu0 0.0
    %511 = vmatprep.subr.mxu0 0.0
    %512 = vmatpush1.msra.mxu0 0.0
    %513 = vmatprep.subr.mxu0 0.0
    %514 = vmatpush1.msra.mxu0 0.0
    %515 = vmatprep.subr.mxu0 0.0
    %516 = vmatpush1.msra.mxu0 0.0
    %517 = vmatprep.subr.mxu0 0.0
    %518 = vmatpush1.msra.mxu0 0.0
    %519 = vmatprep.subr.mxu0 0.0
    %520 = vmatpush1.msra.mxu0 0.0
    %521 = vmatprep.subr.mxu0 0.0
    %522 = vmatpush1.msra.mxu0 0.0
    %523 = vmatprep.subr.mxu0 0.0
    %524 = vmatpush1.msra.mxu0 0.0
    %525 = vmatprep.subr.mxu0 0.0
    %526 = vmatpush1.msra.mxu0 0.0
    %527 = vmatprep.mubr.f32.mxu0 0.0
    %528 = vmatmul.mubr.f32.gmra.mrb[0].mxu0 %v452
    %v529 = vpop.f32.mrb[0].mxu0
    %v530 = vadd.f32 0.0, %v529
    %v531 = vpop.f32.mrb[0].mxu0
    %532 = vmatprep.mubr.f32.mxu0 0.0
    %533 = vmatmul.mubr.f32.gmra.mrb[0].mxu0 %v455
    %v534 = vpop.f32.mrb[0].mxu0
    %v535 = vadd.f32 0.0, %v534
    %v536 = vpop.f32.mrb[0].mxu0
    %537 = vmatprep.mubr.f32.mxu0 0.0
    %538 = vmatmul.mubr.f32.gmra.mrb[0].mxu0 %v458
    %v539 = vpop.f32.mrb[0].mxu0
    %v540 = vadd.f32 0.0, %v539
    %v541 = vpop.f32.mrb[0].mxu0
    %542 = vmatprep.mubr.f32.mxu0 0.0
    %543 = vmatmul.mubr.f32.gmra.mrb[0].mxu0 %v461
    %v544 = vpop.f32.mrb[0].mxu0
    %v545 = vadd.f32 0.0, %v544
    %v546 = vpop.f32.mrb[0].mxu0
    %547 = vdwg.mxu0
    %v548 = vmul.f32 %v530, %v444
    %v549 = vmul.f32 %v535, %v445
    %v550 = vadd.f32 %v548, %v549
    %v551 = vrot.slane %v550, 4
    %v552 = vadd.f32 %v550, %v551
    %v553 = vrot.slane %v552, 2
    %v554 = vadd.f32 %v552, %v553
    %v555 = vrot.slane %v554, 1
    %v556 = vadd.f32 %v554, %v555
    %v557 = vmul.f32 %v540, %v444
    %v558 = vmul.f32 %v545, %v445
    %v559 = vadd.f32 %v557, %v558
    %v560 = vrot.slane %v559, 4
    %v561 = vadd.f32 %v559, %v560
    %v562 = vrot.slane %v561, 2
    %v563 = vadd.f32 %v561, %v562
    %v564 = vrot.slane %v563, 1
    %v565 = vadd.f32 %v563, %v564
    %v566 = vand.u32 2147483647, %v556
    %v567 = vsub.f32 0.0, %v566
    %v568 = vmul.f32 %v567, 1.442695
    %v569 = vpow.pop %v568
    %v570 = vmax.f32 %v556, 0.0
    %v571 = vmul.f32 %v556, %v565
    %v572 = vsub.f32 %v570, %v571
    %v573 = vadd.f32 %v569, 1.0
    %v574 = vlog2.pop %v573
    %v575 = vmul.f32 %v574, 0.6931472
    %v576 = vadd.f32 %v572, %v575
    %v577 = vrcp.pop %v573
    %vm578 = vcmp.ge.f32.partialorder %v556, 0.0
    %v579 = vmul.f32 %v569, %v577
    %v580 = vsel %vm578, %v577, %v579
    %v581 = vmul.f32 %v576, %v45
    %v582 = vsel %vm217, %v581, 0.0
    %583 = vadd.xlane.f32.xlu0 %v582
    %v584 = vpop.xlane.xlu0 %583
    %v585 = vmul.f32 %v580, %v565
    %v586 = vmul.f32 %v585, %v45
    %v587 = vsel %vm217, %v586, 0.0
    %588 = vadd.xlane.f32.xlu0 %v587
    %v589 = vpop.xlane.xlu0 %588
    %v590 = vmul.f32 %v580, %v45
    %v591 = vsel %vm217, %v590, 0.0
    %592 = vadd.xlane.f32.xlu0 %v591
    %v593 = vpop.xlane.xlu0 %592
    %v594 = vmul.f32 %v565, %v45
    %v595 = vsel %vm217, %v594, 0.0
    %596 = vadd.xlane.f32.xlu0 %v595
    %v597 = vpop.xlane.xlu0 %596
    %v598 = vld [vmem:[%s1 + $0x3] sm:$0x1]
    %v599 = vmul.f32 %v598, 16.0
    %v600 = vsub.f32 %v599, 0.5
    %v601 = vld [vmem:[%s2 + $0x3] sm:$0x1]
    %v602 = vmul.f32 %v601, 16.0
    %v603 = vsub.f32 %v602, 0.5
    %v604 = vlaneseq
    %v605 = vshrl.u32 %v604, 7
    %v606 = vsub.s32 0, %v605
    %v607 = vrot.slane %v600, %v606
    %v608 = vsub.f32 %v49, %v607
    %v609 = vsub.f32 %v50, %v607
    %v610 = vand.u32 2147483647, %v608
    %v611 = vand.u32 2147483647, %v609
    %v612 = vsub.f32 1.0, %v610
    %v613 = vsub.f32 1.0, %v611
    %v614 = vmax.f32 %v612, 0.0
    %v615 = vmax.f32 %v613, 0.0
    %v616 = vlaneseq
    %v617 = vshrl.u32 %v616, 7
    %v618 = vsub.s32 0, %v617
    %v619 = vrot.slane %v603, %v618
    %v620 = vsub.f32 %v49, %v619
    %v621 = vsub.f32 %v50, %v619
    %v622 = vand.u32 2147483647, %v620
    %v623 = vand.u32 2147483647, %v621
    %v624 = vsub.f32 1.0, %v622
    %v625 = vsub.f32 1.0, %v623
    %v626 = vmax.f32 %v624, 0.0
    %v627 = vmax.f32 %v625, 0.0
    %s628 = scalar_lea.vmem %s0, 96
    %v629 = vld [vmem:[%s628] sm:$0xff]
    %v630 = vld [vmem:[%s628 + $0x8] sm:$0xff]
    %v631 = vld [vmem:[%s628 + $0x10] sm:$0xff]
    %v632 = vld [vmem:[%s628 + $0x18] sm:$0xff]
    %v634 = vsel %vm85, %v629, 0
    %v637 = vsel %vm85, %v630, 0
    %v640 = vsel %vm85, %v631, 0
    %v643 = vsel %vm85, %v632, 0
    %645 = vmatprep.subr.mxu0 0.0
    %646 = vmatpush1.msra.mxu0 %v614
    %647 = vmatprep.subr.mxu0 0.0
    %648 = vmatpush1.msra.mxu0 %v615
    %649 = vmatprep.subr.mxu0 0.0
    %650 = vmatpush1.msra.mxu0 0.0
    %651 = vmatprep.subr.mxu0 0.0
    %652 = vmatpush1.msra.mxu0 0.0
    %653 = vmatprep.subr.mxu0 0.0
    %654 = vmatpush1.msra.mxu0 0.0
    %655 = vmatprep.subr.mxu0 0.0
    %656 = vmatpush1.msra.mxu0 0.0
    %657 = vmatprep.subr.mxu0 0.0
    %658 = vmatpush1.msra.mxu0 0.0
    %659 = vmatprep.subr.mxu0 0.0
    %660 = vmatpush1.msra.mxu0 0.0
    %661 = vmatprep.subr.mxu0 0.0
    %662 = vmatpush1.msra.mxu0 0.0
    %663 = vmatprep.subr.mxu0 0.0
    %664 = vmatpush1.msra.mxu0 0.0
    %665 = vmatprep.subr.mxu0 0.0
    %666 = vmatpush1.msra.mxu0 0.0
    %667 = vmatprep.subr.mxu0 0.0
    %668 = vmatpush1.msra.mxu0 0.0
    %669 = vmatprep.subr.mxu0 0.0
    %670 = vmatpush1.msra.mxu0 0.0
    %671 = vmatprep.subr.mxu0 0.0
    %672 = vmatpush1.msra.mxu0 0.0
    %673 = vmatprep.subr.mxu0 0.0
    %674 = vmatpush1.msra.mxu0 0.0
    %675 = vmatprep.subr.mxu0 0.0
    %676 = vmatpush1.msra.mxu0 0.0
    %677 = vmatprep.subr.mxu0 0.0
    %678 = vmatpush1.msra.mxu0 0.0
    %679 = vmatprep.subr.mxu0 0.0
    %680 = vmatpush1.msra.mxu0 0.0
    %681 = vmatprep.subr.mxu0 0.0
    %682 = vmatpush1.msra.mxu0 0.0
    %683 = vmatprep.subr.mxu0 0.0
    %684 = vmatpush1.msra.mxu0 0.0
    %685 = vmatprep.subr.mxu0 0.0
    %686 = vmatpush1.msra.mxu0 0.0
    %687 = vmatprep.subr.mxu0 0.0
    %688 = vmatpush1.msra.mxu0 0.0
    %689 = vmatprep.subr.mxu0 0.0
    %690 = vmatpush1.msra.mxu0 0.0
    %691 = vmatprep.subr.mxu0 0.0
    %692 = vmatpush1.msra.mxu0 0.0
    %693 = vmatprep.subr.mxu0 0.0
    %694 = vmatpush1.msra.mxu0 0.0
    %695 = vmatprep.subr.mxu0 0.0
    %696 = vmatpush1.msra.mxu0 0.0
    %697 = vmatprep.subr.mxu0 0.0
    %698 = vmatpush1.msra.mxu0 0.0
    %699 = vmatprep.subr.mxu0 0.0
    %700 = vmatpush1.msra.mxu0 0.0
    %701 = vmatprep.subr.mxu0 0.0
    %702 = vmatpush1.msra.mxu0 0.0
    %703 = vmatprep.subr.mxu0 0.0
    %704 = vmatpush1.msra.mxu0 0.0
    %705 = vmatprep.subr.mxu0 0.0
    %706 = vmatpush1.msra.mxu0 0.0
    %707 = vmatprep.subr.mxu0 0.0
    %708 = vmatpush1.msra.mxu0 0.0
    %709 = vmatprep.mubr.f32.mxu0 0.0
    %710 = vmatmul.mubr.f32.gmra.mrb[0].mxu0 %v634
    %v711 = vpop.f32.mrb[0].mxu0
    %v712 = vadd.f32 0.0, %v711
    %v713 = vpop.f32.mrb[0].mxu0
    %714 = vmatprep.mubr.f32.mxu0 0.0
    %715 = vmatmul.mubr.f32.gmra.mrb[0].mxu0 %v637
    %v716 = vpop.f32.mrb[0].mxu0
    %v717 = vadd.f32 0.0, %v716
    %v718 = vpop.f32.mrb[0].mxu0
    %719 = vmatprep.mubr.f32.mxu0 0.0
    %720 = vmatmul.mubr.f32.gmra.mrb[0].mxu0 %v640
    %v721 = vpop.f32.mrb[0].mxu0
    %v722 = vadd.f32 0.0, %v721
    %v723 = vpop.f32.mrb[0].mxu0
    %724 = vmatprep.mubr.f32.mxu0 0.0
    %725 = vmatmul.mubr.f32.gmra.mrb[0].mxu0 %v643
    %v726 = vpop.f32.mrb[0].mxu0
    %v727 = vadd.f32 0.0, %v726
    %v728 = vpop.f32.mrb[0].mxu0
    %729 = vdwg.mxu0
    %v730 = vmul.f32 %v712, %v626
    %v731 = vmul.f32 %v717, %v627
    %v732 = vadd.f32 %v730, %v731
    %v733 = vrot.slane %v732, 4
    %v734 = vadd.f32 %v732, %v733
    %v735 = vrot.slane %v734, 2
    %v736 = vadd.f32 %v734, %v735
    %v737 = vrot.slane %v736, 1
    %v738 = vadd.f32 %v736, %v737
    %v739 = vmul.f32 %v722, %v626
    %v740 = vmul.f32 %v727, %v627
    %v741 = vadd.f32 %v739, %v740
    %v742 = vrot.slane %v741, 4
    %v743 = vadd.f32 %v741, %v742
    %v744 = vrot.slane %v743, 2
    %v745 = vadd.f32 %v743, %v744
    %v746 = vrot.slane %v745, 1
    %v747 = vadd.f32 %v745, %v746
    %v748 = vand.u32 2147483647, %v738
    %v749 = vsub.f32 0.0, %v748
    %v750 = vmul.f32 %v749, 1.442695
    %v751 = vpow.pop %v750
    %v752 = vmax.f32 %v738, 0.0
    %v753 = vmul.f32 %v738, %v747
    %v754 = vsub.f32 %v752, %v753
    %v755 = vadd.f32 %v751, 1.0
    %v756 = vlog2.pop %v755
    %v757 = vmul.f32 %v756, 0.6931472
    %v758 = vadd.f32 %v754, %v757
    %v759 = vrcp.pop %v755
    %vm760 = vcmp.ge.f32.partialorder %v738, 0.0
    %v761 = vmul.f32 %v751, %v759
    %v762 = vsel %vm760, %v759, %v761
    %v763 = vmul.f32 %v758, %v45
    %v764 = vsel %vm217, %v763, 0.0
    %765 = vadd.xlane.f32.xlu0 %v764
    %v766 = vpop.xlane.xlu0 %765
    %v767 = vmul.f32 %v762, %v747
    %v768 = vmul.f32 %v767, %v45
    %v769 = vsel %vm217, %v768, 0.0
    %770 = vadd.xlane.f32.xlu0 %v769
    %v771 = vpop.xlane.xlu0 %770
    %v772 = vmul.f32 %v762, %v45
    %v773 = vsel %vm217, %v772, 0.0
    %774 = vadd.xlane.f32.xlu0 %v773
    %v775 = vpop.xlane.xlu0 %774
    %v776 = vmul.f32 %v747, %v45
    %v777 = vsel %vm217, %v776, 0.0
    %778 = vadd.xlane.f32.xlu0 %v777
    %v779 = vpop.xlane.xlu0 %778
    %v780 = vld [vmem:[%s1 + $0x4] sm:$0x1]
    %v781 = vmul.f32 %v780, 16.0
    %v782 = vsub.f32 %v781, 0.5
    %v783 = vld [vmem:[%s2 + $0x4] sm:$0x1]
    %v784 = vmul.f32 %v783, 16.0
    %v785 = vsub.f32 %v784, 0.5
    %v786 = vlaneseq
    %v787 = vshrl.u32 %v786, 7
    %v788 = vsub.s32 0, %v787
    %v789 = vrot.slane %v782, %v788
    %v790 = vsub.f32 %v49, %v789
    %v791 = vsub.f32 %v50, %v789
    %v792 = vand.u32 2147483647, %v790
    %v793 = vand.u32 2147483647, %v791
    %v794 = vsub.f32 1.0, %v792
    %v795 = vsub.f32 1.0, %v793
    %v796 = vmax.f32 %v794, 0.0
    %v797 = vmax.f32 %v795, 0.0
    %v798 = vlaneseq
    %v799 = vshrl.u32 %v798, 7
    %v800 = vsub.s32 0, %v799
    %v801 = vrot.slane %v785, %v800
    %v802 = vsub.f32 %v49, %v801
    %v803 = vsub.f32 %v50, %v801
    %v804 = vand.u32 2147483647, %v802
    %v805 = vand.u32 2147483647, %v803
    %v806 = vsub.f32 1.0, %v804
    %v807 = vsub.f32 1.0, %v805
    %v808 = vmax.f32 %v806, 0.0
    %v809 = vmax.f32 %v807, 0.0
    %s810 = scalar_lea.vmem %s0, 128
    %v811 = vld [vmem:[%s810] sm:$0xff]
    %v812 = vld [vmem:[%s810 + $0x8] sm:$0xff]
    %v813 = vld [vmem:[%s810 + $0x10] sm:$0xff]
    %v814 = vld [vmem:[%s810 + $0x18] sm:$0xff]
    %v816 = vsel %vm85, %v811, 0
    %v819 = vsel %vm85, %v812, 0
    %v822 = vsel %vm85, %v813, 0
    %v825 = vsel %vm85, %v814, 0
    %827 = vmatprep.subr.mxu0 0.0
    %828 = vmatpush1.msra.mxu0 %v796
    %829 = vmatprep.subr.mxu0 0.0
    %830 = vmatpush1.msra.mxu0 %v797
    %831 = vmatprep.subr.mxu0 0.0
    %832 = vmatpush1.msra.mxu0 0.0
    %833 = vmatprep.subr.mxu0 0.0
    %834 = vmatpush1.msra.mxu0 0.0
    %835 = vmatprep.subr.mxu0 0.0
    %836 = vmatpush1.msra.mxu0 0.0
    %837 = vmatprep.subr.mxu0 0.0
    %838 = vmatpush1.msra.mxu0 0.0
    %839 = vmatprep.subr.mxu0 0.0
    %840 = vmatpush1.msra.mxu0 0.0
    %841 = vmatprep.subr.mxu0 0.0
    %842 = vmatpush1.msra.mxu0 0.0
    %843 = vmatprep.subr.mxu0 0.0
    %844 = vmatpush1.msra.mxu0 0.0
    %845 = vmatprep.subr.mxu0 0.0
    %846 = vmatpush1.msra.mxu0 0.0
    %847 = vmatprep.subr.mxu0 0.0
    %848 = vmatpush1.msra.mxu0 0.0
    %849 = vmatprep.subr.mxu0 0.0
    %850 = vmatpush1.msra.mxu0 0.0
    %851 = vmatprep.subr.mxu0 0.0
    %852 = vmatpush1.msra.mxu0 0.0
    %853 = vmatprep.subr.mxu0 0.0
    %854 = vmatpush1.msra.mxu0 0.0
    %855 = vmatprep.subr.mxu0 0.0
    %856 = vmatpush1.msra.mxu0 0.0
    %857 = vmatprep.subr.mxu0 0.0
    %858 = vmatpush1.msra.mxu0 0.0
    %859 = vmatprep.subr.mxu0 0.0
    %860 = vmatpush1.msra.mxu0 0.0
    %861 = vmatprep.subr.mxu0 0.0
    %862 = vmatpush1.msra.mxu0 0.0
    %863 = vmatprep.subr.mxu0 0.0
    %864 = vmatpush1.msra.mxu0 0.0
    %865 = vmatprep.subr.mxu0 0.0
    %866 = vmatpush1.msra.mxu0 0.0
    %867 = vmatprep.subr.mxu0 0.0
    %868 = vmatpush1.msra.mxu0 0.0
    %869 = vmatprep.subr.mxu0 0.0
    %870 = vmatpush1.msra.mxu0 0.0
    %871 = vmatprep.subr.mxu0 0.0
    %872 = vmatpush1.msra.mxu0 0.0
    %873 = vmatprep.subr.mxu0 0.0
    %874 = vmatpush1.msra.mxu0 0.0
    %875 = vmatprep.subr.mxu0 0.0
    %876 = vmatpush1.msra.mxu0 0.0
    %877 = vmatprep.subr.mxu0 0.0
    %878 = vmatpush1.msra.mxu0 0.0
    %879 = vmatprep.subr.mxu0 0.0
    %880 = vmatpush1.msra.mxu0 0.0
    %881 = vmatprep.subr.mxu0 0.0
    %882 = vmatpush1.msra.mxu0 0.0
    %883 = vmatprep.subr.mxu0 0.0
    %884 = vmatpush1.msra.mxu0 0.0
    %885 = vmatprep.subr.mxu0 0.0
    %886 = vmatpush1.msra.mxu0 0.0
    %887 = vmatprep.subr.mxu0 0.0
    %888 = vmatpush1.msra.mxu0 0.0
    %889 = vmatprep.subr.mxu0 0.0
    %890 = vmatpush1.msra.mxu0 0.0
    %891 = vmatprep.mubr.f32.mxu0 0.0
    %892 = vmatmul.mubr.f32.gmra.mrb[0].mxu0 %v816
    %v893 = vpop.f32.mrb[0].mxu0
    %v894 = vadd.f32 0.0, %v893
    %v895 = vpop.f32.mrb[0].mxu0
    %896 = vmatprep.mubr.f32.mxu0 0.0
    %897 = vmatmul.mubr.f32.gmra.mrb[0].mxu0 %v819
    %v898 = vpop.f32.mrb[0].mxu0
    %v899 = vadd.f32 0.0, %v898
    %v900 = vpop.f32.mrb[0].mxu0
    %901 = vmatprep.mubr.f32.mxu0 0.0
    %902 = vmatmul.mubr.f32.gmra.mrb[0].mxu0 %v822
    %v903 = vpop.f32.mrb[0].mxu0
    %v904 = vadd.f32 0.0, %v903
    %v905 = vpop.f32.mrb[0].mxu0
    %906 = vmatprep.mubr.f32.mxu0 0.0
    %907 = vmatmul.mubr.f32.gmra.mrb[0].mxu0 %v825
    %v908 = vpop.f32.mrb[0].mxu0
    %v909 = vadd.f32 0.0, %v908
    %v910 = vpop.f32.mrb[0].mxu0
    %911 = vdwg.mxu0
    %v912 = vmul.f32 %v894, %v808
    %v913 = vmul.f32 %v899, %v809
    %v914 = vadd.f32 %v912, %v913
    %v915 = vrot.slane %v914, 4
    %v916 = vadd.f32 %v914, %v915
    %v917 = vrot.slane %v916, 2
    %v918 = vadd.f32 %v916, %v917
    %v919 = vrot.slane %v918, 1
    %v920 = vadd.f32 %v918, %v919
    %v921 = vmul.f32 %v904, %v808
    %v922 = vmul.f32 %v909, %v809
    %v923 = vadd.f32 %v921, %v922
    %v924 = vrot.slane %v923, 4
    %v925 = vadd.f32 %v923, %v924
    %v926 = vrot.slane %v925, 2
    %v927 = vadd.f32 %v925, %v926
    %v928 = vrot.slane %v927, 1
    %v929 = vadd.f32 %v927, %v928
    %v930 = vand.u32 2147483647, %v920
    %v931 = vsub.f32 0.0, %v930
    %v932 = vmul.f32 %v931, 1.442695
    %v933 = vpow.pop %v932
    %v934 = vmax.f32 %v920, 0.0
    %v935 = vmul.f32 %v920, %v929
    %v936 = vsub.f32 %v934, %v935
    %v937 = vadd.f32 %v933, 1.0
    %v938 = vlog2.pop %v937
    %v939 = vmul.f32 %v938, 0.6931472
    %v940 = vadd.f32 %v936, %v939
    %v941 = vrcp.pop %v937
    %vm942 = vcmp.ge.f32.partialorder %v920, 0.0
    %v943 = vmul.f32 %v933, %v941
    %v944 = vsel %vm942, %v941, %v943
    %v945 = vmul.f32 %v940, %v45
    %v946 = vsel %vm217, %v945, 0.0
    %947 = vadd.xlane.f32.xlu0 %v946
    %v948 = vpop.xlane.xlu0 %947
    %v949 = vmul.f32 %v944, %v929
    %v950 = vmul.f32 %v949, %v45
    %v951 = vsel %vm217, %v950, 0.0
    %952 = vadd.xlane.f32.xlu0 %v951
    %v953 = vpop.xlane.xlu0 %952
    %v954 = vmul.f32 %v944, %v45
    %v955 = vsel %vm217, %v954, 0.0
    %956 = vadd.xlane.f32.xlu0 %v955
    %v957 = vpop.xlane.xlu0 %956
    %v958 = vmul.f32 %v929, %v45
    %v959 = vsel %vm217, %v958, 0.0
    %960 = vadd.xlane.f32.xlu0 %v959
    %v961 = vpop.xlane.xlu0 %960
    %v962 = vld [vmem:[%s1 + $0x5] sm:$0x1]
    %v963 = vmul.f32 %v962, 16.0
    %v964 = vsub.f32 %v963, 0.5
    %v965 = vld [vmem:[%s2 + $0x5] sm:$0x1]
    %v966 = vmul.f32 %v965, 16.0
    %v967 = vsub.f32 %v966, 0.5
    %v968 = vlaneseq
    %v969 = vshrl.u32 %v968, 7
    %v970 = vsub.s32 0, %v969
    %v971 = vrot.slane %v964, %v970
    %v972 = vsub.f32 %v49, %v971
    %v973 = vsub.f32 %v50, %v971
    %v974 = vand.u32 2147483647, %v972
    %v975 = vand.u32 2147483647, %v973
    %v976 = vsub.f32 1.0, %v974
    %v977 = vsub.f32 1.0, %v975
    %v978 = vmax.f32 %v976, 0.0
    %v979 = vmax.f32 %v977, 0.0
    %v980 = vlaneseq
    %v981 = vshrl.u32 %v980, 7
    %v982 = vsub.s32 0, %v981
    %v983 = vrot.slane %v967, %v982
    %v984 = vsub.f32 %v49, %v983
    %v985 = vsub.f32 %v50, %v983
    %v986 = vand.u32 2147483647, %v984
    %v987 = vand.u32 2147483647, %v985
    %v988 = vsub.f32 1.0, %v986
    %v989 = vsub.f32 1.0, %v987
    %v990 = vmax.f32 %v988, 0.0
    %v991 = vmax.f32 %v989, 0.0
    %s992 = scalar_lea.vmem %s0, 160
    %v993 = vld [vmem:[%s992] sm:$0xff]
    %v994 = vld [vmem:[%s992 + $0x8] sm:$0xff]
    %v995 = vld [vmem:[%s992 + $0x10] sm:$0xff]
    %v996 = vld [vmem:[%s992 + $0x18] sm:$0xff]
    %v998 = vsel %vm85, %v993, 0
    %v1001 = vsel %vm85, %v994, 0
    %v1004 = vsel %vm85, %v995, 0
    %v1007 = vsel %vm85, %v996, 0
    %1009 = vmatprep.subr.mxu0 0.0
    %1010 = vmatpush1.msra.mxu0 %v978
    %1011 = vmatprep.subr.mxu0 0.0
    %1012 = vmatpush1.msra.mxu0 %v979
    %1013 = vmatprep.subr.mxu0 0.0
    %1014 = vmatpush1.msra.mxu0 0.0
    %1015 = vmatprep.subr.mxu0 0.0
    %1016 = vmatpush1.msra.mxu0 0.0
    %1017 = vmatprep.subr.mxu0 0.0
    %1018 = vmatpush1.msra.mxu0 0.0
    %1019 = vmatprep.subr.mxu0 0.0
    %1020 = vmatpush1.msra.mxu0 0.0
    %1021 = vmatprep.subr.mxu0 0.0
    %1022 = vmatpush1.msra.mxu0 0.0
    %1023 = vmatprep.subr.mxu0 0.0
    %1024 = vmatpush1.msra.mxu0 0.0
    %1025 = vmatprep.subr.mxu0 0.0
    %1026 = vmatpush1.msra.mxu0 0.0
    %1027 = vmatprep.subr.mxu0 0.0
    %1028 = vmatpush1.msra.mxu0 0.0
    %1029 = vmatprep.subr.mxu0 0.0
    %1030 = vmatpush1.msra.mxu0 0.0
    %1031 = vmatprep.subr.mxu0 0.0
    %1032 = vmatpush1.msra.mxu0 0.0
    %1033 = vmatprep.subr.mxu0 0.0
    %1034 = vmatpush1.msra.mxu0 0.0
    %1035 = vmatprep.subr.mxu0 0.0
    %1036 = vmatpush1.msra.mxu0 0.0
    %1037 = vmatprep.subr.mxu0 0.0
    %1038 = vmatpush1.msra.mxu0 0.0
    %1039 = vmatprep.subr.mxu0 0.0
    %1040 = vmatpush1.msra.mxu0 0.0
    %1041 = vmatprep.subr.mxu0 0.0
    %1042 = vmatpush1.msra.mxu0 0.0
    %1043 = vmatprep.subr.mxu0 0.0
    %1044 = vmatpush1.msra.mxu0 0.0
    %1045 = vmatprep.subr.mxu0 0.0
    %1046 = vmatpush1.msra.mxu0 0.0
    %1047 = vmatprep.subr.mxu0 0.0
    %1048 = vmatpush1.msra.mxu0 0.0
    %1049 = vmatprep.subr.mxu0 0.0
    %1050 = vmatpush1.msra.mxu0 0.0
    %1051 = vmatprep.subr.mxu0 0.0
    %1052 = vmatpush1.msra.mxu0 0.0
    %1053 = vmatprep.subr.mxu0 0.0
    %1054 = vmatpush1.msra.mxu0 0.0
    %1055 = vmatprep.subr.mxu0 0.0
    %1056 = vmatpush1.msra.mxu0 0.0
    %1057 = vmatprep.subr.mxu0 0.0
    %1058 = vmatpush1.msra.mxu0 0.0
    %1059 = vmatprep.subr.mxu0 0.0
    %1060 = vmatpush1.msra.mxu0 0.0
    %1061 = vmatprep.subr.mxu0 0.0
    %1062 = vmatpush1.msra.mxu0 0.0
    %1063 = vmatprep.subr.mxu0 0.0
    %1064 = vmatpush1.msra.mxu0 0.0
    %1065 = vmatprep.subr.mxu0 0.0
    %1066 = vmatpush1.msra.mxu0 0.0
    %1067 = vmatprep.subr.mxu0 0.0
    %1068 = vmatpush1.msra.mxu0 0.0
    %1069 = vmatprep.subr.mxu0 0.0
    %1070 = vmatpush1.msra.mxu0 0.0
    %1071 = vmatprep.subr.mxu0 0.0
    %1072 = vmatpush1.msra.mxu0 0.0
    %1073 = vmatprep.mubr.f32.mxu0 0.0
    %1074 = vmatmul.mubr.f32.gmra.mrb[0].mxu0 %v998
    %v1075 = vpop.f32.mrb[0].mxu0
    %v1076 = vadd.f32 0.0, %v1075
    %v1077 = vpop.f32.mrb[0].mxu0
    %1078 = vmatprep.mubr.f32.mxu0 0.0
    %1079 = vmatmul.mubr.f32.gmra.mrb[0].mxu0 %v1001
    %v1080 = vpop.f32.mrb[0].mxu0
    %v1081 = vadd.f32 0.0, %v1080
    %v1082 = vpop.f32.mrb[0].mxu0
    %1083 = vmatprep.mubr.f32.mxu0 0.0
    %1084 = vmatmul.mubr.f32.gmra.mrb[0].mxu0 %v1004
    %v1085 = vpop.f32.mrb[0].mxu0
    %v1086 = vadd.f32 0.0, %v1085
    %v1087 = vpop.f32.mrb[0].mxu0
    %1088 = vmatprep.mubr.f32.mxu0 0.0
    %1089 = vmatmul.mubr.f32.gmra.mrb[0].mxu0 %v1007
    %v1090 = vpop.f32.mrb[0].mxu0
    %v1091 = vadd.f32 0.0, %v1090
    %v1092 = vpop.f32.mrb[0].mxu0
    %1093 = vdwg.mxu0
    %v1094 = vmul.f32 %v1076, %v990
    %v1095 = vmul.f32 %v1081, %v991
    %v1096 = vadd.f32 %v1094, %v1095
    %v1097 = vrot.slane %v1096, 4
    %v1098 = vadd.f32 %v1096, %v1097
    %v1099 = vrot.slane %v1098, 2
    %v1100 = vadd.f32 %v1098, %v1099
    %v1101 = vrot.slane %v1100, 1
    %v1102 = vadd.f32 %v1100, %v1101
    %v1103 = vmul.f32 %v1086, %v990
    %v1104 = vmul.f32 %v1091, %v991
    %v1105 = vadd.f32 %v1103, %v1104
    %v1106 = vrot.slane %v1105, 4
    %v1107 = vadd.f32 %v1105, %v1106
    %v1108 = vrot.slane %v1107, 2
    %v1109 = vadd.f32 %v1107, %v1108
    %v1110 = vrot.slane %v1109, 1
    %v1111 = vadd.f32 %v1109, %v1110
    %v1112 = vand.u32 2147483647, %v1102
    %v1113 = vsub.f32 0.0, %v1112
    %v1114 = vmul.f32 %v1113, 1.442695
    %v1115 = vpow.pop %v1114
    %v1116 = vmax.f32 %v1102, 0.0
    %v1117 = vmul.f32 %v1102, %v1111
    %v1118 = vsub.f32 %v1116, %v1117
    %v1119 = vadd.f32 %v1115, 1.0
    %v1120 = vlog2.pop %v1119
    %v1121 = vmul.f32 %v1120, 0.6931472
    %v1122 = vadd.f32 %v1118, %v1121
    %v1123 = vrcp.pop %v1119
    %vm1124 = vcmp.ge.f32.partialorder %v1102, 0.0
    %v1125 = vmul.f32 %v1115, %v1123
    %v1126 = vsel %vm1124, %v1123, %v1125
    %v1127 = vmul.f32 %v1122, %v45
    %v1128 = vsel %vm217, %v1127, 0.0
    %1129 = vadd.xlane.f32.xlu0 %v1128
    %v1130 = vpop.xlane.xlu0 %1129
    %v1131 = vmul.f32 %v1126, %v1111
    %v1132 = vmul.f32 %v1131, %v45
    %v1133 = vsel %vm217, %v1132, 0.0
    %1134 = vadd.xlane.f32.xlu0 %v1133
    %v1135 = vpop.xlane.xlu0 %1134
    %v1136 = vmul.f32 %v1126, %v45
    %v1137 = vsel %vm217, %v1136, 0.0
    %1138 = vadd.xlane.f32.xlu0 %v1137
    %v1139 = vpop.xlane.xlu0 %1138
    %v1140 = vmul.f32 %v1111, %v45
    %v1141 = vsel %vm217, %v1140, 0.0
    %1142 = vadd.xlane.f32.xlu0 %v1141
    %v1143 = vpop.xlane.xlu0 %1142
    %v1144 = vld [vmem:[%s1 + $0x6] sm:$0x1]
    %v1145 = vmul.f32 %v1144, 16.0
    %v1146 = vsub.f32 %v1145, 0.5
    %v1147 = vld [vmem:[%s2 + $0x6] sm:$0x1]
    %v1148 = vmul.f32 %v1147, 16.0
    %v1149 = vsub.f32 %v1148, 0.5
    %v1150 = vlaneseq
    %v1151 = vshrl.u32 %v1150, 7
    %v1152 = vsub.s32 0, %v1151
    %v1153 = vrot.slane %v1146, %v1152
    %v1154 = vsub.f32 %v49, %v1153
    %v1155 = vsub.f32 %v50, %v1153
    %v1156 = vand.u32 2147483647, %v1154
    %v1157 = vand.u32 2147483647, %v1155
    %v1158 = vsub.f32 1.0, %v1156
    %v1159 = vsub.f32 1.0, %v1157
    %v1160 = vmax.f32 %v1158, 0.0
    %v1161 = vmax.f32 %v1159, 0.0
    %v1162 = vlaneseq
    %v1163 = vshrl.u32 %v1162, 7
    %v1164 = vsub.s32 0, %v1163
    %v1165 = vrot.slane %v1149, %v1164
    %v1166 = vsub.f32 %v49, %v1165
    %v1167 = vsub.f32 %v50, %v1165
    %v1168 = vand.u32 2147483647, %v1166
    %v1169 = vand.u32 2147483647, %v1167
    %v1170 = vsub.f32 1.0, %v1168
    %v1171 = vsub.f32 1.0, %v1169
    %v1172 = vmax.f32 %v1170, 0.0
    %v1173 = vmax.f32 %v1171, 0.0
    %s1174 = scalar_lea.vmem %s0, 192
    %v1175 = vld [vmem:[%s1174] sm:$0xff]
    %v1176 = vld [vmem:[%s1174 + $0x8] sm:$0xff]
    %v1177 = vld [vmem:[%s1174 + $0x10] sm:$0xff]
    %v1178 = vld [vmem:[%s1174 + $0x18] sm:$0xff]
    %v1180 = vsel %vm85, %v1175, 0
    %v1183 = vsel %vm85, %v1176, 0
    %v1186 = vsel %vm85, %v1177, 0
    %v1189 = vsel %vm85, %v1178, 0
    %1191 = vmatprep.subr.mxu0 0.0
    %1192 = vmatpush1.msra.mxu0 %v1160
    %1193 = vmatprep.subr.mxu0 0.0
    %1194 = vmatpush1.msra.mxu0 %v1161
    %1195 = vmatprep.subr.mxu0 0.0
    %1196 = vmatpush1.msra.mxu0 0.0
    %1197 = vmatprep.subr.mxu0 0.0
    %1198 = vmatpush1.msra.mxu0 0.0
    %1199 = vmatprep.subr.mxu0 0.0
    %1200 = vmatpush1.msra.mxu0 0.0
    %1201 = vmatprep.subr.mxu0 0.0
    %1202 = vmatpush1.msra.mxu0 0.0
    %1203 = vmatprep.subr.mxu0 0.0
    %1204 = vmatpush1.msra.mxu0 0.0
    %1205 = vmatprep.subr.mxu0 0.0
    %1206 = vmatpush1.msra.mxu0 0.0
    %1207 = vmatprep.subr.mxu0 0.0
    %1208 = vmatpush1.msra.mxu0 0.0
    %1209 = vmatprep.subr.mxu0 0.0
    %1210 = vmatpush1.msra.mxu0 0.0
    %1211 = vmatprep.subr.mxu0 0.0
    %1212 = vmatpush1.msra.mxu0 0.0
    %1213 = vmatprep.subr.mxu0 0.0
    %1214 = vmatpush1.msra.mxu0 0.0
    %1215 = vmatprep.subr.mxu0 0.0
    %1216 = vmatpush1.msra.mxu0 0.0
    %1217 = vmatprep.subr.mxu0 0.0
    %1218 = vmatpush1.msra.mxu0 0.0
    %1219 = vmatprep.subr.mxu0 0.0
    %1220 = vmatpush1.msra.mxu0 0.0
    %1221 = vmatprep.subr.mxu0 0.0
    %1222 = vmatpush1.msra.mxu0 0.0
    %1223 = vmatprep.subr.mxu0 0.0
    %1224 = vmatpush1.msra.mxu0 0.0
    %1225 = vmatprep.subr.mxu0 0.0
    %1226 = vmatpush1.msra.mxu0 0.0
    %1227 = vmatprep.subr.mxu0 0.0
    %1228 = vmatpush1.msra.mxu0 0.0
    %1229 = vmatprep.subr.mxu0 0.0
    %1230 = vmatpush1.msra.mxu0 0.0
    %1231 = vmatprep.subr.mxu0 0.0
    %1232 = vmatpush1.msra.mxu0 0.0
    %1233 = vmatprep.subr.mxu0 0.0
    %1234 = vmatpush1.msra.mxu0 0.0
    %1235 = vmatprep.subr.mxu0 0.0
    %1236 = vmatpush1.msra.mxu0 0.0
    %1237 = vmatprep.subr.mxu0 0.0
    %1238 = vmatpush1.msra.mxu0 0.0
    %1239 = vmatprep.subr.mxu0 0.0
    %1240 = vmatpush1.msra.mxu0 0.0
    %1241 = vmatprep.subr.mxu0 0.0
    %1242 = vmatpush1.msra.mxu0 0.0
    %1243 = vmatprep.subr.mxu0 0.0
    %1244 = vmatpush1.msra.mxu0 0.0
    %1245 = vmatprep.subr.mxu0 0.0
    %1246 = vmatpush1.msra.mxu0 0.0
    %1247 = vmatprep.subr.mxu0 0.0
    %1248 = vmatpush1.msra.mxu0 0.0
    %1249 = vmatprep.subr.mxu0 0.0
    %1250 = vmatpush1.msra.mxu0 0.0
    %1251 = vmatprep.subr.mxu0 0.0
    %1252 = vmatpush1.msra.mxu0 0.0
    %1253 = vmatprep.subr.mxu0 0.0
    %1254 = vmatpush1.msra.mxu0 0.0
    %1255 = vmatprep.mubr.f32.mxu0 0.0
    %1256 = vmatmul.mubr.f32.gmra.mrb[0].mxu0 %v1180
    %v1257 = vpop.f32.mrb[0].mxu0
    %v1258 = vadd.f32 0.0, %v1257
    %v1259 = vpop.f32.mrb[0].mxu0
    %1260 = vmatprep.mubr.f32.mxu0 0.0
    %1261 = vmatmul.mubr.f32.gmra.mrb[0].mxu0 %v1183
    %v1262 = vpop.f32.mrb[0].mxu0
    %v1263 = vadd.f32 0.0, %v1262
    %v1264 = vpop.f32.mrb[0].mxu0
    %1265 = vmatprep.mubr.f32.mxu0 0.0
    %1266 = vmatmul.mubr.f32.gmra.mrb[0].mxu0 %v1186
    %v1267 = vpop.f32.mrb[0].mxu0
    %v1268 = vadd.f32 0.0, %v1267
    %v1269 = vpop.f32.mrb[0].mxu0
    %1270 = vmatprep.mubr.f32.mxu0 0.0
    %1271 = vmatmul.mubr.f32.gmra.mrb[0].mxu0 %v1189
    %v1272 = vpop.f32.mrb[0].mxu0
    %v1273 = vadd.f32 0.0, %v1272
    %v1274 = vpop.f32.mrb[0].mxu0
    %1275 = vdwg.mxu0
    %v1276 = vmul.f32 %v1258, %v1172
    %v1277 = vmul.f32 %v1263, %v1173
    %v1278 = vadd.f32 %v1276, %v1277
    %v1279 = vrot.slane %v1278, 4
    %v1280 = vadd.f32 %v1278, %v1279
    %v1281 = vrot.slane %v1280, 2
    %v1282 = vadd.f32 %v1280, %v1281
    %v1283 = vrot.slane %v1282, 1
    %v1284 = vadd.f32 %v1282, %v1283
    %v1285 = vmul.f32 %v1268, %v1172
    %v1286 = vmul.f32 %v1273, %v1173
    %v1287 = vadd.f32 %v1285, %v1286
    %v1288 = vrot.slane %v1287, 4
    %v1289 = vadd.f32 %v1287, %v1288
    %v1290 = vrot.slane %v1289, 2
    %v1291 = vadd.f32 %v1289, %v1290
    %v1292 = vrot.slane %v1291, 1
    %v1293 = vadd.f32 %v1291, %v1292
    %v1294 = vand.u32 2147483647, %v1284
    %v1295 = vsub.f32 0.0, %v1294
    %v1296 = vmul.f32 %v1295, 1.442695
    %v1297 = vpow.pop %v1296
    %v1298 = vmax.f32 %v1284, 0.0
    %v1299 = vmul.f32 %v1284, %v1293
    %v1300 = vsub.f32 %v1298, %v1299
    %v1301 = vadd.f32 %v1297, 1.0
    %v1302 = vlog2.pop %v1301
    %v1303 = vmul.f32 %v1302, 0.6931472
    %v1304 = vadd.f32 %v1300, %v1303
    %v1305 = vrcp.pop %v1301
    %vm1306 = vcmp.ge.f32.partialorder %v1284, 0.0
    %v1307 = vmul.f32 %v1297, %v1305
    %v1308 = vsel %vm1306, %v1305, %v1307
    %v1309 = vmul.f32 %v1304, %v45
    %v1310 = vsel %vm217, %v1309, 0.0
    %1311 = vadd.xlane.f32.xlu0 %v1310
    %v1312 = vpop.xlane.xlu0 %1311
    %v1313 = vmul.f32 %v1308, %v1293
    %v1314 = vmul.f32 %v1313, %v45
    %v1315 = vsel %vm217, %v1314, 0.0
    %1316 = vadd.xlane.f32.xlu0 %v1315
    %v1317 = vpop.xlane.xlu0 %1316
    %v1318 = vmul.f32 %v1308, %v45
    %v1319 = vsel %vm217, %v1318, 0.0
    %1320 = vadd.xlane.f32.xlu0 %v1319
    %v1321 = vpop.xlane.xlu0 %1320
    %v1322 = vmul.f32 %v1293, %v45
    %v1323 = vsel %vm217, %v1322, 0.0
    %1324 = vadd.xlane.f32.xlu0 %v1323
    %v1325 = vpop.xlane.xlu0 %1324
    %v1326 = vld [vmem:[%s1 + $0x7] sm:$0x1]
    %v1327 = vmul.f32 %v1326, 16.0
    %v1328 = vsub.f32 %v1327, 0.5
    %v1329 = vld [vmem:[%s2 + $0x7] sm:$0x1]
    %v1330 = vmul.f32 %v1329, 16.0
    %v1331 = vsub.f32 %v1330, 0.5
    %v1332 = vlaneseq
    %v1333 = vshrl.u32 %v1332, 7
    %v1334 = vsub.s32 0, %v1333
    %v1335 = vrot.slane %v1328, %v1334
    %v1336 = vsub.f32 %v49, %v1335
    %v1337 = vsub.f32 %v50, %v1335
    %v1338 = vand.u32 2147483647, %v1336
    %v1339 = vand.u32 2147483647, %v1337
    %v1340 = vsub.f32 1.0, %v1338
    %v1341 = vsub.f32 1.0, %v1339
    %v1342 = vmax.f32 %v1340, 0.0
    %v1343 = vmax.f32 %v1341, 0.0
    %v1344 = vlaneseq
    %v1345 = vshrl.u32 %v1344, 7
    %v1346 = vsub.s32 0, %v1345
    %v1347 = vrot.slane %v1331, %v1346
    %v1348 = vsub.f32 %v49, %v1347
    %v1349 = vsub.f32 %v50, %v1347
    %v1350 = vand.u32 2147483647, %v1348
    %v1351 = vand.u32 2147483647, %v1349
    %v1352 = vsub.f32 1.0, %v1350
    %v1353 = vsub.f32 1.0, %v1351
    %v1354 = vmax.f32 %v1352, 0.0
    %v1355 = vmax.f32 %v1353, 0.0
    %s1356 = scalar_lea.vmem %s0, 224
    %v1357 = vld [vmem:[%s1356] sm:$0xff]
    %v1358 = vld [vmem:[%s1356 + $0x8] sm:$0xff]
    %v1359 = vld [vmem:[%s1356 + $0x10] sm:$0xff]
    %v1360 = vld [vmem:[%s1356 + $0x18] sm:$0xff]
    %v1362 = vsel %vm85, %v1357, 0
    %v1365 = vsel %vm85, %v1358, 0
    %v1368 = vsel %vm85, %v1359, 0
    %v1371 = vsel %vm85, %v1360, 0
    %1373 = vmatprep.subr.mxu0 0.0
    %1374 = vmatpush1.msra.mxu0 %v1342
    %1375 = vmatprep.subr.mxu0 0.0
    %1376 = vmatpush1.msra.mxu0 %v1343
    %1377 = vmatprep.subr.mxu0 0.0
    %1378 = vmatpush1.msra.mxu0 0.0
    %1379 = vmatprep.subr.mxu0 0.0
    %1380 = vmatpush1.msra.mxu0 0.0
    %1381 = vmatprep.subr.mxu0 0.0
    %1382 = vmatpush1.msra.mxu0 0.0
    %1383 = vmatprep.subr.mxu0 0.0
    %1384 = vmatpush1.msra.mxu0 0.0
    %1385 = vmatprep.subr.mxu0 0.0
    %1386 = vmatpush1.msra.mxu0 0.0
    %1387 = vmatprep.subr.mxu0 0.0
    %1388 = vmatpush1.msra.mxu0 0.0
    %1389 = vmatprep.subr.mxu0 0.0
    %1390 = vmatpush1.msra.mxu0 0.0
    %1391 = vmatprep.subr.mxu0 0.0
    %1392 = vmatpush1.msra.mxu0 0.0
    %1393 = vmatprep.subr.mxu0 0.0
    %1394 = vmatpush1.msra.mxu0 0.0
    %1395 = vmatprep.subr.mxu0 0.0
    %1396 = vmatpush1.msra.mxu0 0.0
    %1397 = vmatprep.subr.mxu0 0.0
    %1398 = vmatpush1.msra.mxu0 0.0
    %1399 = vmatprep.subr.mxu0 0.0
    %1400 = vmatpush1.msra.mxu0 0.0
    %1401 = vmatprep.subr.mxu0 0.0
    %1402 = vmatpush1.msra.mxu0 0.0
    %1403 = vmatprep.subr.mxu0 0.0
    %1404 = vmatpush1.msra.mxu0 0.0
    %1405 = vmatprep.subr.mxu0 0.0
    %1406 = vmatpush1.msra.mxu0 0.0
    %1407 = vmatprep.subr.mxu0 0.0
    %1408 = vmatpush1.msra.mxu0 0.0
    %1409 = vmatprep.subr.mxu0 0.0
    %1410 = vmatpush1.msra.mxu0 0.0
    %1411 = vmatprep.subr.mxu0 0.0
    %1412 = vmatpush1.msra.mxu0 0.0
    %1413 = vmatprep.subr.mxu0 0.0
    %1414 = vmatpush1.msra.mxu0 0.0
    %1415 = vmatprep.subr.mxu0 0.0
    %1416 = vmatpush1.msra.mxu0 0.0
    %1417 = vmatprep.subr.mxu0 0.0
    %1418 = vmatpush1.msra.mxu0 0.0
    %1419 = vmatprep.subr.mxu0 0.0
    %1420 = vmatpush1.msra.mxu0 0.0
    %1421 = vmatprep.subr.mxu0 0.0
    %1422 = vmatpush1.msra.mxu0 0.0
    %1423 = vmatprep.subr.mxu0 0.0
    %1424 = vmatpush1.msra.mxu0 0.0
    %1425 = vmatprep.subr.mxu0 0.0
    %1426 = vmatpush1.msra.mxu0 0.0
    %1427 = vmatprep.subr.mxu0 0.0
    %1428 = vmatpush1.msra.mxu0 0.0
    %1429 = vmatprep.subr.mxu0 0.0
    %1430 = vmatpush1.msra.mxu0 0.0
    %1431 = vmatprep.subr.mxu0 0.0
    %1432 = vmatpush1.msra.mxu0 0.0
    %1433 = vmatprep.subr.mxu0 0.0
    %1434 = vmatpush1.msra.mxu0 0.0
    %1435 = vmatprep.subr.mxu0 0.0
    %1436 = vmatpush1.msra.mxu0 0.0
    %1437 = vmatprep.mubr.f32.mxu0 0.0
    %1438 = vmatmul.mubr.f32.gmra.mrb[0].mxu0 %v1362
    %v1439 = vpop.f32.mrb[0].mxu0
    %v1440 = vadd.f32 0.0, %v1439
    %v1441 = vpop.f32.mrb[0].mxu0
    %1442 = vmatprep.mubr.f32.mxu0 0.0
    %1443 = vmatmul.mubr.f32.gmra.mrb[0].mxu0 %v1365
    %v1444 = vpop.f32.mrb[0].mxu0
    %v1445 = vadd.f32 0.0, %v1444
    %v1446 = vpop.f32.mrb[0].mxu0
    %1447 = vmatprep.mubr.f32.mxu0 0.0
    %1448 = vmatmul.mubr.f32.gmra.mrb[0].mxu0 %v1368
    %v1449 = vpop.f32.mrb[0].mxu0
    %v1450 = vadd.f32 0.0, %v1449
    %v1451 = vpop.f32.mrb[0].mxu0
    %1452 = vmatprep.mubr.f32.mxu0 0.0
    %1453 = vmatmul.mubr.f32.gmra.mrb[0].mxu0 %v1371
    %v1454 = vpop.f32.mrb[0].mxu0
    %v1455 = vadd.f32 0.0, %v1454
    %v1456 = vpop.f32.mrb[0].mxu0
    %1457 = vdwg.mxu0
    %v1458 = vmul.f32 %v1440, %v1354
    %v1459 = vmul.f32 %v1445, %v1355
    %v1460 = vadd.f32 %v1458, %v1459
    %v1461 = vrot.slane %v1460, 4
    %v1462 = vadd.f32 %v1460, %v1461
    %v1463 = vrot.slane %v1462, 2
    %v1464 = vadd.f32 %v1462, %v1463
    %v1465 = vrot.slane %v1464, 1
    %v1466 = vadd.f32 %v1464, %v1465
    %v1467 = vmul.f32 %v1450, %v1354
    %v1468 = vmul.f32 %v1455, %v1355
    %v1469 = vadd.f32 %v1467, %v1468
    %v1470 = vrot.slane %v1469, 4
    %v1471 = vadd.f32 %v1469, %v1470
    %v1472 = vrot.slane %v1471, 2
    %v1473 = vadd.f32 %v1471, %v1472
    %v1474 = vrot.slane %v1473, 1
    %v1475 = vadd.f32 %v1473, %v1474
    %v1476 = vand.u32 2147483647, %v1466
    %v1477 = vsub.f32 0.0, %v1476
    %v1478 = vmul.f32 %v1477, 1.442695
    %v1479 = vpow.pop %v1478
    %v1480 = vmax.f32 %v1466, 0.0
    %v1481 = vmul.f32 %v1466, %v1475
    %v1482 = vsub.f32 %v1480, %v1481
    %v1483 = vadd.f32 %v1479, 1.0
    %v1484 = vlog2.pop %v1483
    %v1485 = vmul.f32 %v1484, 0.6931472
    %v1486 = vadd.f32 %v1482, %v1485
    %v1487 = vrcp.pop %v1483
    %vm1488 = vcmp.ge.f32.partialorder %v1466, 0.0
    %v1489 = vmul.f32 %v1479, %v1487
    %v1490 = vsel %vm1488, %v1487, %v1489
    %v1491 = vmul.f32 %v1486, %v45
    %v1492 = vsel %vm217, %v1491, 0.0
    %1493 = vadd.xlane.f32.xlu0 %v1492
    %v1494 = vpop.xlane.xlu0 %1493
    %v1495 = vmul.f32 %v1490, %v1475
    %v1496 = vmul.f32 %v1495, %v45
    %v1497 = vsel %vm217, %v1496, 0.0
    %1498 = vadd.xlane.f32.xlu0 %v1497
    %v1499 = vpop.xlane.xlu0 %1498
    %v1500 = vmul.f32 %v1490, %v45
    %v1501 = vsel %vm217, %v1500, 0.0
    %1502 = vadd.xlane.f32.xlu0 %v1501
    %v1503 = vpop.xlane.xlu0 %1502
    %v1504 = vmul.f32 %v1475, %v45
    %v1505 = vsel %vm217, %v1504, 0.0
    %1506 = vadd.xlane.f32.xlu0 %v1505
    %v1507 = vpop.xlane.xlu0 %1506
    %v1508 = vld [vmem:[#allocation2] sm:$0xff]
    %v1510 = vrot.slane %v402, 7
    %v1513 = vrot.slane %v584, 6
    %v1516 = vrot.slane %v766, 5
    %v1519 = vrot.slane %v948, 4
    %v1522 = vrot.slane %v1130, 3
    %v1525 = vrot.slane %v1312, 2
    %v1528 = vrot.slane %v1494, 1
    %v1530 = vsel %vm217, %v220, %v1510
    %vm1531 = vcmask 1041408
    %v1532 = vsel %vm1531, %v1530, %v1513
    %vm1533 = vcmask 1042432
    %v1534 = vsel %vm1533, %v1532, %v1516
    %vm1535 = vcmask 1043456
    %v1536 = vsel %vm1535, %v1534, %v1519
    %vm1537 = vcmask 1044480
    %v1538 = vsel %vm1537, %v1536, %v1522
    %vm1539 = vcmask 1045504
    %v1540 = vsel %vm1539, %v1538, %v1525
    %vm1541 = vcmask 1046528
    %v1542 = vsel %vm1541, %v1540, %v1528
    %v1543 = vadd.f32 %v1508, %v1542
    %vm1544 = vcmask 7168
    %1545 = vst.msk [vmem:[#allocation2] sm:$0xff] %vm1544, %v1543
    %v1546 = vld [vmem:[#allocation3] sm:$0xff]
    %v1548 = vrot.slane %v407, 7
    %v1551 = vrot.slane %v589, 6
    %v1554 = vrot.slane %v771, 5
    %v1557 = vrot.slane %v953, 4
    %v1560 = vrot.slane %v1135, 3
    %v1563 = vrot.slane %v1317, 2
    %v1566 = vrot.slane %v1499, 1
    %v1568 = vsel %vm217, %v225, %v1548
    %v1569 = vsel %vm1531, %v1568, %v1551
    %v1570 = vsel %vm1533, %v1569, %v1554
    %v1571 = vsel %vm1535, %v1570, %v1557
    %v1572 = vsel %vm1537, %v1571, %v1560
    %v1573 = vsel %vm1539, %v1572, %v1563
    %v1574 = vsel %vm1541, %v1573, %v1566
    %v1575 = vadd.f32 %v1546, %v1574
    %1576 = vst.msk [vmem:[#allocation3] sm:$0xff] %vm1544, %v1575
    %v1577 = vld [vmem:[#allocation4] sm:$0xff]
    %v1579 = vrot.slane %v411, 7
    %v1582 = vrot.slane %v593, 6
    %v1585 = vrot.slane %v775, 5
    %v1588 = vrot.slane %v957, 4
    %v1591 = vrot.slane %v1139, 3
    %v1594 = vrot.slane %v1321, 2
    %v1597 = vrot.slane %v1503, 1
    %v1599 = vsel %vm217, %v229, %v1579
    %v1600 = vsel %vm1531, %v1599, %v1582
    %v1601 = vsel %vm1533, %v1600, %v1585
    %v1602 = vsel %vm1535, %v1601, %v1588
    %v1603 = vsel %vm1537, %v1602, %v1591
    %v1604 = vsel %vm1539, %v1603, %v1594
    %v1605 = vsel %vm1541, %v1604, %v1597
    %v1606 = vadd.f32 %v1577, %v1605
    %1607 = vst.msk [vmem:[#allocation4] sm:$0xff] %vm1544, %v1606
    %v1608 = vld [vmem:[#allocation5] sm:$0xff]
    %v1610 = vrot.slane %v415, 7
    %v1613 = vrot.slane %v597, 6
    %v1616 = vrot.slane %v779, 5
    %v1619 = vrot.slane %v961, 4
    %v1622 = vrot.slane %v1143, 3
    %v1625 = vrot.slane %v1325, 2
    %v1628 = vrot.slane %v1507, 1
    %v1630 = vsel %vm217, %v233, %v1610
    %v1631 = vsel %vm1531, %v1630, %v1613
    %v1632 = vsel %vm1533, %v1631, %v1616
    %v1633 = vsel %vm1535, %v1632, %v1619
    %v1634 = vsel %vm1537, %v1633, %v1622
    %v1635 = vsel %vm1539, %v1634, %v1625
    %v1636 = vsel %vm1541, %v1635, %v1628
    %v1637 = vadd.f32 %v1608, %v1636
    %1638 = vst.msk [vmem:[#allocation5] sm:$0xff] %vm1544, %v1637
    // Predicated region
    $region34: #{_device_losses.5} parent=1 // pred_check
      %p1639 = pneg %p29
    $region35: #{_device_losses.5} parent=1 // pred_check_branch
      %1641 = sbr.rel (%p1639) target = $region37
    $region36: #{_device_losses.5} parent=1 // pred_region
      %v1642 = vld [vmem:[%s3] sm:$0xff]
      %v1643 = vld [vmem:[#allocation2] sm:$0xff]
      %v1644 = vmul.f32 %v1643, 0.0625
      %v1645 = vld [vmem:[#allocation3] sm:$0xff]
      %v1646 = vmul.f32 %v1645, 2.0
      %v1647 = vadd.f32 %v1646, 1.0
      %v1648 = vld [vmem:[#allocation4] sm:$0xff]
      %v1649 = vld [vmem:[#allocation5] sm:$0xff]
      %v1650 = vadd.f32 %v1648, %v1649
      %v1651 = vadd.f32 %v1650, 1.0
      %v1652 = vrcp.pop %v1651
      %v1653 = vmul.f32 %v1647, %v1652
      %v1654 = vsub.f32 1.0, %v1653
      %v1655 = vld [vmem:[#allocation6] sm:$0x1]
      %v1656 = vmul.f32 %v1644, %v1642
      %v1657 = vsel %vm1544, %v1656, 0.0
      %1658 = vadd.xlane.f32.xlu0 %v1657
      %v1659 = vpop.xlane.xlu0 %1658
      %v1660 = vrot.slane %v1659, 4
      %v1661 = vadd.f32 %v1659, %v1660
      %v1662 = vrot.slane %v1661, 2
      %v1663 = vadd.f32 %v1661, %v1662
      %v1664 = vrot.slane %v1663, 1
      %v1665 = vadd.f32 %v1663, %v1664
      %s1666 = vtos %v1665
      %v1667 = vstv %s1666
      %v1668 = vadd.f32 %v1655, %v1667
      %vm1669 = vcmask 0
      %1670 = vst.msk [vmem:[#allocation6] sm:$0x1] %vm1669, %v1668
      %v1671 = vld [vmem:[#allocation7] sm:$0x1]
      %v1672 = vmul.f32 %v1654, %v1642
      %v1673 = vsel %vm1544, %v1672, 0.0
      %1674 = vadd.xlane.f32.xlu0 %v1673
      %v1675 = vpop.xlane.xlu0 %1674
      %v1676 = vrot.slane %v1675, 4
      %v1677 = vadd.f32 %v1675, %v1676
      %v1678 = vrot.slane %v1677, 2
      %v1679 = vadd.f32 %v1677, %v1678
      %v1680 = vrot.slane %v1679, 1
      %v1681 = vadd.f32 %v1679, %v1680
      %s1682 = vtos %v1681
      %v1683 = vstv %s1682
      %v1684 = vadd.f32 %v1671, %v1683
      %1685 = vst.msk [vmem:[#allocation7] sm:$0x1] %vm1669, %v1684
    $region37: #{_device_losses.5} parent=1 // pred_fallthru
      _
    // Predicated region
    $region38: #{_device_losses.5} parent=1 // pred_check
      _
    $region39: #{_device_losses.5} parent=1 // pred_check_branch
      %1687 = sbr.rel (%p30) target = $region41
    $region40: #{_device_losses.5} parent=1 // pred_region
      %s1688 = sld [smem:[#allocation8]]
      %v1689 = vld [vmem:[#allocation6] sm:$0x1]
      %v1690 = vstv %s1688
      %v1691 = vrcp.pop %v1690
      %v1692 = vmul.f32 %v1689, %v1691
      %s1693 = vtos %v1692
      %s1694 = scalar_lea.smem [#allocation9], 0
      %1695 = sst [smem:[%s1694]] %s1693
      %v1696 = vld [vmem:[#allocation7] sm:$0x1]
      %v1697 = vmul.f32 %v1696, %v1691
      %s1698 = vtos %v1697
      %s1699 = scalar_lea.smem [#allocation11], 0
      %1700 = sst [smem:[%s1699]] %s1698
    $region41: #{_device_losses.5} parent=1 // pred_fallthru
      _
    // Predicated region
    $region42: #{_device_losses.5} parent=1 // pred_check
      _
    $region43: #{_device_losses.5} parent=1 // pred_check_branch
      %1702 = sbr.rel (0) target = $region45
    $region44: #{_device_losses.5} parent=1 // pred_region
      %s1704 = ssub.s32 16, 16
      %1705 = vsyncadd [#allocation10], %s1704
      %1708 = dma.smem_to_hbm [#allocation9], 16, %s6, [#allocation10]
    $region45: #{_device_losses.5} parent=1 // pred_fallthru
      _
    // Predicated region
    $region46: #{_device_losses.5} parent=1 // pred_check
      _
    $region47: #{_device_losses.5} parent=1 // pred_check_branch
      %1710 = sbr.rel (0) target = $region49
    $region48: #{_device_losses.5} parent=1 // pred_region
      %s1712 = ssub.s32 16, 16
      %1713 = vsyncadd [#allocation12], %s1712
      %1716 = dma.smem_to_hbm [#allocation11], 16, %s7, [#allocation12]
    $region49: #{_device_losses.5} parent=1 // pred_fallthru
      _
    // Predicated region
    $region50: #{_device_losses.5} parent=1 // pred_check
      _
    $region51: #{_device_losses.5} parent=1 // pred_check_branch
      %1718 = sbr.rel (0) target = $region53
    $region52: #{_device_losses.5} parent=1 // pred_region
      %1719 = dma.done [#allocation10], 16
    $region53: #{_device_losses.5} parent=1 // pred_fallthru
      _
    // Predicated region
    $region54: #{_device_losses.5} parent=1 // pred_check
      _
    $region55: #{_device_losses.5} parent=1 // pred_check_branch
      %1721 = sbr.rel (0) target = $region57
    $region56: #{_device_losses.5} parent=1 // pred_region
      %1722 = dma.done [#allocation12], 16
    $region57: #{_device_losses.5} parent=1 // pred_fallthru
      _
    %1723 = sfence
    %1724 = vsyncpa [#allocation10], 1
    %1725 = vsyncpa [#allocation12], 1

</llo_original>
